<compile_context>
chip_gen: v5e
topology: v5e:2x2
jax: 0.10.0
libtpu: 0.0.40
codegen_flags: <defaults>
</compile_context>

<pallas_src>
import functools

import jax
import jax.numpy as jnp
from jax import lax
from jax.experimental import pallas as pl
from jax.experimental.pallas import tpu as pltpu


# ----------------------------------------------------------------------------
# small helpers
# ----------------------------------------------------------------------------
def _round_up(a, b):
    return -(-a // b) * b


def _padded_bytes(shape, itemsize=4):
    s = list(shape)
    if len(s) >= 1:
        s[-1] = _round_up(s[-1], 128)
    if len(s) >= 2:
        s[-2] = _round_up(s[-2], 8)
    total = itemsize
    for d in s:
        total *= d
    return total


def _tpu_vmem_capacity_bytes():
    try:
        cap = getattr(pltpu.get_tpu_info(), "vmem_capacity_bytes", None)
        if cap:
            return int(cap)
    except Exception:
        pass
    return 64 * 1024 * 1024            # conservative default (v7x per-core physical VMEM)


def _vmem_limit_bytes():
    # ~78% of physical VMEM => ~100 MiB on v5e/v6e (128 MiB), ~50 MiB on v7x (64 MiB).
    return min(int(0.78 * _tpu_vmem_capacity_bytes()), 100 * 1024 * 1024)


def _tap_offsets(Wp):
    # flat-lane offset of tap (ky, kx) relative to the output position, (ky, kx)-major order
    # matching w.reshape(9*Cin, Cout).
    return tuple((ky - 1) * Wp + (kx - 1) for ky in range(3) for kx in range(3))


def _im2col(a, offs, G, ncore):
    """a: (Cin, E) zero-guarded lane-flattened padded activation.
    Returns (9*Cin, ncore) transposed im2col: row t*Cin+ci, column p = a[ci, G + p + offs[t]]."""
    return jnp.concatenate([a[:, G + off:G + off + ncore] for off in offs], axis=0)


def _wT(w):
    """(3, 3, Cin, Cout) HWIO conv weight -> (Cout, 9*Cin) weight-stationary transposed form."""
    cin, cout = w.shape[2], w.shape[3]
    return w.astype(jnp.float32).reshape(9 * cin, cout).T


# ============================================================================
# Path A: whole-network fused kernel (small problems, everything VMEM-resident)
# ============================================================================
def _dncnn_fused_kernel(mask_ref, xpad_ref, wfT_ref, whT_ref, g_ref, wlT_ref,
                        o_ref, act_ref, *, eps, offs, G, ncore, n, denom):
    mask = mask_ref[...]                                    # (1, ncore): 1 on interior pixels

    # Guard-extended activation slab: zero it once; only [:, G:G+ncore] is rewritten below,
    # so the guards and the per-image halo stay zero for every layer (== Conv2d zero padding).
    act_ref[...] = jnp.zeros_like(act_ref)

    # ---- first layer: conv(Cimg -> C) on the MXU (K = 9*Cin_pad im2col) + relu
    patches = _im2col(xpad_ref[...], offs, G, ncore)        # (9*Cin_pad, ncore)
    conv = jnp.dot(wfT_ref[...], patches, preferred_element_type=jnp.float32)   # (C, ncore)
    act_ref[:, G:G + ncore] = jnp.maximum(conv, 0.0) * mask

    # ---- hidden layers: conv + BFBatchNorm2d(use_bias=False, training) + relu.
    #      fori_loop keeps live ranges / code size bounded at real DnCNN depth (17-20).
    def body(l, carry):
        patches = _im2col(act_ref[...], offs, G, ncore)     # (9C, ncore): one K = 9C contraction
        conv = jnp.dot(whT_ref[l], patches, preferred_element_type=jnp.float32)  # (C, ncore)
        m = conv * mask
        s = jnp.sum(m, axis=1, keepdims=True)               # (C, 1) interior sum
        sq = jnp.sum(m * conv, axis=1, keepdims=True)       # (C, 1) interior sum of squares
        mean = s / n
        var = jnp.maximum((sq - n * mean * mean) / denom, 0.0)   # unbiased, single-pass, clamped
        scale = g_ref[l] / (jnp.sqrt(var) + eps)             # (C, 1) BFBatchNorm2d scale
        act_ref[:, G:G + ncore] = jnp.maximum(conv * scale, 0.0) * mask
        return carry

    lax.fori_loop(0, whT_ref.shape[0], body, 0)

    # ---- last layer: conv(C -> Cimg) + fused residual  out = x - conv
    patches = _im2col(act_ref[...], offs, G, ncore)
    convl = jnp.dot(wlT_ref[...], patches, preferred_element_type=jnp.float32)   # (Cimg, ncore)
    cimg = o_ref.shape[0]
    xc = xpad_ref[:cimg, G:G + ncore]
    o_ref[...] = ((xc - convl) * mask).astype(o_ref.dtype)


def dncnn_forward_fused(x_nchw, params, eps=1e-5):
    x = x_nchw.astype(jnp.float32)
    N, Cimg, H, W = x.shape
    C = params["w_first"].shape[-1]
    L = len(params["w_hidden"])
    assert L >= 1
    Cpad = _round_up(Cimg, 8)          # pad image channels to a full sublane group
    Hp, Wp = H + 2, W + 2
    core = N * Hp * Wp
    ncore = _round_up(core, 128)       # lane-dense matmul / store extent
    G = _round_up(Wp + 1, 128)         # zero guard on both sides covers all 9 tap offsets
    E = G + ncore + G
    n = N * H * W
    denom = max(n - 1, 1)
    offs = _tap_offsets(Wp)

    # channels-major, lane-flattened, guard-extended padded input  (Cpad, E)
    xp = jnp.pad(x, ((0, 0), (0, 0), (1, 1), (1, 1)))                # (N, Cimg, Hp, Wp)
    xp = jnp.transpose(xp, (1, 0, 2, 3)).reshape(Cimg, core)
    xp = jnp.pad(xp, ((0, Cpad - Cimg), (G, E - G - core)))

    # interior-pixel mask over the flattened core  (1, ncore)
    m = jnp.pad(jnp.ones((N, H, W), jnp.float32), ((0, 0), (1, 1), (1, 1))).reshape(1, core)
    mask = jnp.pad(m, ((0, 0), (0, ncore - core)))

    w_first_p = jnp.pad(params["w_first"].astype(jnp.float32),
                        ((0, 0), (0, 0), (0, Cpad - Cimg), (0, 0)))
    wfT = _wT(w_first_p)                                              # (C, 9*Cpad)
    whT = jnp.stack([_wT(w) for w in params["w_hidden"]])             # (L, C, 9C)
    g = jnp.stack([gm.astype(jnp.float32).reshape(C, 1)
                   for gm in params["gamma"]])                        # (L, C, 1)
    wlT = _wT(params["w_last"])                                       # (Cimg, 9C)

    kern = functools.partial(_dncnn_fused_kernel, eps=eps, offs=offs, G=G,
                             ncore=ncore, n=n, denom=denom)
    out_flat = pl.pallas_call(
        kern,
        out_shape=jax.ShapeDtypeStruct((Cimg, ncore), jnp.float32),
        scratch_shapes=[pltpu.VMEM((C, E), jnp.float32)],             # resident activation slab
        compiler_params=pltpu.CompilerParams(vmem_limit_bytes=_vmem_limit_bytes()),
    )(mask, xp, wfT, whT, g, wlT)

    out = out_flat[:, :core].reshape(Cimg, N, Hp, Wp)
    out = jnp.transpose(out, (1, 0, 2, 3))[:, :, 1:H + 1, 1:W + 1]    # interior, NCHW (glue)
    return out.astype(x_nchw.dtype)


# ============================================================================
# Path B: scalable per-layer kernels — transposed 3x3 conv with fused input
#         pre-scale/relu, per-step BN partial stats, and fused residual.
# ============================================================================
def _convT_stats_kernel(a_ref, wT_ref, scale_ref, mask_ref, o_ref, s_ref, sq_ref,
                        *, offs, G, ncore, apply_in_relu):
    cout = o_ref.shape[1]
    # fused input pre-op: previous layer's BN scale (+ relu); exact because the zero guards /
    # halo are invariant under scale + relu.
    a = a_ref[0].astype(jnp.float32) * scale_ref[...]                  # (Cin, E)
    if apply_in_relu:
        a = jnp.maximum(a, 0.0)
    patches = _im2col(a, offs, G, ncore)                               # (9*Cin, ncore)
    conv = jnp.dot(wT_ref[...], patches, preferred_element_type=jnp.float32)   # (Cout, ncore)
    mask = mask_ref[...]
    m = conv * mask                                                    # halo / tail-pad zeroed

    # store the guard-extended raw (pre-BN) activation for the next layer (guards = 0)
    o_ref[0, :, :G] = jnp.zeros((cout, G), o_ref.dtype)
    o_ref[0, :, G:G + ncore] = m.astype(o_ref.dtype)
    o_ref[0, :, G + ncore:] = jnp.zeros((cout, G), o_ref.dtype)

    # per-grid-step partial BN stats (reduced over the batch in JAX) -> the batch grid axis
    # stays "parallel" / megacore-safe (no cross-step accumulator).
    s_ref[0] = jnp.sum(m, axis=1, keepdims=True)                       # (Cout, 1)
    sq_ref[0] = jnp.sum(m * conv, axis=1, keepdims=True)               # (Cout, 1)


def _convT_residual_kernel(a_ref, x_ref, wT_ref, scale_ref, mask_ref, o_ref,
                           *, offs, G, ncore):
    a = jnp.maximum(a_ref[0].astype(jnp.float32) * scale_ref[...], 0.0)   # (Cin, E)
    patches = _im2col(a, offs, G, ncore)
    conv = jnp.dot(wT_ref[...], patches, preferred_element_type=jnp.float32)  # (Cimg, ncore)
    cimg = o_ref.shape[1]
    xc = x_ref[0, :cimg, G:G + ncore].astype(jnp.float32)
    o_ref[0] = ((xc - conv) * mask_ref[...]).astype(o_ref.dtype)


def _convT_stats(a, wT, scale, mask, *, offs, G, ncore, apply_in_relu, out_dtype):
    N, Cin, E = a.shape
    Cout = wT.shape[0]
    kern = functools.partial(_convT_stats_kernel, offs=offs, G=G, ncore=ncore,
                             apply_in_relu=apply_in_relu)
    return pl.pallas_call(
        kern,
        out_shape=(jax.ShapeDtypeStruct((N, Cout, E), out_dtype),
                   jax.ShapeDtypeStruct((N, Cout, 1), jnp.float32),
                   jax.ShapeDtypeStruct((N, Cout, 1), jnp.float32)),
        grid=(N,),
        in_specs=[pl.BlockSpec((1, Cin, E), lambda nb: (nb, 0, 0)),
                  pl.BlockSpec((Cout, 9 * Cin), lambda nb: (0, 0)),
                  pl.BlockSpec((Cin, 1), lambda nb: (0, 0)),
                  pl.BlockSpec((1, ncore), lambda nb: (0, 0))],
        out_specs=(pl.BlockSpec((1, Cout, E), lambda nb: (nb, 0, 0)),
                   pl.BlockSpec((1, Cout, 1), lambda nb: (nb, 0, 0)),
                   pl.BlockSpec((1, Cout, 1), lambda nb: (nb, 0, 0))),
        compiler_params=pltpu.CompilerParams(
            dimension_semantics=("parallel",),
            vmem_limit_bytes=_vmem_limit_bytes()),
    )(a, wT, scale, mask)


def _convT_residual(a, xp, wT, scale, mask, *, offs, G, ncore):
    N, Cin, E = a.shape
    Cxp = xp.shape[1]
    Cout = wT.shape[0]
    kern = functools.partial(_convT_residual_kernel, offs=offs, G=G, ncore=ncore)
    return pl.pallas_call(
        kern,
        out_shape=jax.ShapeDtypeStruct((N, Cout, ncore), jnp.float32),
        grid=(N,),
        in_specs=[pl.BlockSpec((1, Cin, E), lambda nb: (nb, 0, 0)),
                  pl.BlockSpec((1, Cxp, E), lambda nb: (nb, 0, 0)),
                  pl.BlockSpec((Cout, 9 * Cin), lambda nb: (0, 0)),
                  pl.BlockSpec((Cin, 1), lambda nb: (0, 0)),
                  pl.BlockSpec((1, ncore), lambda nb: (0, 0))],
        out_specs=pl.BlockSpec((1, Cout, ncore), lambda nb: (nb, 0, 0)),
        compiler_params=pltpu.CompilerParams(
            dimension_semantics=("parallel",),
            vmem_limit_bytes=_vmem_limit_bytes()),
    )(a, xp, wT, scale, mask)


def dncnn_forward_layered(x_nchw, params, eps=1e-5, act_dtype=jnp.float32):
    x = x_nchw.astype(jnp.float32)
    N, Cimg, H, W = x.shape
    C = params["w_first"].shape[-1]
    Cpad = _round_up(Cimg, 8)
    Hp, Wp = H + 2, W + 2
    core = Hp * Wp
    ncore = _round_up(core, 128)
    G = _round_up(Wp + 1, 128)
    E = G + ncore + G
    n = N * H * W
    denom = max(n - 1, 1)
    offs = _tap_offsets(Wp)

    # per-image padded, lane-flattened, guard-extended input  (N, Cpad, E)
    xp = jnp.pad(x, ((0, 0), (0, 0), (1, 1), (1, 1))).reshape(N, Cimg, core)
    xp = jnp.pad(xp, ((0, 0), (0, Cpad - Cimg), (G, E - G - core)))

    m = jnp.pad(jnp.ones((H, W), jnp.float32), ((1, 1), (1, 1))).reshape(1, core)
    mask = jnp.pad(m, ((0, 0), (0, ncore - core)))

    w_first_p = jnp.pad(params["w_first"].astype(jnp.float32),
                        ((0, 0), (0, 0), (0, Cpad - Cimg), (0, 0)))

    # first conv (raw image input, no pre-op); its relu is folded into the next kernel
    act, _, _ = _convT_stats(xp, _wT(w_first_p), jnp.ones((Cpad, 1), jnp.float32), mask,
                             offs=offs, G=G, ncore=ncore,
                             apply_in_relu=False, out_dtype=act_dtype)
    scale = jnp.ones((C, 1), jnp.float32)

    for w_h, gamma in zip(params["w_hidden"], params["gamma"]):
        act, s, sq = _convT_stats(act, _wT(w_h), scale, mask,
                                  offs=offs, G=G, ncore=ncore,
                                  apply_in_relu=True, out_dtype=act_dtype)
        s_tot = jnp.sum(s[:, :, 0], axis=0)
        sq_tot = jnp.sum(sq[:, :, 0], axis=0)
        mean = s_tot / n
        var = jnp.maximum((sq_tot - n * mean * mean) / denom, 0.0)     # unbiased, clamped
        scale = (gamma.astype(jnp.float32) / (jnp.sqrt(var) + eps)).reshape(C, 1)

    out_pad = _convT_residual(act, xp, _wT(params["w_last"]), scale, mask,
                              offs=offs, G=G, ncore=ncore)             # (N, Cimg, ncore)
    out = out_pad[:, :, :core].reshape(N, Cimg, Hp, Wp)[:, :, 1:H + 1, 1:W + 1]
    return out.astype(x_nchw.dtype)


# ============================================================================
# Dispatcher: fused single-call kernel when it fits VMEM (generation-aware),
# otherwise per-layer kernels.
# ============================================================================
def _fused_vmem_estimate(N, Cimg, C, L, H, W):
    Cp = _round_up(Cimg, 8)
    Hp, Wp = H + 2, W + 2
    core = N * Hp * Wp
    ncore = _round_up(core, 128)
    G = _round_up(Wp + 1, 128)
    E = G + ncore + G
    return (_padded_bytes((Cp, E)) + _padded_bytes((1, ncore))          # inputs
            + _padded_bytes((C, E))                                      # activation scratch
            + _padded_bytes((9 * C, ncore))                              # im2col slab
            + 2 * _padded_bytes((C, ncore))                              # conv / act temporaries
            + _padded_bytes((Cimg, ncore))                               # output
            + _padded_bytes((L, C, 9 * C)) + _padded_bytes((C, 9 * Cp))
            + _padded_bytes((Cimg, 9 * C)) + _padded_bytes((L, C, 1)))   # weights / gammas


def dncnn_forward(x_nchw, params, eps=1e-5):
    N, Cimg, H, W = x_nchw.shape
    C = params["w_first"].shape[-1]
    L = len(params["w_hidden"])
    est = _fused_vmem_estimate(N, Cimg, C, L, H, W)
    if L >= 1 and est * 3 // 2 <= _vmem_limit_bytes():
        return dncnn_forward_fused(x_nchw, params, eps)
    return dncnn_forward_layered(x_nchw, params, eps)


# ----------------------------------------------------------------------------
# Pure-JAX reference (for self-check only)
# ----------------------------------------------------------------------------
def dncnn_reference(x_nchw, params, eps=1e-5):
    def conv(x, w):
        return jax.lax.conv_general_dilated(
            x, w, window_strides=(1, 1), padding=((1, 1), (1, 1)),
            dimension_numbers=("NHWC", "HWIO", "NHWC"))

    x = jnp.transpose(x_nchw, (0, 2, 3, 1)).astype(jnp.float32)
    out = jax.nn.relu(conv(x, params["w_first"]))
    for w_h, gamma in zip(params["w_hidden"], params["gamma"]):
        out = conv(out, w_h)
        flat = out.reshape(-1, out.shape[-1])
        var = jnp.var(flat, axis=0, ddof=1)            # BFBatchNorm2d: unbiased batch variance
        out = jax.nn.relu(out * (gamma / (jnp.sqrt(var) + eps)))
    out = conv(out, params["w_last"])
    return x_nchw - jnp.transpose(out, (0, 3, 1, 2))


if __name__ == "__main__":
    key = jax.random.PRNGKey(0)
    N, Cimg, H, W = 2, 1, 16, 16
    n_channels = 32
    depth = 5                              # depth-2 = 3 hidden conv+BN+relu blocks

    keys = jax.random.split(key, 2 * depth + 2)
    params = {
        "w_first": 0.1 * jax.random.normal(keys[0], (3, 3, Cimg, n_channels), jnp.float32),
        "w_hidden": [0.05 * jax.random.normal(keys[1 + i], (3, 3, n_channels, n_channels),
                                              jnp.float32)
                     for i in range(depth - 2)],
        "gamma": [1.0 + 0.1 * jax.random.normal(keys[depth + i], (n_channels,), jnp.float32)
                  for i in range(depth - 2)],
        "w_last": 0.1 * jax.random.normal(keys[-1], (3, 3, n_channels, Cimg), jnp.float32),
    }
    x = jax.random.normal(keys[-2], (N, Cimg, H, W), jnp.float32)

    ref = jax.block_until_ready(dncnn_reference(x, params))

    out_fused = jax.block_until_ready(dncnn_forward(x, params))           # fused path at this size
    out_layer = jax.block_until_ready(dncnn_forward_layered(x, params))   # scalable fallback path

    assert out_fused.shape == x.shape and out_fused.dtype == jnp.float32
    assert out_layer.shape == x.shape and out_layer.dtype == jnp.float32
    err_f = float(jnp.max(jnp.abs(out_fused - ref)))
    err_l = float(jnp.max(jnp.abs(out_layer - ref)))
    if err_f > 2e-3 or err_l > 2e-3:
        raise AssertionError(
            f"Pallas/DnCNN mismatch vs JAX reference: fused={err_f} layered={err_l}")
    print("KERNEL_OK")
</pallas_src>

<mosaic_0001>
module attributes {stable_mosaic.version = 11 : i64} {
  func.func @_dncnn_fused_kernel(%arg0: memref<1x768xf32, #tpu.memory_space<vmem>>, %arg1: memref<8x1024xf32, #tpu.memory_space<vmem>>, %arg2: memref<32x72xf32, #tpu.memory_space<vmem>>, %arg3: memref<3x32x288xf32, #tpu.memory_space<vmem>>, %arg4: memref<3x32x1xf32, #tpu.memory_space<vmem>>, %arg5: memref<1x288xf32, #tpu.memory_space<vmem>>, %arg6: memref<1x768xf32, #tpu.memory_space<vmem>>, %arg7: memref<32x1024xf32, #tpu.memory_space<vmem>>) attributes {dimension_semantics = [], scalar_prefetch = 0 : i64, scratch_operands = 1 : i64, tpu.core_type = #tpu.core_type<tc>} {
    %c0 = arith.constant 0 : index
    %c0_0 = arith.constant 0 : index
    %0 = vector.load %arg0[%c0, %c0_0] : memref<1x768xf32, #tpu.memory_space<vmem>>, vector<1x768xf32>
    %cst = arith.constant 0.000000e+00 : f32
    %1 = vector.broadcast %cst : f32 to vector<32x1024xf32>
    %c0_1 = arith.constant 0 : index
    %c0_2 = arith.constant 0 : index
    %2 = vector.load %arg7[%c0_1, %c0_2] : memref<32x1024xf32, #tpu.memory_space<vmem>>, vector<32x1024xf32>
    tpu.vector_store %arg7[%c0_1, %c0_2], %1 {strides = array<i32>} : memref<32x1024xf32, #tpu.memory_space<vmem>>, vector<32x1024xf32>,
    %c0_3 = arith.constant 0 : index
    %c0_4 = arith.constant 0 : index
    %3 = vector.load %arg1[%c0_3, %c0_4] : memref<8x1024xf32, #tpu.memory_space<vmem>>, vector<8x1024xf32>
    %4 = vector.extract_strided_slice %3 {offsets = [0, 109], sizes = [8, 768], strides = [1, 1]} : vector<8x1024xf32> to vector<8x768xf32>
    %5 = vector.extract_strided_slice %3 {offsets = [0, 110], sizes = [8, 768], strides = [1, 1]} : vector<8x1024xf32> to vector<8x768xf32>
    %6 = vector.extract_strided_slice %3 {offsets = [0, 111], sizes = [8, 768], strides = [1, 1]} : vector<8x1024xf32> to vector<8x768xf32>
    %7 = vector.extract_strided_slice %3 {offsets = [0, 127], sizes = [8, 768], strides = [1, 1]} : vector<8x1024xf32> to vector<8x768xf32>
    %8 = vector.extract_strided_slice %3 {offsets = [0, 128], sizes = [8, 768], strides = [1, 1]} : vector<8x1024xf32> to vector<8x768xf32>
    %9 = vector.extract_strided_slice %3 {offsets = [0, 129], sizes = [8, 768], strides = [1, 1]} : vector<8x1024xf32> to vector<8x768xf32>
    %10 = vector.extract_strided_slice %3 {offsets = [0, 145], sizes = [8, 768], strides = [1, 1]} : vector<8x1024xf32> to vector<8x768xf32>
    %11 = vector.extract_strided_slice %3 {offsets = [0, 146], sizes = [8, 768], strides = [1, 1]} : vector<8x1024xf32> to vector<8x768xf32>
    %12 = vector.extract_strided_slice %3 {offsets = [0, 147], sizes = [8, 768], strides = [1, 1]} : vector<8x1024xf32> to vector<8x768xf32>
    %13 = tpu.concatenate %4, %5, %6, %7, %8, %9, %10, %11, %12 in 0 : vector<8x768xf32>, vector<8x768xf32>, vector<8x768xf32>, vector<8x768xf32>, vector<8x768xf32>, vector<8x768xf32>, vector<8x768xf32>, vector<8x768xf32>, vector<8x768xf32> -> vector<72x768xf32>
    %c0_5 = arith.constant 0 : index
    %c0_6 = arith.constant 0 : index
    %14 = vector.load %arg2[%c0_5, %c0_6] : memref<32x72xf32, #tpu.memory_space<vmem>>, vector<32x72xf32>
    %cst_7 = arith.constant dense<0.000000e+00> : vector<32x768xf32>
    %15 = tpu.matmul %14, %13, %cst_7 {dimension_numbers = #tpu.dot_dimension_numbers<[1], [0], [0], [1], [0, 0, 1, 1], [], []>} : vector<32x72xf32>, vector<72x768xf32>, vector<32x768xf32> -> vector<32x768xf32>
    %cst_8 = arith.constant 0.000000e+00 : f32
    %16 = vector.broadcast %cst_8 : f32 to vector<32x768xf32>
    %17 = arith.maximumf %15, %16 : vector<32x768xf32>
    %18 = vector.broadcast %0 : vector<1x768xf32> to vector<32x768xf32>
    %19 = arith.mulf %17, %18 : vector<32x768xf32>
    %c0_9 = arith.constant 0 : index
    %c128 = arith.constant 128 : index
    %20 = vector.load %arg7[%c0_9, %c128] : memref<32x1024xf32, #tpu.memory_space<vmem>>, vector<32x768xf32>
    tpu.vector_store %arg7[%c0_9, %c128], %19 {strides = array<i32>} : memref<32x1024xf32, #tpu.memory_space<vmem>>, vector<32x768xf32>,
    %c0_i32 = arith.constant 0 : i32
    %c3_i32 = arith.constant 3 : i32
    %21 = arith.addi %c0_i32, %c3_i32 : i32
    %c1_i32 = arith.constant 1 : i32
    scf.for %arg8 = %c0_i32 to %21 step %c1_i32  : i32 {
      %c0_20 = arith.constant 0 : index
      %c0_21 = arith.constant 0 : index
      %39 = vector.load %arg7[%c0_20, %c0_21] : memref<32x1024xf32, #tpu.memory_space<vmem>>, vector<32x1024xf32>
      %40 = vector.extract_strided_slice %39 {offsets = [0, 109], sizes = [32, 768], strides = [1, 1]} : vector<32x1024xf32> to vector<32x768xf32>
      %41 = vector.extract_strided_slice %39 {offsets = [0, 110], sizes = [32, 768], strides = [1, 1]} : vector<32x1024xf32> to vector<32x768xf32>
      %42 = vector.extract_strided_slice %39 {offsets = [0, 111], sizes = [32, 768], strides = [1, 1]} : vector<32x1024xf32> to vector<32x768xf32>
      %43 = vector.extract_strided_slice %39 {offsets = [0, 127], sizes = [32, 768], strides = [1, 1]} : vector<32x1024xf32> to vector<32x768xf32>
      %44 = vector.extract_strided_slice %39 {offsets = [0, 128], sizes = [32, 768], strides = [1, 1]} : vector<32x1024xf32> to vector<32x768xf32>
      %45 = vector.extract_strided_slice %39 {offsets = [0, 129], sizes = [32, 768], strides = [1, 1]} : vector<32x1024xf32> to vector<32x768xf32>
      %46 = vector.extract_strided_slice %39 {offsets = [0, 145], sizes = [32, 768], strides = [1, 1]} : vector<32x1024xf32> to vector<32x768xf32>
      %47 = vector.extract_strided_slice %39 {offsets = [0, 146], sizes = [32, 768], strides = [1, 1]} : vector<32x1024xf32> to vector<32x768xf32>
      %48 = vector.extract_strided_slice %39 {offsets = [0, 147], sizes = [32, 768], strides = [1, 1]} : vector<32x1024xf32> to vector<32x768xf32>
      %49 = tpu.concatenate %40, %41, %42, %43, %44, %45, %46, %47, %48 in 0 : vector<32x768xf32>, vector<32x768xf32>, vector<32x768xf32>, vector<32x768xf32>, vector<32x768xf32>, vector<32x768xf32>, vector<32x768xf32>, vector<32x768xf32>, vector<32x768xf32> -> vector<288x768xf32>
      %50 = arith.index_cast %arg8 : i32 to index
      %c0_22 = arith.constant 0 : index
      %c0_23 = arith.constant 0 : index
      %51 = vector.load %arg3[%50, %c0_22, %c0_23] : memref<3x32x288xf32, #tpu.memory_space<vmem>>, vector<1x32x288xf32>
      %52 = vector.shape_cast %51 : vector<1x32x288xf32> to vector<32x288xf32>
      %cst_24 = arith.constant dense<0.000000e+00> : vector<32x768xf32>
      %53 = tpu.matmul %52, %49, %cst_24 {dimension_numbers = #tpu.dot_dimension_numbers<[1], [0], [0], [1], [0, 0, 1, 1], [], []>} : vector<32x288xf32>, vector<288x768xf32>, vector<32x768xf32> -> vector<32x768xf32>
      %54 = vector.broadcast %0 : vector<1x768xf32> to vector<32x768xf32>
      %55 = arith.mulf %53, %54 : vector<32x768xf32>
      %cst_25 = arith.constant dense<0.000000e+00> : vector<32xf32>
      %56 = vector.multi_reduction <add>, %55, %cst_25 [1] : vector<32x768xf32> to vector<32xf32>
      %57 = vector.shape_cast %56 : vector<32xf32> to vector<32x1xf32>
      %58 = arith.mulf %55, %53 : vector<32x768xf32>
      %cst_26 = arith.constant dense<0.000000e+00> : vector<32xf32>
      %59 = vector.multi_reduction <add>, %58, %cst_26 [1] : vector<32x768xf32> to vector<32xf32>
      %60 = vector.shape_cast %59 : vector<32xf32> to vector<32x1xf32>
      %cst_27 = arith.constant 5.120000e+02 : f32
      %61 = vector.broadcast %cst_27 : f32 to vector<32x1xf32>
      %62 = arith.divf %57, %61 : vector<32x1xf32>
      %cst_28 = arith.constant 5.120000e+02 : f32
      %63 = vector.broadcast %cst_28 : f32 to vector<32x1xf32>
      %64 = arith.mulf %63, %62 : vector<32x1xf32>
      %65 = arith.mulf %64, %62 : vector<32x1xf32>
      %66 = arith.subf %60, %65 : vector<32x1xf32>
      %cst_29 = arith.constant 5.110000e+02 : f32
      %67 = vector.broadcast %cst_29 : f32 to vector<32x1xf32>
      %68 = arith.divf %66, %67 : vector<32x1xf32>
      %cst_30 = arith.constant 0.000000e+00 : f32
      %69 = vector.broadcast %cst_30 : f32 to vector<32x1xf32>
      %70 = arith.maximumf %68, %69 : vector<32x1xf32>
      %71 = arith.index_cast %arg8 : i32 to index
      %c0_31 = arith.constant 0 : index
      %c0_32 = arith.constant 0 : index
      %72 = vector.load %arg4[%71, %c0_31, %c0_32] : memref<3x32x1xf32, #tpu.memory_space<vmem>>, vector<1x32x1xf32>
      %73 = vector.shape_cast %72 : vector<1x32x1xf32> to vector<32x1xf32>
      %74 = math.sqrt %70 : vector<32x1xf32>
      %cst_33 = arith.constant 9.99999974E-6 : f32
      %75 = vector.broadcast %cst_33 : f32 to vector<32x1xf32>
      %76 = arith.addf %74, %75 : vector<32x1xf32>
      %77 = arith.divf %73, %76 : vector<32x1xf32>
      %78 = vector.broadcast %77 : vector<32x1xf32> to vector<32x768xf32>
      %79 = arith.mulf %53, %78 : vector<32x768xf32>
      %cst_34 = arith.constant 0.000000e+00 : f32
      %80 = vector.broadcast %cst_34 : f32 to vector<32x768xf32>
      %81 = arith.maximumf %79, %80 : vector<32x768xf32>
      %82 = vector.broadcast %0 : vector<1x768xf32> to vector<32x768xf32>
      %83 = arith.mulf %81, %82 : vector<32x768xf32>
      %c0_35 = arith.constant 0 : index
      %c128_36 = arith.constant 128 : index
      %84 = vector.load %arg7[%c0_35, %c128_36] : memref<32x1024xf32, #tpu.memory_space<vmem>>, vector<32x768xf32>
      tpu.vector_store %arg7[%c0_35, %c128_36], %83 {strides = array<i32>} : memref<32x1024xf32, #tpu.memory_space<vmem>>, vector<32x768xf32>,
    }
    %c3_i32_10 = arith.constant 3 : i32
    %c0_11 = arith.constant 0 : index
    %c0_12 = arith.constant 0 : index
    %22 = vector.load %arg7[%c0_11, %c0_12] : memref<32x1024xf32, #tpu.memory_space<vmem>>, vector<32x1024xf32>
    %23 = vector.extract_strided_slice %22 {offsets = [0, 109], sizes = [32, 768], strides = [1, 1]} : vector<32x1024xf32> to vector<32x768xf32>
    %24 = vector.extract_strided_slice %22 {offsets = [0, 110], sizes = [32, 768], strides = [1, 1]} : vector<32x1024xf32> to vector<32x768xf32>
    %25 = vector.extract_strided_slice %22 {offsets = [0, 111], sizes = [32, 768], strides = [1, 1]} : vector<32x1024xf32> to vector<32x768xf32>
    %26 = vector.extract_strided_slice %22 {offsets = [0, 127], sizes = [32, 768], strides = [1, 1]} : vector<32x1024xf32> to vector<32x768xf32>
    %27 = vector.extract_strided_slice %22 {offsets = [0, 128], sizes = [32, 768], strides = [1, 1]} : vector<32x1024xf32> to vector<32x768xf32>
    %28 = vector.extract_strided_slice %22 {offsets = [0, 129], sizes = [32, 768], strides = [1, 1]} : vector<32x1024xf32> to vector<32x768xf32>
    %29 = vector.extract_strided_slice %22 {offsets = [0, 145], sizes = [32, 768], strides = [1, 1]} : vector<32x1024xf32> to vector<32x768xf32>
    %30 = vector.extract_strided_slice %22 {offsets = [0, 146], sizes = [32, 768], strides = [1, 1]} : vector<32x1024xf32> to vector<32x768xf32>
    %31 = vector.extract_strided_slice %22 {offsets = [0, 147], sizes = [32, 768], strides = [1, 1]} : vector<32x1024xf32> to vector<32x768xf32>
    %32 = tpu.concatenate %23, %24, %25, %26, %27, %28, %29, %30, %31 in 0 : vector<32x768xf32>, vector<32x768xf32>, vector<32x768xf32>, vector<32x768xf32>, vector<32x768xf32>, vector<32x768xf32>, vector<32x768xf32>, vector<32x768xf32>, vector<32x768xf32> -> vector<288x768xf32>
    %c0_13 = arith.constant 0 : index
    %c0_14 = arith.constant 0 : index
    %33 = vector.load %arg5[%c0_13, %c0_14] : memref<1x288xf32, #tpu.memory_space<vmem>>, vector<1x288xf32>
    %cst_15 = arith.constant dense<0.000000e+00> : vector<1x768xf32>
    %34 = tpu.matmul %33, %32, %cst_15 {dimension_numbers = #tpu.dot_dimension_numbers<[1], [0], [0], [1], [0, 0, 1, 1], [], []>} : vector<1x288xf32>, vector<288x768xf32>, vector<1x768xf32> -> vector<1x768xf32>
    %c0_16 = arith.constant 0 : index
    %c128_17 = arith.constant 128 : index
    %35 = vector.load %arg1[%c0_16, %c128_17] : memref<8x1024xf32, #tpu.memory_space<vmem>>, vector<1x768xf32>
    %36 = arith.subf %35, %34 : vector<1x768xf32>
    %37 = arith.mulf %36, %0 : vector<1x768xf32>
    %c0_18 = arith.constant 0 : index
    %c0_19 = arith.constant 0 : index
    %38 = vector.load %arg6[%c0_18, %c0_19] : memref<1x768xf32, #tpu.memory_space<vmem>>, vector<1x768xf32>
    tpu.vector_store %arg6[%c0_18, %c0_19], %37 {strides = array<i32>} : memref<1x768xf32, #tpu.memory_space<vmem>>, vector<1x768xf32>,
    return
  }
}

</mosaic_0001>

<llo_original>
// kernel: tpu_custom_call.1
$region0: #{tpu_custom_call.1}
  #allocation0 [shape = 'u32[]', space=smem, size = 0x4, offset = 0x4, fixed_abs, tag = 'smem constant byte address 0x4 - core index']
  #allocation1 [shape = 'u32[72,128]{1,0:T(1,128)}', space=vmem, size = 0x9000, scoped, tag = 'internal scratch']
  #allocation2 [shape = 'f32[32,1024]{1,0:T(8,128)}', space=vmem, size = 0x20000, scoped, tag = 'scratch operand']
  %s0 = inlined_call_operand.hbm [shape: f32[1,768], index: 0, kind: input, shape index: {}]
  %s1 = inlined_call_operand.vmem [shape: f32[8,1024], index: 1, kind: input, shape index: {}]
  %s2 = inlined_call_operand.vmem [shape: f32[32,72], index: 2, kind: input, shape index: {}]
  %s3 = inlined_call_operand.hbm [shape: f32[3,32,288], index: 3, kind: input, shape index: {}]
  %s4 = inlined_call_operand.vmem [shape: f32[3,32,1], index: 4, kind: input, shape index: {}]
  %s5 = inlined_call_operand.vmem [shape: f32[1,288], index: 5, kind: input, shape index: {}]
  %s6 = inlined_call_operand.hbm [shape: f32[1,768], index: 6, kind: output, shape index: {}]
  %s7 = sld [smem:[#allocation0]]
  $region49: #{tpu_custom_call.1} parent=0
    _
  %s9 = ssub.s32 1, %s7
  %s10 = scalar_select 0, %s9, %s7
  $region1: #{tpu_custom_call.1} parent=0
    #allocation3 [shape = 'u8[3072]{0}', space=vmem, size = 0xc00, scoped, tag = 'input window, operand 0, single buffered']
    #allocation4 [shape = 's32[1]{0}', space=sflag, size = 0x4, scoped, tag = 'scoped memory for tpu_custom_call.1']
    #allocation5 [shape = 's32[1]{0}', space=sflag, size = 0x4, scoped, tag = 'scoped memory for tpu_custom_call.1']
    #allocation6 [shape = 'u8[147456]{0}', space=vmem, size = 0x24000, scoped, tag = 'input window, operand 3, single buffered']
    #allocation7 [shape = 's32[1]{0}', space=sflag, size = 0x4, scoped, tag = 'scoped memory for tpu_custom_call.1']
    #allocation8 [shape = 'u8[3072]{0}', space=vmem, size = 0xc00, scoped, tag = 'output window, operand 0, single buffered']
    %11 = vsyncpa [#allocation4], 0
    %12 = vsyncpa [#allocation7], 0
    %13 = vsyncpa [#allocation5], 0
    // Predicated region
    $region2: #{tpu_custom_call.1} parent=1 // pred_check
      _
    $region3: #{tpu_custom_call.1} parent=1 // pred_check_branch
      %15 = sbr.rel (0) target = $region5
    $region4: #{tpu_custom_call.1} parent=1 // pred_region
      %17 = vsyncadd [#allocation4], 0
      %s19 = sshll.u32 %s0, 4
      %s20 = int_to_ptr.hbm [resolvable:$true] %s19
      %s21 = sshll.u32 [#allocation3], 4
      %s22 = int_to_ptr.vmem [resolvable:$true] %s21
      %24 = dma.hbm_to_vmem [thread:$0]  %s20, 96, %s22, [#allocation4]
    $region5: #{tpu_custom_call.1} parent=1 // pred_fallthru
      _
    // Predicated region
    $region6: #{tpu_custom_call.1} parent=1 // pred_check
      _
    $region7: #{tpu_custom_call.1} parent=1 // pred_check_branch
      %26 = sbr.rel (0) target = $region9
    $region8: #{tpu_custom_call.1} parent=1 // pred_region
      _
    $region9: #{tpu_custom_call.1} parent=1 // pred_fallthru
      _
    // Predicated region
    $region10: #{tpu_custom_call.1} parent=1 // pred_check
      _
    $region11: #{tpu_custom_call.1} parent=1 // pred_check_branch
      %28 = sbr.rel (0) target = $region13
    $region12: #{tpu_custom_call.1} parent=1 // pred_region
      _
    $region13: #{tpu_custom_call.1} parent=1 // pred_fallthru
      _
    // Predicated region
    $region14: #{tpu_custom_call.1} parent=1 // pred_check
      _
    $region15: #{tpu_custom_call.1} parent=1 // pred_check_branch
      %30 = sbr.rel (0) target = $region17
    $region16: #{tpu_custom_call.1} parent=1 // pred_region
      %32 = vsyncadd [#allocation7], 0
      %s33 = sshll.u32 %s3, 4
      %s34 = int_to_ptr.hbm [resolvable:$true] %s33
      %s35 = sshll.u32 [#allocation6], 4
      %s36 = int_to_ptr.vmem [resolvable:$true] %s35
      %41 = dma.hbm_to_vmem [thread:$0]  %s34, 4608, %s36, [#allocation7], 384, 384, 24
    $region17: #{tpu_custom_call.1} parent=1 // pred_fallthru
      _
    // Predicated region
    $region18: #{tpu_custom_call.1} parent=1 // pred_check
      _
    $region19: #{tpu_custom_call.1} parent=1 // pred_check_branch
      %43 = sbr.rel (0) target = $region21
    $region20: #{tpu_custom_call.1} parent=1 // pred_region
      _
    $region21: #{tpu_custom_call.1} parent=1 // pred_fallthru
      _
    // Predicated region
    $region22: #{tpu_custom_call.1} parent=1 // pred_check
      _
    $region23: #{tpu_custom_call.1} parent=1 // pred_check_branch
      %45 = sbr.rel (0) target = $region25
    $region24: #{tpu_custom_call.1} parent=1 // pred_region
      _
    $region25: #{tpu_custom_call.1} parent=1 // pred_fallthru
      _
    // Predicated region
    $region26: #{tpu_custom_call.1} parent=1 // pred_check
      _
    $region27: #{tpu_custom_call.1} parent=1 // pred_check_branch
      %47 = sbr.rel (0) target = $region29
    $region28: #{tpu_custom_call.1} parent=1 // pred_region
      %49 = dma.done [#allocation4], 96
    $region29: #{tpu_custom_call.1} parent=1 // pred_fallthru
      _
    // Predicated region
    $region30: #{tpu_custom_call.1} parent=1 // pred_check
      _
    $region31: #{tpu_custom_call.1} parent=1 // pred_check_branch
      %51 = sbr.rel (0) target = $region33
    $region32: #{tpu_custom_call.1} parent=1 // pred_region
      %53 = dma.done [#allocation7], 4608
    $region33: #{tpu_custom_call.1} parent=1 // pred_fallthru
      _
    %v54 = vld [vmem:[#allocation3] sm:$0x3f]
    %55 = vst [vmem:[#allocation2] sm:$0xff] 0.0
    %56 = vst [vmem:[#allocation2 + $0x8] sm:$0xff] 0.0
    %57 = vst [vmem:[#allocation2 + $0x10] sm:$0xff] 0.0
    %58 = vst [vmem:[#allocation2 + $0x18] sm:$0xff] 0.0
    %59 = vst [vmem:[#allocation2 + $0x20] sm:$0xff] 0.0
    %60 = vst [vmem:[#allocation2 + $0x28] sm:$0xff] 0.0
    %61 = vst [vmem:[#allocation2 + $0x30] sm:$0xff] 0.0
    %62 = vst [vmem:[#allocation2 + $0x38] sm:$0xff] 0.0
    %63 = vst [vmem:[#allocation2 + $0x40] sm:$0xff] 0.0
    %64 = vst [vmem:[#allocation2 + $0x48] sm:$0xff] 0.0
    %65 = vst [vmem:[#allocation2 + $0x50] sm:$0xff] 0.0
    %66 = vst [vmem:[#allocation2 + $0x58] sm:$0xff] 0.0
    %67 = vst [vmem:[#allocation2 + $0x60] sm:$0xff] 0.0
    %68 = vst [vmem:[#allocation2 + $0x68] sm:$0xff] 0.0
    %69 = vst [vmem:[#allocation2 + $0x70] sm:$0xff] 0.0
    %70 = vst [vmem:[#allocation2 + $0x78] sm:$0xff] 0.0
    %71 = vst [vmem:[#allocation2 + $0x80] sm:$0xff] 0.0
    %72 = vst [vmem:[#allocation2 + $0x88] sm:$0xff] 0.0
    %73 = vst [vmem:[#allocation2 + $0x90] sm:$0xff] 0.0
    %74 = vst [vmem:[#allocation2 + $0x98] sm:$0xff] 0.0
    %75 = vst [vmem:[#allocation2 + $0xa0] sm:$0xff] 0.0
    %76 = vst [vmem:[#allocation2 + $0xa8] sm:$0xff] 0.0
    %77 = vst [vmem:[#allocation2 + $0xb0] sm:$0xff] 0.0
    %78 = vst [vmem:[#allocation2 + $0xb8] sm:$0xff] 0.0
    %79 = vst [vmem:[#allocation2 + $0xc0] sm:$0xff] 0.0
    %80 = vst [vmem:[#allocation2 + $0xc8] sm:$0xff] 0.0
    %81 = vst [vmem:[#allocation2 + $0xd0] sm:$0xff] 0.0
    %82 = vst [vmem:[#allocation2 + $0xd8] sm:$0xff] 0.0
    %83 = vst [vmem:[#allocation2 + $0xe0] sm:$0xff] 0.0
    %84 = vst [vmem:[#allocation2 + $0xe8] sm:$0xff] 0.0
    %85 = vst [vmem:[#allocation2 + $0xf0] sm:$0xff] 0.0
    %86 = vst [vmem:[#allocation2 + $0xf8] sm:$0xff] 0.0
    %v87 = vld [vmem:[%s1] sm:$0xff]
    %v88 = vld [vmem:[%s1 + $0x8] sm:$0xff]
    %v89 = vld [vmem:[%s1 + $0x10] sm:$0xff]
    %v90 = vld [vmem:[%s1 + $0x18] sm:$0xff]
    %v91 = vld [vmem:[%s1 + $0x20] sm:$0xff]
    %v92 = vld [vmem:[%s1 + $0x28] sm:$0xff]
    %v93 = vld [vmem:[%s1 + $0x30] sm:$0xff]
    %v94 = vld [vmem:[%s1 + $0x38] sm:$0xff]
    %102 = vrot.lane.b32.xlu0 %v87, 127
    %v103 = vpop.permute.xlu0 %102
    %104 = vrot.lane.b32.xlu0 %v88, 127
    %v105 = vpop.permute.xlu0 %104
    %106 = vrot.lane.b32.xlu0 %v89, 127
    %v107 = vpop.permute.xlu0 %106
    %108 = vrot.lane.b32.xlu0 %v90, 127
    %v109 = vpop.permute.xlu0 %108
    %110 = vrot.lane.b32.xlu0 %v91, 127
    %v111 = vpop.permute.xlu0 %110
    %112 = vrot.lane.b32.xlu0 %v92, 127
    %v113 = vpop.permute.xlu0 %112
    %114 = vrot.lane.b32.xlu0 %v93, 127
    %v115 = vpop.permute.xlu0 %114
    %vm116 = vcmask 1039360
    %v117 = vsel %vm116, %v103, %v105
    %v118 = vsel %vm116, %v105, %v107
    %v119 = vsel %vm116, %v107, %v109
    %v120 = vsel %vm116, %v109, %v111
    %v121 = vsel %vm116, %v111, %v113
    %v122 = vsel %vm116, %v113, %v115
    %123 = vrot.lane.b32.xlu0 %v87, 126
    %v124 = vpop.permute.xlu0 %123
    %125 = vrot.lane.b32.xlu0 %v88, 126
    %v126 = vpop.permute.xlu0 %125
    %127 = vrot.lane.b32.xlu0 %v89, 126
    %v128 = vpop.permute.xlu0 %127
    %129 = vrot.lane.b32.xlu0 %v90, 126
    %v130 = vpop.permute.xlu0 %129
    %131 = vrot.lane.b32.xlu0 %v91, 126
    %v132 = vpop.permute.xlu0 %131
    %133 = vrot.lane.b32.xlu0 %v92, 126
    %v134 = vpop.permute.xlu0 %133
    %135 = vrot.lane.b32.xlu0 %v93, 126
    %v136 = vpop.permute.xlu0 %135
    %vm137 = vcmask 1031168
    %v138 = vsel %vm137, %v124, %v126
    %v139 = vsel %vm137, %v126, %v128
    %v140 = vsel %vm137, %v128, %v130
    %v141 = vsel %vm137, %v130, %v132
    %v142 = vsel %vm137, %v132, %v134
    %v143 = vsel %vm137, %v134, %v136
    %144 = vrot.lane.b32.xlu0 %v87, 110
    %v145 = vpop.permute.xlu0 %144
    %146 = vrot.lane.b32.xlu0 %v88, 110
    %v147 = vpop.permute.xlu0 %146
    %148 = vrot.lane.b32.xlu0 %v89, 110
    %v149 = vpop.permute.xlu0 %148
    %150 = vrot.lane.b32.xlu0 %v90, 110
    %v151 = vpop.permute.xlu0 %150
    %152 = vrot.lane.b32.xlu0 %v91, 110
    %v153 = vpop.permute.xlu0 %152
    %154 = vrot.lane.b32.xlu0 %v92, 110
    %v155 = vpop.permute.xlu0 %154
    %156 = vrot.lane.b32.xlu0 %v93, 110
    %v157 = vpop.permute.xlu0 %156
    %vm158 = vcmask 900096
    %v159 = vsel %vm158, %v145, %v147
    %v160 = vsel %vm158, %v147, %v149
    %v161 = vsel %vm158, %v149, %v151
    %v162 = vsel %vm158, %v151, %v153
    %v163 = vsel %vm158, %v153, %v155
    %v164 = vsel %vm158, %v155, %v157
    %165 = vrot.lane.b32.xlu0 %v88, 109
    %v166 = vpop.permute.xlu0 %165
    %167 = vrot.lane.b32.xlu0 %v89, 109
    %v168 = vpop.permute.xlu0 %167
    %169 = vrot.lane.b32.xlu0 %v90, 109
    %v170 = vpop.permute.xlu0 %169
    %171 = vrot.lane.b32.xlu0 %v91, 109
    %v172 = vpop.permute.xlu0 %171
    %173 = vrot.lane.b32.xlu0 %v92, 109
    %v174 = vpop.permute.xlu0 %173
    %175 = vrot.lane.b32.xlu0 %v93, 109
    %v176 = vpop.permute.xlu0 %175
    %vm177 = vcmask 891904
    %v178 = vsel %vm177, %v166, %v168
    %v179 = vsel %vm177, %v168, %v170
    %v180 = vsel %vm177, %v170, %v172
    %v181 = vsel %vm177, %v172, %v174
    %v182 = vsel %vm177, %v174, %v176
    %184 = vrot.lane.b32.xlu0 %v88, 108
    %v185 = vpop.permute.xlu0 %184
    %186 = vrot.lane.b32.xlu0 %v89, 108
    %v187 = vpop.permute.xlu0 %186
    %188 = vrot.lane.b32.xlu0 %v90, 108
    %v189 = vpop.permute.xlu0 %188
    %190 = vrot.lane.b32.xlu0 %v91, 108
    %v191 = vpop.permute.xlu0 %190
    %192 = vrot.lane.b32.xlu0 %v92, 108
    %v193 = vpop.permute.xlu0 %192
    %194 = vrot.lane.b32.xlu0 %v93, 108
    %v195 = vpop.permute.xlu0 %194
    %196 = vrot.lane.b32.xlu0 %v94, 108
    %v197 = vpop.permute.xlu0 %196
    %vm198 = vcmask 883712
    %v199 = vsel %vm198, %v185, %v187
    %v200 = vsel %vm198, %v187, %v189
    %v201 = vsel %vm198, %v189, %v191
    %v202 = vsel %vm198, %v191, %v193
    %v203 = vsel %vm198, %v193, %v195
    %v204 = vsel %vm198, %v195, %v197
    %205 = vrot.lane.b32.xlu0 %v88, 92
    %v206 = vpop.permute.xlu0 %205
    %207 = vrot.lane.b32.xlu0 %v89, 92
    %v208 = vpop.permute.xlu0 %207
    %209 = vrot.lane.b32.xlu0 %v90, 92
    %v210 = vpop.permute.xlu0 %209
    %211 = vrot.lane.b32.xlu0 %v91, 92
    %v212 = vpop.permute.xlu0 %211
    %213 = vrot.lane.b32.xlu0 %v92, 92
    %v214 = vpop.permute.xlu0 %213
    %215 = vrot.lane.b32.xlu0 %v93, 92
    %v216 = vpop.permute.xlu0 %215
    %217 = vrot.lane.b32.xlu0 %v94, 92
    %v218 = vpop.permute.xlu0 %217
    %vm219 = vcmask 752640
    %v220 = vsel %vm219, %v206, %v208
    %v221 = vsel %vm219, %v208, %v210
    %v222 = vsel %vm219, %v210, %v212
    %v223 = vsel %vm219, %v212, %v214
    %v224 = vsel %vm219, %v214, %v216
    %v225 = vsel %vm219, %v216, %v218
    %226 = vrot.lane.b32.xlu0 %v88, 91
    %v227 = vpop.permute.xlu0 %226
    %228 = vrot.lane.b32.xlu0 %v89, 91
    %v229 = vpop.permute.xlu0 %228
    %230 = vrot.lane.b32.xlu0 %v90, 91
    %v231 = vpop.permute.xlu0 %230
    %232 = vrot.lane.b32.xlu0 %v91, 91
    %v233 = vpop.permute.xlu0 %232
    %234 = vrot.lane.b32.xlu0 %v92, 91
    %v235 = vpop.permute.xlu0 %234
    %236 = vrot.lane.b32.xlu0 %v93, 91
    %v237 = vpop.permute.xlu0 %236
    %238 = vrot.lane.b32.xlu0 %v94, 91
    %v239 = vpop.permute.xlu0 %238
    %vm240 = vcmask 744448
    %v241 = vsel %vm240, %v227, %v229
    %v242 = vsel %vm240, %v229, %v231
    %v243 = vsel %vm240, %v231, %v233
    %v244 = vsel %vm240, %v233, %v235
    %v245 = vsel %vm240, %v235, %v237
    %v246 = vsel %vm240, %v237, %v239
    %247 = vrot.lane.b32.xlu0 %v88, 90
    %v248 = vpop.permute.xlu0 %247
    %249 = vrot.lane.b32.xlu0 %v89, 90
    %v250 = vpop.permute.xlu0 %249
    %251 = vrot.lane.b32.xlu0 %v90, 90
    %v252 = vpop.permute.xlu0 %251
    %253 = vrot.lane.b32.xlu0 %v91, 90
    %v254 = vpop.permute.xlu0 %253
    %255 = vrot.lane.b32.xlu0 %v92, 90
    %v256 = vpop.permute.xlu0 %255
    %257 = vrot.lane.b32.xlu0 %v93, 90
    %v258 = vpop.permute.xlu0 %257
    %259 = vrot.lane.b32.xlu0 %v94, 90
    %v260 = vpop.permute.xlu0 %259
    %vm261 = vcmask 736256
    %v262 = vsel %vm261, %v248, %v250
    %v263 = vsel %vm261, %v250, %v252
    %v264 = vsel %vm261, %v252, %v254
    %v265 = vsel %vm261, %v254, %v256
    %v266 = vsel %vm261, %v256, %v258
    %v267 = vsel %vm261, %v258, %v260
    %v268 = vld [vmem:[%s2] sm:$0xff]
    %v269 = vld [vmem:[%s2 + $0x8] sm:$0xff]
    %v270 = vld [vmem:[%s2 + $0x10] sm:$0xff]
    %v271 = vld [vmem:[%s2 + $0x18] sm:$0xff]
    %272 = vrot.lane.b32.xlu0 %v87, 19
    %v273 = vpop.permute.xlu0 %272
    %274 = vrot.lane.b32.xlu0 %v88, 19
    %v275 = vpop.permute.xlu0 %274
    %276 = vrot.lane.b32.xlu0 %v89, 19
    %v277 = vpop.permute.xlu0 %276
    %278 = vrot.lane.b32.xlu0 %v90, 19
    %v279 = vpop.permute.xlu0 %278
    %280 = vrot.lane.b32.xlu0 %v91, 19
    %v281 = vpop.permute.xlu0 %280
    %282 = vrot.lane.b32.xlu0 %v92, 19
    %v283 = vpop.permute.xlu0 %282
    %284 = vrot.lane.b32.xlu0 %v93, 19
    %v285 = vpop.permute.xlu0 %284
    %286 = vrot.lane.b32.xlu0 %v117, 19
    %v287 = vpop.permute.xlu0 %286
    %288 = vrot.lane.b32.xlu0 %v118, 19
    %v289 = vpop.permute.xlu0 %288
    %290 = vrot.lane.b32.xlu0 %v119, 19
    %v291 = vpop.permute.xlu0 %290
    %292 = vrot.lane.b32.xlu0 %v120, 19
    %v293 = vpop.permute.xlu0 %292
    %294 = vrot.lane.b32.xlu0 %v121, 19
    %v295 = vpop.permute.xlu0 %294
    %296 = vrot.lane.b32.xlu0 %v122, 19
    %v297 = vpop.permute.xlu0 %296
    %298 = vrot.lane.b32.xlu0 %v115, 19
    %v299 = vpop.permute.xlu0 %298
    %300 = vrot.lane.b32.xlu0 %v138, 19
    %v301 = vpop.permute.xlu0 %300
    %302 = vrot.lane.b32.xlu0 %v139, 19
    %v303 = vpop.permute.xlu0 %302
    %304 = vrot.lane.b32.xlu0 %v140, 19
    %v305 = vpop.permute.xlu0 %304
    %306 = vrot.lane.b32.xlu0 %v141, 19
    %v307 = vpop.permute.xlu0 %306
    %308 = vrot.lane.b32.xlu0 %v142, 19
    %v309 = vpop.permute.xlu0 %308
    %310 = vrot.lane.b32.xlu0 %v143, 19
    %v311 = vpop.permute.xlu0 %310
    %312 = vrot.lane.b32.xlu0 %v136, 19
    %v313 = vpop.permute.xlu0 %312
    %314 = vrot.lane.b32.xlu0 %v159, 19
    %v315 = vpop.permute.xlu0 %314
    %316 = vrot.lane.b32.xlu0 %v160, 19
    %v317 = vpop.permute.xlu0 %316
    %318 = vrot.lane.b32.xlu0 %v161, 19
    %v319 = vpop.permute.xlu0 %318
    %320 = vrot.lane.b32.xlu0 %v162, 19
    %v321 = vpop.permute.xlu0 %320
    %322 = vrot.lane.b32.xlu0 %v163, 19
    %v323 = vpop.permute.xlu0 %322
    %324 = vrot.lane.b32.xlu0 %v164, 19
    %v325 = vpop.permute.xlu0 %324
    %326 = vrot.lane.b32.xlu0 %v157, 19
    %v327 = vpop.permute.xlu0 %326
    %328 = vrot.lane.b32.xlu0 %v166, 19
    %v329 = vpop.permute.xlu0 %328
    %330 = vrot.lane.b32.xlu0 %v178, 19
    %v331 = vpop.permute.xlu0 %330
    %332 = vrot.lane.b32.xlu0 %v179, 19
    %v333 = vpop.permute.xlu0 %332
    %334 = vrot.lane.b32.xlu0 %v180, 19
    %v335 = vpop.permute.xlu0 %334
    %336 = vrot.lane.b32.xlu0 %v181, 19
    %v337 = vpop.permute.xlu0 %336
    %338 = vrot.lane.b32.xlu0 %v182, 19
    %v339 = vpop.permute.xlu0 %338
    %340 = vrot.lane.b32.xlu0 %v176, 19
    %v341 = vpop.permute.xlu0 %340
    %342 = vrot.lane.b32.xlu0 %v185, 19
    %v343 = vpop.permute.xlu0 %342
    %344 = vrot.lane.b32.xlu0 %v199, 19
    %v345 = vpop.permute.xlu0 %344
    %346 = vrot.lane.b32.xlu0 %v200, 19
    %v347 = vpop.permute.xlu0 %346
    %348 = vrot.lane.b32.xlu0 %v201, 19
    %v349 = vpop.permute.xlu0 %348
    %350 = vrot.lane.b32.xlu0 %v202, 19
    %v351 = vpop.permute.xlu0 %350
    %352 = vrot.lane.b32.xlu0 %v203, 19
    %v353 = vpop.permute.xlu0 %352
    %354 = vrot.lane.b32.xlu0 %v204, 19
    %v355 = vpop.permute.xlu0 %354
    %356 = vrot.lane.b32.xlu0 %v206, 19
    %v357 = vpop.permute.xlu0 %356
    %358 = vrot.lane.b32.xlu0 %v220, 19
    %v359 = vpop.permute.xlu0 %358
    %360 = vrot.lane.b32.xlu0 %v221, 19
    %v361 = vpop.permute.xlu0 %360
    %362 = vrot.lane.b32.xlu0 %v222, 19
    %v363 = vpop.permute.xlu0 %362
    %364 = vrot.lane.b32.xlu0 %v223, 19
    %v365 = vpop.permute.xlu0 %364
    %366 = vrot.lane.b32.xlu0 %v224, 19
    %v367 = vpop.permute.xlu0 %366
    %368 = vrot.lane.b32.xlu0 %v225, 19
    %v369 = vpop.permute.xlu0 %368
    %370 = vrot.lane.b32.xlu0 %v227, 19
    %v371 = vpop.permute.xlu0 %370
    %372 = vrot.lane.b32.xlu0 %v241, 19
    %v373 = vpop.permute.xlu0 %372
    %374 = vrot.lane.b32.xlu0 %v242, 19
    %v375 = vpop.permute.xlu0 %374
    %376 = vrot.lane.b32.xlu0 %v243, 19
    %v377 = vpop.permute.xlu0 %376
    %378 = vrot.lane.b32.xlu0 %v244, 19
    %v379 = vpop.permute.xlu0 %378
    %380 = vrot.lane.b32.xlu0 %v245, 19
    %v381 = vpop.permute.xlu0 %380
    %382 = vrot.lane.b32.xlu0 %v246, 19
    %v383 = vpop.permute.xlu0 %382
    %384 = vrot.lane.b32.xlu0 %v248, 19
    %v385 = vpop.permute.xlu0 %384
    %386 = vrot.lane.b32.xlu0 %v262, 19
    %v387 = vpop.permute.xlu0 %386
    %388 = vrot.lane.b32.xlu0 %v263, 19
    %v389 = vpop.permute.xlu0 %388
    %390 = vrot.lane.b32.xlu0 %v264, 19
    %v391 = vpop.permute.xlu0 %390
    %392 = vrot.lane.b32.xlu0 %v265, 19
    %v393 = vpop.permute.xlu0 %392
    %394 = vrot.lane.b32.xlu0 %v266, 19
    %v395 = vpop.permute.xlu0 %394
    %396 = vrot.lane.b32.xlu0 %v267, 19
    %v397 = vpop.permute.xlu0 %396
    %vm398 = vcmask 154624
    %v399 = vsel %vm398, %v273, %v275
    %v400 = vsel %vm398, %v275, %v277
    %v401 = vsel %vm398, %v277, %v279
    %v402 = vsel %vm398, %v279, %v281
    %v403 = vsel %vm398, %v281, %v283
    %v404 = vsel %vm398, %v283, %v285
    %v405 = vsel %vm398, %v287, %v289
    %v406 = vsel %vm398, %v289, %v291
    %v407 = vsel %vm398, %v291, %v293
    %v408 = vsel %vm398, %v293, %v295
    %v409 = vsel %vm398, %v295, %v297
    %v410 = vsel %vm398, %v297, %v299
    %v411 = vsel %vm398, %v301, %v303
    %v412 = vsel %vm398, %v303, %v305
    %v413 = vsel %vm398, %v305, %v307
    %v414 = vsel %vm398, %v307, %v309
    %v415 = vsel %vm398, %v309, %v311
    %v416 = vsel %vm398, %v311, %v313
    %v417 = vsel %vm398, %v315, %v317
    %v418 = vsel %vm398, %v317, %v319
    %v419 = vsel %vm398, %v319, %v321
    %v420 = vsel %vm398, %v321, %v323
    %v421 = vsel %vm398, %v323, %v325
    %v422 = vsel %vm398, %v325, %v327
    %v423 = vsel %vm398, %v329, %v331
    %v424 = vsel %vm398, %v331, %v333
    %v425 = vsel %vm398, %v333, %v335
    %v426 = vsel %vm398, %v335, %v337
    %v427 = vsel %vm398, %v337, %v339
    %v428 = vsel %vm398, %v339, %v341
    %v429 = vsel %vm398, %v343, %v345
    %v430 = vsel %vm398, %v345, %v347
    %v431 = vsel %vm398, %v347, %v349
    %v432 = vsel %vm398, %v349, %v351
    %v433 = vsel %vm398, %v351, %v353
    %v434 = vsel %vm398, %v353, %v355
    %v435 = vsel %vm398, %v357, %v359
    %v436 = vsel %vm398, %v359, %v361
    %v437 = vsel %vm398, %v361, %v363
    %v438 = vsel %vm398, %v363, %v365
    %v439 = vsel %vm398, %v365, %v367
    %v440 = vsel %vm398, %v367, %v369
    %v441 = vsel %vm398, %v371, %v373
    %v442 = vsel %vm398, %v373, %v375
    %v443 = vsel %vm398, %v375, %v377
    %v444 = vsel %vm398, %v377, %v379
    %v445 = vsel %vm398, %v379, %v381
    %v446 = vsel %vm398, %v381, %v383
    %v447 = vsel %vm398, %v385, %v387
    %v448 = vsel %vm398, %v387, %v389
    %v449 = vsel %vm398, %v389, %v391
    %v450 = vsel %vm398, %v391, %v393
    %v451 = vsel %vm398, %v393, %v395
    %v452 = vsel %vm398, %v395, %v397
    %vm507 = vcmask 588800
    %v509 = vsel %vm507, %v268, 0
    %v512 = vsel %vm507, %v269, 0
    %v515 = vsel %vm507, %v270, 0
    %v518 = vsel %vm507, %v271, 0
    %520 = vmatpush.msra.mxu0 0.0
    %521 = vmatpush.msra.mxu0 0.0
    %522 = vmatpush.msra.mxu0 0.0
    %523 = vmatpush.msra.mxu0 0.0
    %524 = vmatpush.msra.mxu0 0.0
    %525 = vmatpush.msra.mxu0 0.0
    %526 = vmatpush.msra.mxu0 0.0
    %527 = vmatpush.msra.mxu0 %v447
    %528 = vmatpush.msra.mxu0 %v441
    %529 = vmatpush.msra.mxu0 %v435
    %530 = vmatpush.msra.mxu0 %v429
    %531 = vmatpush.msra.mxu0 %v423
    %532 = vmatpush.msra.mxu0 %v417
    %533 = vmatpush.msra.mxu0 %v411
    %534 = vmatpush.msra.mxu0 %v405
    %535 = vmatpush.msra.mxu0 %v399
    %536 = vmatmul.f32.gmra.mxu0 %v509
    %v537 = vpop.f32.mrf.mxu0
    %v538 = vadd.f32 0.0, %v537
    %539 = vmatmul.f32.gmra.mxu0 %v512
    %v540 = vpop.f32.mrf.mxu0
    %v541 = vadd.f32 0.0, %v540
    %542 = vmatmul.f32.gmra.mxu0 %v515
    %v543 = vpop.f32.mrf.mxu0
    %v544 = vadd.f32 0.0, %v543
    %545 = vmatmul.f32.gmra.mxu0 %v518
    %v546 = vpop.f32.mrf.mxu0
    %v547 = vadd.f32 0.0, %v546
    %548 = vdwg.mxu0
    %549 = vmatpush.msra.mxu0 0.0
    %550 = vmatpush.msra.mxu0 0.0
    %551 = vmatpush.msra.mxu0 0.0
    %552 = vmatpush.msra.mxu0 0.0
    %553 = vmatpush.msra.mxu0 0.0
    %554 = vmatpush.msra.mxu0 0.0
    %555 = vmatpush.msra.mxu0 0.0
    %556 = vmatpush.msra.mxu0 %v448
    %557 = vmatpush.msra.mxu0 %v442
    %558 = vmatpush.msra.mxu0 %v436
    %559 = vmatpush.msra.mxu0 %v430
    %560 = vmatpush.msra.mxu0 %v424
    %561 = vmatpush.msra.mxu0 %v418
    %562 = vmatpush.msra.mxu0 %v412
    %563 = vmatpush.msra.mxu0 %v406
    %564 = vmatpush.msra.mxu0 %v400
    %565 = vmatmul.f32.gmra.mxu0 %v509
    %v566 = vpop.f32.mrf.mxu0
    %v567 = vadd.f32 0.0, %v566
    %568 = vmatmul.f32.gmra.mxu0 %v512
    %v569 = vpop.f32.mrf.mxu0
    %v570 = vadd.f32 0.0, %v569
    %571 = vmatmul.f32.gmra.mxu0 %v515
    %v572 = vpop.f32.mrf.mxu0
    %v573 = vadd.f32 0.0, %v572
    %574 = vmatmul.f32.gmra.mxu0 %v518
    %v575 = vpop.f32.mrf.mxu0
    %v576 = vadd.f32 0.0, %v575
    %577 = vdwg.mxu0
    %578 = vmatpush.msra.mxu0 0.0
    %579 = vmatpush.msra.mxu0 0.0
    %580 = vmatpush.msra.mxu0 0.0
    %581 = vmatpush.msra.mxu0 0.0
    %582 = vmatpush.msra.mxu0 0.0
    %583 = vmatpush.msra.mxu0 0.0
    %584 = vmatpush.msra.mxu0 0.0
    %585 = vmatpush.msra.mxu0 %v449
    %586 = vmatpush.msra.mxu0 %v443
    %587 = vmatpush.msra.mxu0 %v437
    %588 = vmatpush.msra.mxu0 %v431
    %589 = vmatpush.msra.mxu0 %v425
    %590 = vmatpush.msra.mxu0 %v419
    %591 = vmatpush.msra.mxu0 %v413
    %592 = vmatpush.msra.mxu0 %v407
    %593 = vmatpush.msra.mxu0 %v401
    %594 = vmatmul.f32.gmra.mxu0 %v509
    %v595 = vpop.f32.mrf.mxu0
    %v596 = vadd.f32 0.0, %v595
    %597 = vmatmul.f32.gmra.mxu0 %v512
    %v598 = vpop.f32.mrf.mxu0
    %v599 = vadd.f32 0.0, %v598
    %600 = vmatmul.f32.gmra.mxu0 %v515
    %v601 = vpop.f32.mrf.mxu0
    %v602 = vadd.f32 0.0, %v601
    %603 = vmatmul.f32.gmra.mxu0 %v518
    %v604 = vpop.f32.mrf.mxu0
    %v605 = vadd.f32 0.0, %v604
    %606 = vdwg.mxu0
    %607 = vmatpush.msra.mxu0 0.0
    %608 = vmatpush.msra.mxu0 0.0
    %609 = vmatpush.msra.mxu0 0.0
    %610 = vmatpush.msra.mxu0 0.0
    %611 = vmatpush.msra.mxu0 0.0
    %612 = vmatpush.msra.mxu0 0.0
    %613 = vmatpush.msra.mxu0 0.0
    %614 = vmatpush.msra.mxu0 %v450
    %615 = vmatpush.msra.mxu0 %v444
    %616 = vmatpush.msra.mxu0 %v438
    %617 = vmatpush.msra.mxu0 %v432
    %618 = vmatpush.msra.mxu0 %v426
    %619 = vmatpush.msra.mxu0 %v420
    %620 = vmatpush.msra.mxu0 %v414
    %621 = vmatpush.msra.mxu0 %v408
    %622 = vmatpush.msra.mxu0 %v402
    %623 = vmatmul.f32.gmra.mxu0 %v509
    %v624 = vpop.f32.mrf.mxu0
    %v625 = vadd.f32 0.0, %v624
    %626 = vmatmul.f32.gmra.mxu0 %v512
    %v627 = vpop.f32.mrf.mxu0
    %v628 = vadd.f32 0.0, %v627
    %629 = vmatmul.f32.gmra.mxu0 %v515
    %v630 = vpop.f32.mrf.mxu0
    %v631 = vadd.f32 0.0, %v630
    %632 = vmatmul.f32.gmra.mxu0 %v518
    %v633 = vpop.f32.mrf.mxu0
    %v634 = vadd.f32 0.0, %v633
    %635 = vdwg.mxu0
    %636 = vmatpush.msra.mxu0 0.0
    %637 = vmatpush.msra.mxu0 0.0
    %638 = vmatpush.msra.mxu0 0.0
    %639 = vmatpush.msra.mxu0 0.0
    %640 = vmatpush.msra.mxu0 0.0
    %641 = vmatpush.msra.mxu0 0.0
    %642 = vmatpush.msra.mxu0 0.0
    %643 = vmatpush.msra.mxu0 %v451
    %644 = vmatpush.msra.mxu0 %v445
    %645 = vmatpush.msra.mxu0 %v439
    %646 = vmatpush.msra.mxu0 %v433
    %647 = vmatpush.msra.mxu0 %v427
    %648 = vmatpush.msra.mxu0 %v421
    %649 = vmatpush.msra.mxu0 %v415
    %650 = vmatpush.msra.mxu0 %v409
    %651 = vmatpush.msra.mxu0 %v403
    %652 = vmatmul.f32.gmra.mxu0 %v509
    %v653 = vpop.f32.mrf.mxu0
    %v654 = vadd.f32 0.0, %v653
    %655 = vmatmul.f32.gmra.mxu0 %v512
    %v656 = vpop.f32.mrf.mxu0
    %v657 = vadd.f32 0.0, %v656
    %658 = vmatmul.f32.gmra.mxu0 %v515
    %v659 = vpop.f32.mrf.mxu0
    %v660 = vadd.f32 0.0, %v659
    %661 = vmatmul.f32.gmra.mxu0 %v518
    %v662 = vpop.f32.mrf.mxu0
    %v663 = vadd.f32 0.0, %v662
    %664 = vdwg.mxu0
    %665 = vmatpush.msra.mxu0 0.0
    %666 = vmatpush.msra.mxu0 0.0
    %667 = vmatpush.msra.mxu0 0.0
    %668 = vmatpush.msra.mxu0 0.0
    %669 = vmatpush.msra.mxu0 0.0
    %670 = vmatpush.msra.mxu0 0.0
    %671 = vmatpush.msra.mxu0 0.0
    %672 = vmatpush.msra.mxu0 %v452
    %673 = vmatpush.msra.mxu0 %v446
    %674 = vmatpush.msra.mxu0 %v440
    %675 = vmatpush.msra.mxu0 %v434
    %676 = vmatpush.msra.mxu0 %v428
    %677 = vmatpush.msra.mxu0 %v422
    %678 = vmatpush.msra.mxu0 %v416
    %679 = vmatpush.msra.mxu0 %v410
    %680 = vmatpush.msra.mxu0 %v404
    %681 = vmatmul.f32.gmra.mxu0 %v509
    %v682 = vpop.f32.mrf.mxu0
    %v683 = vadd.f32 0.0, %v682
    %684 = vmatmul.f32.gmra.mxu0 %v512
    %v685 = vpop.f32.mrf.mxu0
    %v686 = vadd.f32 0.0, %v685
    %687 = vmatmul.f32.gmra.mxu0 %v515
    %v688 = vpop.f32.mrf.mxu0
    %v689 = vadd.f32 0.0, %v688
    %690 = vmatmul.f32.gmra.mxu0 %v518
    %v691 = vpop.f32.mrf.mxu0
    %v692 = vadd.f32 0.0, %v691
    %693 = vdwg.mxu0
    %v694 = vmax.f32 %v538, 0.0
    %v695 = vmax.f32 %v567, 0.0
    %v696 = vmax.f32 %v596, 0.0
    %v697 = vmax.f32 %v625, 0.0
    %v698 = vmax.f32 %v654, 0.0
    %v699 = vmax.f32 %v683, 0.0
    %v700 = vmax.f32 %v541, 0.0
    %v701 = vmax.f32 %v570, 0.0
    %v702 = vmax.f32 %v599, 0.0
    %v703 = vmax.f32 %v628, 0.0
    %v704 = vmax.f32 %v657, 0.0
    %v705 = vmax.f32 %v686, 0.0
    %v706 = vmax.f32 %v544, 0.0
    %v707 = vmax.f32 %v573, 0.0
    %v708 = vmax.f32 %v602, 0.0
    %v709 = vmax.f32 %v631, 0.0
    %v710 = vmax.f32 %v660, 0.0
    %v711 = vmax.f32 %v689, 0.0
    %v712 = vmax.f32 %v547, 0.0
    %v713 = vmax.f32 %v576, 0.0
    %v714 = vmax.f32 %v605, 0.0
    %v715 = vmax.f32 %v634, 0.0
    %v716 = vmax.f32 %v663, 0.0
    %v717 = vmax.f32 %v692, 0.0
    %v719 = vperm.slane %v54, 0
    %v720 = vperm.slane %v54, 1
    %v721 = vperm.slane %v54, 2
    %v722 = vperm.slane %v54, 3
    %v723 = vperm.slane %v54, 4
    %v724 = vperm.slane %v54, 5
    %v731 = vmul.f32 %v694, %v719
    %v732 = vmul.f32 %v695, %v720
    %v733 = vmul.f32 %v696, %v721
    %v734 = vmul.f32 %v697, %v722
    %v735 = vmul.f32 %v698, %v723
    %v736 = vmul.f32 %v699, %v724
    %v737 = vmul.f32 %v700, %v719
    %v738 = vmul.f32 %v701, %v720
    %v739 = vmul.f32 %v702, %v721
    %v740 = vmul.f32 %v703, %v722
    %v741 = vmul.f32 %v704, %v723
    %v742 = vmul.f32 %v705, %v724
    %v743 = vmul.f32 %v706, %v719
    %v744 = vmul.f32 %v707, %v720
    %v745 = vmul.f32 %v708, %v721
    %v746 = vmul.f32 %v709, %v722
    %v747 = vmul.f32 %v710, %v723
    %v748 = vmul.f32 %v711, %v724
    %v749 = vmul.f32 %v712, %v719
    %v750 = vmul.f32 %v713, %v720
    %v751 = vmul.f32 %v714, %v721
    %v752 = vmul.f32 %v715, %v722
    %v753 = vmul.f32 %v716, %v723
    %v754 = vmul.f32 %v717, %v724
    %755 = vst [vmem:[#allocation2 + $0x8] sm:$0xff] %v731
    %756 = vst [vmem:[#allocation2 + $0x10] sm:$0xff] %v732
    %757 = vst [vmem:[#allocation2 + $0x18] sm:$0xff] %v733
    %758 = vst [vmem:[#allocation2 + $0x20] sm:$0xff] %v734
    %759 = vst [vmem:[#allocation2 + $0x28] sm:$0xff] %v735
    %760 = vst [vmem:[#allocation2 + $0x30] sm:$0xff] %v736
    %761 = vst [vmem:[#allocation2 + $0x48] sm:$0xff] %v737
    %762 = vst [vmem:[#allocation2 + $0x50] sm:$0xff] %v738
    %763 = vst [vmem:[#allocation2 + $0x58] sm:$0xff] %v739
    %764 = vst [vmem:[#allocation2 + $0x60] sm:$0xff] %v740
    %765 = vst [vmem:[#allocation2 + $0x68] sm:$0xff] %v741
    %766 = vst [vmem:[#allocation2 + $0x70] sm:$0xff] %v742
    %767 = vst [vmem:[#allocation2 + $0x88] sm:$0xff] %v743
    %768 = vst [vmem:[#allocation2 + $0x90] sm:$0xff] %v744
    %769 = vst [vmem:[#allocation2 + $0x98] sm:$0xff] %v745
    %770 = vst [vmem:[#allocation2 + $0xa0] sm:$0xff] %v746
    %771 = vst [vmem:[#allocation2 + $0xa8] sm:$0xff] %v747
    %772 = vst [vmem:[#allocation2 + $0xb0] sm:$0xff] %v748
    %773 = vst [vmem:[#allocation2 + $0xc8] sm:$0xff] %v749
    %774 = vst [vmem:[#allocation2 + $0xd0] sm:$0xff] %v750
    %775 = vst [vmem:[#allocation2 + $0xd8] sm:$0xff] %v751
    %776 = vst [vmem:[#allocation2 + $0xe0] sm:$0xff] %v752
    %777 = vst [vmem:[#allocation2 + $0xe8] sm:$0xff] %v753
    %778 = vst [vmem:[#allocation2 + $0xf0] sm:$0xff] %v754
    loop: start=0, step=1, limit=3
    $region34: #{tpu_custom_call.1} parent=1 // loop_pre_header
      _
    $region35: #{tpu_custom_call.1} parent=1 // loop_header
      %s780 = sphi 0, %s784
      %p781 = scmp.ge.s32.totalorder %s780, 3
    $region36: #{tpu_custom_call.1} parent=1 // loop_header_branch
      %783 = sbr.rel (%p781) target = $region40
    $region37: #{tpu_custom_call.1} parent=1 // loop_body
      %v785 = vld [vmem:[#allocation2] sm:$0xff]
      %v786 = vld [vmem:[#allocation2 + $0x8] sm:$0xff]
      %v787 = vld [vmem:[#allocation2 + $0x10] sm:$0xff]
      %v788 = vld [vmem:[#allocation2 + $0x18] sm:$0xff]
      %v789 = vld [vmem:[#allocation2 + $0x20] sm:$0xff]
      %v790 = vld [vmem:[#allocation2 + $0x28] sm:$0xff]
      %v791 = vld [vmem:[#allocation2 + $0x30] sm:$0xff]
      %v792 = vld [vmem:[#allocation2 + $0x38] sm:$0xff]
      %v793 = vld [vmem:[#allocation2 + $0x40] sm:$0xff]
      %v794 = vld [vmem:[#allocation2 + $0x48] sm:$0xff]
      %v795 = vld [vmem:[#allocation2 + $0x50] sm:$0xff]
      %v796 = vld [vmem:[#allocation2 + $0x58] sm:$0xff]
      %v797 = vld [vmem:[#allocation2 + $0x60] sm:$0xff]
      %v798 = vld [vmem:[#allocation2 + $0x68] sm:$0xff]
      %v799 = vld [vmem:[#allocation2 + $0x70] sm:$0xff]
      %v800 = vld [vmem:[#allocation2 + $0x78] sm:$0xff]
      %v801 = vld [vmem:[#allocation2 + $0x80] sm:$0xff]
      %v802 = vld [vmem:[#allocation2 + $0x88] sm:$0xff]
      %v803 = vld [vmem:[#allocation2 + $0x90] sm:$0xff]
      %v804 = vld [vmem:[#allocation2 + $0x98] sm:$0xff]
      %v805 = vld [vmem:[#allocation2 + $0xa0] sm:$0xff]
      %v806 = vld [vmem:[#allocation2 + $0xa8] sm:$0xff]
      %v807 = vld [vmem:[#allocation2 + $0xb0] sm:$0xff]
      %v808 = vld [vmem:[#allocation2 + $0xb8] sm:$0xff]
      %v809 = vld [vmem:[#allocation2 + $0xc0] sm:$0xff]
      %v810 = vld [vmem:[#allocation2 + $0xc8] sm:$0xff]
      %v811 = vld [vmem:[#allocation2 + $0xd0] sm:$0xff]
      %v812 = vld [vmem:[#allocation2 + $0xd8] sm:$0xff]
      %v813 = vld [vmem:[#allocation2 + $0xe0] sm:$0xff]
      %v814 = vld [vmem:[#allocation2 + $0xe8] sm:$0xff]
      %v815 = vld [vmem:[#allocation2 + $0xf0] sm:$0xff]
      %v816 = vld [vmem:[#allocation2 + $0xf8] sm:$0xff]
      %845 = vrot.lane.b32.xlu0 %v785, 127
      %v846 = vpop.permute.xlu0 %845
      %847 = vrot.lane.b32.xlu0 %v786, 127
      %v848 = vpop.permute.xlu0 %847
      %849 = vrot.lane.b32.xlu0 %v787, 127
      %v850 = vpop.permute.xlu0 %849
      %851 = vrot.lane.b32.xlu0 %v788, 127
      %v852 = vpop.permute.xlu0 %851
      %853 = vrot.lane.b32.xlu0 %v789, 127
      %v854 = vpop.permute.xlu0 %853
      %855 = vrot.lane.b32.xlu0 %v790, 127
      %v856 = vpop.permute.xlu0 %855
      %857 = vrot.lane.b32.xlu0 %v791, 127
      %v858 = vpop.permute.xlu0 %857
      %859 = vrot.lane.b32.xlu0 %v793, 127
      %v860 = vpop.permute.xlu0 %859
      %861 = vrot.lane.b32.xlu0 %v794, 127
      %v862 = vpop.permute.xlu0 %861
      %863 = vrot.lane.b32.xlu0 %v795, 127
      %v864 = vpop.permute.xlu0 %863
      %865 = vrot.lane.b32.xlu0 %v796, 127
      %v866 = vpop.permute.xlu0 %865
      %867 = vrot.lane.b32.xlu0 %v797, 127
      %v868 = vpop.permute.xlu0 %867
      %869 = vrot.lane.b32.xlu0 %v798, 127
      %v870 = vpop.permute.xlu0 %869
      %871 = vrot.lane.b32.xlu0 %v799, 127
      %v872 = vpop.permute.xlu0 %871
      %873 = vrot.lane.b32.xlu0 %v801, 127
      %v874 = vpop.permute.xlu0 %873
      %875 = vrot.lane.b32.xlu0 %v802, 127
      %v876 = vpop.permute.xlu0 %875
      %877 = vrot.lane.b32.xlu0 %v803, 127
      %v878 = vpop.permute.xlu0 %877
      %879 = vrot.lane.b32.xlu0 %v804, 127
      %v880 = vpop.permute.xlu0 %879
      %881 = vrot.lane.b32.xlu0 %v805, 127
      %v882 = vpop.permute.xlu0 %881
      %883 = vrot.lane.b32.xlu0 %v806, 127
      %v884 = vpop.permute.xlu0 %883
      %885 = vrot.lane.b32.xlu0 %v807, 127
      %v886 = vpop.permute.xlu0 %885
      %887 = vrot.lane.b32.xlu0 %v809, 127
      %v888 = vpop.permute.xlu0 %887
      %889 = vrot.lane.b32.xlu0 %v810, 127
      %v890 = vpop.permute.xlu0 %889
      %891 = vrot.lane.b32.xlu0 %v811, 127
      %v892 = vpop.permute.xlu0 %891
      %893 = vrot.lane.b32.xlu0 %v812, 127
      %v894 = vpop.permute.xlu0 %893
      %895 = vrot.lane.b32.xlu0 %v813, 127
      %v896 = vpop.permute.xlu0 %895
      %897 = vrot.lane.b32.xlu0 %v814, 127
      %v898 = vpop.permute.xlu0 %897
      %899 = vrot.lane.b32.xlu0 %v815, 127
      %v900 = vpop.permute.xlu0 %899
      %v901 = vsel %vm116, %v846, %v848
      %v902 = vsel %vm116, %v848, %v850
      %v903 = vsel %vm116, %v850, %v852
      %v904 = vsel %vm116, %v852, %v854
      %v905 = vsel %vm116, %v854, %v856
      %v906 = vsel %vm116, %v856, %v858
      %v907 = vsel %vm116, %v860, %v862
      %v908 = vsel %vm116, %v862, %v864
      %v909 = vsel %vm116, %v864, %v866
      %v910 = vsel %vm116, %v866, %v868
      %v911 = vsel %vm116, %v868, %v870
      %v912 = vsel %vm116, %v870, %v872
      %v913 = vsel %vm116, %v874, %v876
      %v914 = vsel %vm116, %v876, %v878
      %v915 = vsel %vm116, %v878, %v880
      %v916 = vsel %vm116, %v880, %v882
      %v917 = vsel %vm116, %v882, %v884
      %v918 = vsel %vm116, %v884, %v886
      %v919 = vsel %vm116, %v888, %v890
      %v920 = vsel %vm116, %v890, %v892
      %v921 = vsel %vm116, %v892, %v894
      %v922 = vsel %vm116, %v894, %v896
      %v923 = vsel %vm116, %v896, %v898
      %v924 = vsel %vm116, %v898, %v900
      %925 = vrot.lane.b32.xlu0 %v785, 126
      %v926 = vpop.permute.xlu0 %925
      %927 = vrot.lane.b32.xlu0 %v786, 126
      %v928 = vpop.permute.xlu0 %927
      %929 = vrot.lane.b32.xlu0 %v787, 126
      %v930 = vpop.permute.xlu0 %929
      %931 = vrot.lane.b32.xlu0 %v788, 126
      %v932 = vpop.permute.xlu0 %931
      %933 = vrot.lane.b32.xlu0 %v789, 126
      %v934 = vpop.permute.xlu0 %933
      %935 = vrot.lane.b32.xlu0 %v790, 126
      %v936 = vpop.permute.xlu0 %935
      %937 = vrot.lane.b32.xlu0 %v791, 126
      %v938 = vpop.permute.xlu0 %937
      %939 = vrot.lane.b32.xlu0 %v793, 126
      %v940 = vpop.permute.xlu0 %939
      %941 = vrot.lane.b32.xlu0 %v794, 126
      %v942 = vpop.permute.xlu0 %941
      %943 = vrot.lane.b32.xlu0 %v795, 126
      %v944 = vpop.permute.xlu0 %943
      %945 = vrot.lane.b32.xlu0 %v796, 126
      %v946 = vpop.permute.xlu0 %945
      %947 = vrot.lane.b32.xlu0 %v797, 126
      %v948 = vpop.permute.xlu0 %947
      %949 = vrot.lane.b32.xlu0 %v798, 126
      %v950 = vpop.permute.xlu0 %949
      %951 = vrot.lane.b32.xlu0 %v799, 126
      %v952 = vpop.permute.xlu0 %951
      %953 = vrot.lane.b32.xlu0 %v801, 126
      %v954 = vpop.permute.xlu0 %953
      %955 = vrot.lane.b32.xlu0 %v802, 126
      %v956 = vpop.permute.xlu0 %955
      %957 = vrot.lane.b32.xlu0 %v803, 126
      %v958 = vpop.permute.xlu0 %957
      %959 = vrot.lane.b32.xlu0 %v804, 126
      %v960 = vpop.permute.xlu0 %959
      %961 = vrot.lane.b32.xlu0 %v805, 126
      %v962 = vpop.permute.xlu0 %961
      %963 = vrot.lane.b32.xlu0 %v806, 126
      %v964 = vpop.permute.xlu0 %963
      %965 = vrot.lane.b32.xlu0 %v807, 126
      %v966 = vpop.permute.xlu0 %965
      %967 = vrot.lane.b32.xlu0 %v809, 126
      %v968 = vpop.permute.xlu0 %967
      %969 = vrot.lane.b32.xlu0 %v810, 126
      %v970 = vpop.permute.xlu0 %969
      %971 = vrot.lane.b32.xlu0 %v811, 126
      %v972 = vpop.permute.xlu0 %971
      %973 = vrot.lane.b32.xlu0 %v812, 126
      %v974 = vpop.permute.xlu0 %973
      %975 = vrot.lane.b32.xlu0 %v813, 126
      %v976 = vpop.permute.xlu0 %975
      %977 = vrot.lane.b32.xlu0 %v814, 126
      %v978 = vpop.permute.xlu0 %977
      %979 = vrot.lane.b32.xlu0 %v815, 126
      %v980 = vpop.permute.xlu0 %979
      %v981 = vsel %vm137, %v926, %v928
      %v982 = vsel %vm137, %v928, %v930
      %v983 = vsel %vm137, %v930, %v932
      %v984 = vsel %vm137, %v932, %v934
      %v985 = vsel %vm137, %v934, %v936
      %v986 = vsel %vm137, %v936, %v938
      %v987 = vsel %vm137, %v940, %v942
      %v988 = vsel %vm137, %v942, %v944
      %v989 = vsel %vm137, %v944, %v946
      %v990 = vsel %vm137, %v946, %v948
      %v991 = vsel %vm137, %v948, %v950
      %v992 = vsel %vm137, %v950, %v952
      %v993 = vsel %vm137, %v954, %v956
      %v994 = vsel %vm137, %v956, %v958
      %v995 = vsel %vm137, %v958, %v960
      %v996 = vsel %vm137, %v960, %v962
      %v997 = vsel %vm137, %v962, %v964
      %v998 = vsel %vm137, %v964, %v966
      %v999 = vsel %vm137, %v968, %v970
      %v1000 = vsel %vm137, %v970, %v972
      %v1001 = vsel %vm137, %v972, %v974
      %v1002 = vsel %vm137, %v974, %v976
      %v1003 = vsel %vm137, %v976, %v978
      %v1004 = vsel %vm137, %v978, %v980
      %1005 = vrot.lane.b32.xlu0 %v785, 110
      %v1006 = vpop.permute.xlu0 %1005
      %1007 = vrot.lane.b32.xlu0 %v786, 110
      %v1008 = vpop.permute.xlu0 %1007
      %1009 = vrot.lane.b32.xlu0 %v787, 110
      %v1010 = vpop.permute.xlu0 %1009
      %1011 = vrot.lane.b32.xlu0 %v788, 110
      %v1012 = vpop.permute.xlu0 %1011
      %1013 = vrot.lane.b32.xlu0 %v789, 110
      %v1014 = vpop.permute.xlu0 %1013
      %1015 = vrot.lane.b32.xlu0 %v790, 110
      %v1016 = vpop.permute.xlu0 %1015
      %1017 = vrot.lane.b32.xlu0 %v791, 110
      %v1018 = vpop.permute.xlu0 %1017
      %1019 = vrot.lane.b32.xlu0 %v793, 110
      %v1020 = vpop.permute.xlu0 %1019
      %1021 = vrot.lane.b32.xlu0 %v794, 110
      %v1022 = vpop.permute.xlu0 %1021
      %1023 = vrot.lane.b32.xlu0 %v795, 110
      %v1024 = vpop.permute.xlu0 %1023
      %1025 = vrot.lane.b32.xlu0 %v796, 110
      %v1026 = vpop.permute.xlu0 %1025
      %1027 = vrot.lane.b32.xlu0 %v797, 110
      %v1028 = vpop.permute.xlu0 %1027
      %1029 = vrot.lane.b32.xlu0 %v798, 110
      %v1030 = vpop.permute.xlu0 %1029
      %1031 = vrot.lane.b32.xlu0 %v799, 110
      %v1032 = vpop.permute.xlu0 %1031
      %1033 = vrot.lane.b32.xlu0 %v801, 110
      %v1034 = vpop.permute.xlu0 %1033
      %1035 = vrot.lane.b32.xlu0 %v802, 110
      %v1036 = vpop.permute.xlu0 %1035
      %1037 = vrot.lane.b32.xlu0 %v803, 110
      %v1038 = vpop.permute.xlu0 %1037
      %1039 = vrot.lane.b32.xlu0 %v804, 110
      %v1040 = vpop.permute.xlu0 %1039
      %1041 = vrot.lane.b32.xlu0 %v805, 110
      %v1042 = vpop.permute.xlu0 %1041
      %1043 = vrot.lane.b32.xlu0 %v806, 110
      %v1044 = vpop.permute.xlu0 %1043
      %1045 = vrot.lane.b32.xlu0 %v807, 110
      %v1046 = vpop.permute.xlu0 %1045
      %1047 = vrot.lane.b32.xlu0 %v809, 110
      %v1048 = vpop.permute.xlu0 %1047
      %1049 = vrot.lane.b32.xlu0 %v810, 110
      %v1050 = vpop.permute.xlu0 %1049
      %1051 = vrot.lane.b32.xlu0 %v811, 110
      %v1052 = vpop.permute.xlu0 %1051
      %1053 = vrot.lane.b32.xlu0 %v812, 110
      %v1054 = vpop.permute.xlu0 %1053
      %1055 = vrot.lane.b32.xlu0 %v813, 110
      %v1056 = vpop.permute.xlu0 %1055
      %1057 = vrot.lane.b32.xlu0 %v814, 110
      %v1058 = vpop.permute.xlu0 %1057
      %1059 = vrot.lane.b32.xlu0 %v815, 110
      %v1060 = vpop.permute.xlu0 %1059
      %v1061 = vsel %vm158, %v1006, %v1008
      %v1062 = vsel %vm158, %v1008, %v1010
      %v1063 = vsel %vm158, %v1010, %v1012
      %v1064 = vsel %vm158, %v1012, %v1014
      %v1065 = vsel %vm158, %v1014, %v1016
      %v1066 = vsel %vm158, %v1016, %v1018
      %v1067 = vsel %vm158, %v1020, %v1022
      %v1068 = vsel %vm158, %v1022, %v1024
      %v1069 = vsel %vm158, %v1024, %v1026
      %v1070 = vsel %vm158, %v1026, %v1028
      %v1071 = vsel %vm158, %v1028, %v1030
      %v1072 = vsel %vm158, %v1030, %v1032
      %v1073 = vsel %vm158, %v1034, %v1036
      %v1074 = vsel %vm158, %v1036, %v1038
      %v1075 = vsel %vm158, %v1038, %v1040
      %v1076 = vsel %vm158, %v1040, %v1042
      %v1077 = vsel %vm158, %v1042, %v1044
      %v1078 = vsel %vm158, %v1044, %v1046
      %v1079 = vsel %vm158, %v1048, %v1050
      %v1080 = vsel %vm158, %v1050, %v1052
      %v1081 = vsel %vm158, %v1052, %v1054
      %v1082 = vsel %vm158, %v1054, %v1056
      %v1083 = vsel %vm158, %v1056, %v1058
      %v1084 = vsel %vm158, %v1058, %v1060
      %1085 = vrot.lane.b32.xlu0 %v786, 109
      %v1086 = vpop.permute.xlu0 %1085
      %1087 = vrot.lane.b32.xlu0 %v787, 109
      %v1088 = vpop.permute.xlu0 %1087
      %1089 = vrot.lane.b32.xlu0 %v788, 109
      %v1090 = vpop.permute.xlu0 %1089
      %1091 = vrot.lane.b32.xlu0 %v789, 109
      %v1092 = vpop.permute.xlu0 %1091
      %1093 = vrot.lane.b32.xlu0 %v790, 109
      %v1094 = vpop.permute.xlu0 %1093
      %1095 = vrot.lane.b32.xlu0 %v791, 109
      %v1096 = vpop.permute.xlu0 %1095
      %1097 = vrot.lane.b32.xlu0 %v794, 109
      %v1098 = vpop.permute.xlu0 %1097
      %1099 = vrot.lane.b32.xlu0 %v795, 109
      %v1100 = vpop.permute.xlu0 %1099
      %1101 = vrot.lane.b32.xlu0 %v796, 109
      %v1102 = vpop.permute.xlu0 %1101
      %1103 = vrot.lane.b32.xlu0 %v797, 109
      %v1104 = vpop.permute.xlu0 %1103
      %1105 = vrot.lane.b32.xlu0 %v798, 109
      %v1106 = vpop.permute.xlu0 %1105
      %1107 = vrot.lane.b32.xlu0 %v799, 109
      %v1108 = vpop.permute.xlu0 %1107
      %1109 = vrot.lane.b32.xlu0 %v802, 109
      %v1110 = vpop.permute.xlu0 %1109
      %1111 = vrot.lane.b32.xlu0 %v803, 109
      %v1112 = vpop.permute.xlu0 %1111
      %1113 = vrot.lane.b32.xlu0 %v804, 109
      %v1114 = vpop.permute.xlu0 %1113
      %1115 = vrot.lane.b32.xlu0 %v805, 109
      %v1116 = vpop.permute.xlu0 %1115
      %1117 = vrot.lane.b32.xlu0 %v806, 109
      %v1118 = vpop.permute.xlu0 %1117
      %1119 = vrot.lane.b32.xlu0 %v807, 109
      %v1120 = vpop.permute.xlu0 %1119
      %1121 = vrot.lane.b32.xlu0 %v810, 109
      %v1122 = vpop.permute.xlu0 %1121
      %1123 = vrot.lane.b32.xlu0 %v811, 109
      %v1124 = vpop.permute.xlu0 %1123
      %1125 = vrot.lane.b32.xlu0 %v812, 109
      %v1126 = vpop.permute.xlu0 %1125
      %1127 = vrot.lane.b32.xlu0 %v813, 109
      %v1128 = vpop.permute.xlu0 %1127
      %1129 = vrot.lane.b32.xlu0 %v814, 109
      %v1130 = vpop.permute.xlu0 %1129
      %1131 = vrot.lane.b32.xlu0 %v815, 109
      %v1132 = vpop.permute.xlu0 %1131
      %v1133 = vsel %vm177, %v1086, %v1088
      %v1134 = vsel %vm177, %v1088, %v1090
      %v1135 = vsel %vm177, %v1090, %v1092
      %v1136 = vsel %vm177, %v1092, %v1094
      %v1137 = vsel %vm177, %v1094, %v1096
      %v1138 = vsel %vm177, %v1098, %v1100
      %v1139 = vsel %vm177, %v1100, %v1102
      %v1140 = vsel %vm177, %v1102, %v1104
      %v1141 = vsel %vm177, %v1104, %v1106
      %v1142 = vsel %vm177, %v1106, %v1108
      %v1143 = vsel %vm177, %v1110, %v1112
      %v1144 = vsel %vm177, %v1112, %v1114
      %v1145 = vsel %vm177, %v1114, %v1116
      %v1146 = vsel %vm177, %v1116, %v1118
      %v1147 = vsel %vm177, %v1118, %v1120
      %v1148 = vsel %vm177, %v1122, %v1124
      %v1149 = vsel %vm177, %v1124, %v1126
      %v1150 = vsel %vm177, %v1126, %v1128
      %v1151 = vsel %vm177, %v1128, %v1130
      %v1152 = vsel %vm177, %v1130, %v1132
      %1157 = vrot.lane.b32.xlu0 %v786, 108
      %v1158 = vpop.permute.xlu0 %1157
      %1159 = vrot.lane.b32.xlu0 %v787, 108
      %v1160 = vpop.permute.xlu0 %1159
      %1161 = vrot.lane.b32.xlu0 %v788, 108
      %v1162 = vpop.permute.xlu0 %1161
      %1163 = vrot.lane.b32.xlu0 %v789, 108
      %v1164 = vpop.permute.xlu0 %1163
      %1165 = vrot.lane.b32.xlu0 %v790, 108
      %v1166 = vpop.permute.xlu0 %1165
      %1167 = vrot.lane.b32.xlu0 %v791, 108
      %v1168 = vpop.permute.xlu0 %1167
      %1169 = vrot.lane.b32.xlu0 %v792, 108
      %v1170 = vpop.permute.xlu0 %1169
      %1171 = vrot.lane.b32.xlu0 %v794, 108
      %v1172 = vpop.permute.xlu0 %1171
      %1173 = vrot.lane.b32.xlu0 %v795, 108
      %v1174 = vpop.permute.xlu0 %1173
      %1175 = vrot.lane.b32.xlu0 %v796, 108
      %v1176 = vpop.permute.xlu0 %1175
      %1177 = vrot.lane.b32.xlu0 %v797, 108
      %v1178 = vpop.permute.xlu0 %1177
      %1179 = vrot.lane.b32.xlu0 %v798, 108
      %v1180 = vpop.permute.xlu0 %1179
      %1181 = vrot.lane.b32.xlu0 %v799, 108
      %v1182 = vpop.permute.xlu0 %1181
      %1183 = vrot.lane.b32.xlu0 %v800, 108
      %v1184 = vpop.permute.xlu0 %1183
      %1185 = vrot.lane.b32.xlu0 %v802, 108
      %v1186 = vpop.permute.xlu0 %1185
      %1187 = vrot.lane.b32.xlu0 %v803, 108
      %v1188 = vpop.permute.xlu0 %1187
      %1189 = vrot.lane.b32.xlu0 %v804, 108
      %v1190 = vpop.permute.xlu0 %1189
      %1191 = vrot.lane.b32.xlu0 %v805, 108
      %v1192 = vpop.permute.xlu0 %1191
      %1193 = vrot.lane.b32.xlu0 %v806, 108
      %v1194 = vpop.permute.xlu0 %1193
      %1195 = vrot.lane.b32.xlu0 %v807, 108
      %v1196 = vpop.permute.xlu0 %1195
      %1197 = vrot.lane.b32.xlu0 %v808, 108
      %v1198 = vpop.permute.xlu0 %1197
      %1199 = vrot.lane.b32.xlu0 %v810, 108
      %v1200 = vpop.permute.xlu0 %1199
      %1201 = vrot.lane.b32.xlu0 %v811, 108
      %v1202 = vpop.permute.xlu0 %1201
      %1203 = vrot.lane.b32.xlu0 %v812, 108
      %v1204 = vpop.permute.xlu0 %1203
      %1205 = vrot.lane.b32.xlu0 %v813, 108
      %v1206 = vpop.permute.xlu0 %1205
      %1207 = vrot.lane.b32.xlu0 %v814, 108
      %v1208 = vpop.permute.xlu0 %1207
      %1209 = vrot.lane.b32.xlu0 %v815, 108
      %v1210 = vpop.permute.xlu0 %1209
      %1211 = vrot.lane.b32.xlu0 %v816, 108
      %v1212 = vpop.permute.xlu0 %1211
      %v1213 = vsel %vm198, %v1158, %v1160
      %v1214 = vsel %vm198, %v1160, %v1162
      %v1215 = vsel %vm198, %v1162, %v1164
      %v1216 = vsel %vm198, %v1164, %v1166
      %v1217 = vsel %vm198, %v1166, %v1168
      %v1218 = vsel %vm198, %v1168, %v1170
      %v1219 = vsel %vm198, %v1172, %v1174
      %v1220 = vsel %vm198, %v1174, %v1176
      %v1221 = vsel %vm198, %v1176, %v1178
      %v1222 = vsel %vm198, %v1178, %v1180
      %v1223 = vsel %vm198, %v1180, %v1182
      %v1224 = vsel %vm198, %v1182, %v1184
      %v1225 = vsel %vm198, %v1186, %v1188
      %v1226 = vsel %vm198, %v1188, %v1190
      %v1227 = vsel %vm198, %v1190, %v1192
      %v1228 = vsel %vm198, %v1192, %v1194
      %v1229 = vsel %vm198, %v1194, %v1196
      %v1230 = vsel %vm198, %v1196, %v1198
      %v1231 = vsel %vm198, %v1200, %v1202
      %v1232 = vsel %vm198, %v1202, %v1204
      %v1233 = vsel %vm198, %v1204, %v1206
      %v1234 = vsel %vm198, %v1206, %v1208
      %v1235 = vsel %vm198, %v1208, %v1210
      %v1236 = vsel %vm198, %v1210, %v1212
      %1237 = vrot.lane.b32.xlu0 %v786, 92
      %v1238 = vpop.permute.xlu0 %1237
      %1239 = vrot.lane.b32.xlu0 %v787, 92
      %v1240 = vpop.permute.xlu0 %1239
      %1241 = vrot.lane.b32.xlu0 %v788, 92
      %v1242 = vpop.permute.xlu0 %1241
      %1243 = vrot.lane.b32.xlu0 %v789, 92
      %v1244 = vpop.permute.xlu0 %1243
      %1245 = vrot.lane.b32.xlu0 %v790, 92
      %v1246 = vpop.permute.xlu0 %1245
      %1247 = vrot.lane.b32.xlu0 %v791, 92
      %v1248 = vpop.permute.xlu0 %1247
      %1249 = vrot.lane.b32.xlu0 %v792, 92
      %v1250 = vpop.permute.xlu0 %1249
      %1251 = vrot.lane.b32.xlu0 %v794, 92
      %v1252 = vpop.permute.xlu0 %1251
      %1253 = vrot.lane.b32.xlu0 %v795, 92
      %v1254 = vpop.permute.xlu0 %1253
      %1255 = vrot.lane.b32.xlu0 %v796, 92
      %v1256 = vpop.permute.xlu0 %1255
      %1257 = vrot.lane.b32.xlu0 %v797, 92
      %v1258 = vpop.permute.xlu0 %1257
      %1259 = vrot.lane.b32.xlu0 %v798, 92
      %v1260 = vpop.permute.xlu0 %1259
      %1261 = vrot.lane.b32.xlu0 %v799, 92
      %v1262 = vpop.permute.xlu0 %1261
      %1263 = vrot.lane.b32.xlu0 %v800, 92
      %v1264 = vpop.permute.xlu0 %1263
      %1265 = vrot.lane.b32.xlu0 %v802, 92
      %v1266 = vpop.permute.xlu0 %1265
      %1267 = vrot.lane.b32.xlu0 %v803, 92
      %v1268 = vpop.permute.xlu0 %1267
      %1269 = vrot.lane.b32.xlu0 %v804, 92
      %v1270 = vpop.permute.xlu0 %1269
      %1271 = vrot.lane.b32.xlu0 %v805, 92
      %v1272 = vpop.permute.xlu0 %1271
      %1273 = vrot.lane.b32.xlu0 %v806, 92
      %v1274 = vpop.permute.xlu0 %1273
      %1275 = vrot.lane.b32.xlu0 %v807, 92
      %v1276 = vpop.permute.xlu0 %1275
      %1277 = vrot.lane.b32.xlu0 %v808, 92
      %v1278 = vpop.permute.xlu0 %1277
      %1279 = vrot.lane.b32.xlu0 %v810, 92
      %v1280 = vpop.permute.xlu0 %1279
      %1281 = vrot.lane.b32.xlu0 %v811, 92
      %v1282 = vpop.permute.xlu0 %1281
      %1283 = vrot.lane.b32.xlu0 %v812, 92
      %v1284 = vpop.permute.xlu0 %1283
      %1285 = vrot.lane.b32.xlu0 %v813, 92
      %v1286 = vpop.permute.xlu0 %1285
      %1287 = vrot.lane.b32.xlu0 %v814, 92
      %v1288 = vpop.permute.xlu0 %1287
      %1289 = vrot.lane.b32.xlu0 %v815, 92
      %v1290 = vpop.permute.xlu0 %1289
      %1291 = vrot.lane.b32.xlu0 %v816, 92
      %v1292 = vpop.permute.xlu0 %1291
      %v1293 = vsel %vm219, %v1238, %v1240
      %v1294 = vsel %vm219, %v1240, %v1242
      %v1295 = vsel %vm219, %v1242, %v1244
      %v1296 = vsel %vm219, %v1244, %v1246
      %v1297 = vsel %vm219, %v1246, %v1248
      %v1298 = vsel %vm219, %v1248, %v1250
      %v1299 = vsel %vm219, %v1252, %v1254
      %v1300 = vsel %vm219, %v1254, %v1256
      %v1301 = vsel %vm219, %v1256, %v1258
      %v1302 = vsel %vm219, %v1258, %v1260
      %v1303 = vsel %vm219, %v1260, %v1262
      %v1304 = vsel %vm219, %v1262, %v1264
      %v1305 = vsel %vm219, %v1266, %v1268
      %v1306 = vsel %vm219, %v1268, %v1270
      %v1307 = vsel %vm219, %v1270, %v1272
      %v1308 = vsel %vm219, %v1272, %v1274
      %v1309 = vsel %vm219, %v1274, %v1276
      %v1310 = vsel %vm219, %v1276, %v1278
      %v1311 = vsel %vm219, %v1280, %v1282
      %v1312 = vsel %vm219, %v1282, %v1284
      %v1313 = vsel %vm219, %v1284, %v1286
      %v1314 = vsel %vm219, %v1286, %v1288
      %v1315 = vsel %vm219, %v1288, %v1290
      %v1316 = vsel %vm219, %v1290, %v1292
      %1317 = vrot.lane.b32.xlu0 %v786, 91
      %v1318 = vpop.permute.xlu0 %1317
      %1319 = vrot.lane.b32.xlu0 %v787, 91
      %v1320 = vpop.permute.xlu0 %1319
      %1321 = vrot.lane.b32.xlu0 %v788, 91
      %v1322 = vpop.permute.xlu0 %1321
      %1323 = vrot.lane.b32.xlu0 %v789, 91
      %v1324 = vpop.permute.xlu0 %1323
      %1325 = vrot.lane.b32.xlu0 %v790, 91
      %v1326 = vpop.permute.xlu0 %1325
      %1327 = vrot.lane.b32.xlu0 %v791, 91
      %v1328 = vpop.permute.xlu0 %1327
      %1329 = vrot.lane.b32.xlu0 %v792, 91
      %v1330 = vpop.permute.xlu0 %1329
      %1331 = vrot.lane.b32.xlu0 %v794, 91
      %v1332 = vpop.permute.xlu0 %1331
      %1333 = vrot.lane.b32.xlu0 %v795, 91
      %v1334 = vpop.permute.xlu0 %1333
      %1335 = vrot.lane.b32.xlu0 %v796, 91
      %v1336 = vpop.permute.xlu0 %1335
      %1337 = vrot.lane.b32.xlu0 %v797, 91
      %v1338 = vpop.permute.xlu0 %1337
      %1339 = vrot.lane.b32.xlu0 %v798, 91
      %v1340 = vpop.permute.xlu0 %1339
      %1341 = vrot.lane.b32.xlu0 %v799, 91
      %v1342 = vpop.permute.xlu0 %1341
      %1343 = vrot.lane.b32.xlu0 %v800, 91
      %v1344 = vpop.permute.xlu0 %1343
      %1345 = vrot.lane.b32.xlu0 %v802, 91
      %v1346 = vpop.permute.xlu0 %1345
      %1347 = vrot.lane.b32.xlu0 %v803, 91
      %v1348 = vpop.permute.xlu0 %1347
      %1349 = vrot.lane.b32.xlu0 %v804, 91
      %v1350 = vpop.permute.xlu0 %1349
      %1351 = vrot.lane.b32.xlu0 %v805, 91
      %v1352 = vpop.permute.xlu0 %1351
      %1353 = vrot.lane.b32.xlu0 %v806, 91
      %v1354 = vpop.permute.xlu0 %1353
      %1355 = vrot.lane.b32.xlu0 %v807, 91
      %v1356 = vpop.permute.xlu0 %1355
      %1357 = vrot.lane.b32.xlu0 %v808, 91
      %v1358 = vpop.permute.xlu0 %1357
      %1359 = vrot.lane.b32.xlu0 %v810, 91
      %v1360 = vpop.permute.xlu0 %1359
      %1361 = vrot.lane.b32.xlu0 %v811, 91
      %v1362 = vpop.permute.xlu0 %1361
      %1363 = vrot.lane.b32.xlu0 %v812, 91
      %v1364 = vpop.permute.xlu0 %1363
      %1365 = vrot.lane.b32.xlu0 %v813, 91
      %v1366 = vpop.permute.xlu0 %1365
      %1367 = vrot.lane.b32.xlu0 %v814, 91
      %v1368 = vpop.permute.xlu0 %1367
      %1369 = vrot.lane.b32.xlu0 %v815, 91
      %v1370 = vpop.permute.xlu0 %1369
      %1371 = vrot.lane.b32.xlu0 %v816, 91
      %v1372 = vpop.permute.xlu0 %1371
      %v1373 = vsel %vm240, %v1318, %v1320
      %v1374 = vsel %vm240, %v1320, %v1322
      %v1375 = vsel %vm240, %v1322, %v1324
      %v1376 = vsel %vm240, %v1324, %v1326
      %v1377 = vsel %vm240, %v1326, %v1328
      %v1378 = vsel %vm240, %v1328, %v1330
      %v1379 = vsel %vm240, %v1332, %v1334
      %v1380 = vsel %vm240, %v1334, %v1336
      %v1381 = vsel %vm240, %v1336, %v1338
      %v1382 = vsel %vm240, %v1338, %v1340
      %v1383 = vsel %vm240, %v1340, %v1342
      %v1384 = vsel %vm240, %v1342, %v1344
      %v1385 = vsel %vm240, %v1346, %v1348
      %v1386 = vsel %vm240, %v1348, %v1350
      %v1387 = vsel %vm240, %v1350, %v1352
      %v1388 = vsel %vm240, %v1352, %v1354
      %v1389 = vsel %vm240, %v1354, %v1356
      %v1390 = vsel %vm240, %v1356, %v1358
      %v1391 = vsel %vm240, %v1360, %v1362
      %v1392 = vsel %vm240, %v1362, %v1364
      %v1393 = vsel %vm240, %v1364, %v1366
      %v1394 = vsel %vm240, %v1366, %v1368
      %v1395 = vsel %vm240, %v1368, %v1370
      %v1396 = vsel %vm240, %v1370, %v1372
      %1397 = vrot.lane.b32.xlu0 %v786, 90
      %v1398 = vpop.permute.xlu0 %1397
      %1399 = vrot.lane.b32.xlu0 %v787, 90
      %v1400 = vpop.permute.xlu0 %1399
      %1401 = vrot.lane.b32.xlu0 %v788, 90
      %v1402 = vpop.permute.xlu0 %1401
      %1403 = vrot.lane.b32.xlu0 %v789, 90
      %v1404 = vpop.permute.xlu0 %1403
      %1405 = vrot.lane.b32.xlu0 %v790, 90
      %v1406 = vpop.permute.xlu0 %1405
      %1407 = vrot.lane.b32.xlu0 %v791, 90
      %v1408 = vpop.permute.xlu0 %1407
      %1409 = vrot.lane.b32.xlu0 %v792, 90
      %v1410 = vpop.permute.xlu0 %1409
      %1411 = vrot.lane.b32.xlu0 %v794, 90
      %v1412 = vpop.permute.xlu0 %1411
      %1413 = vrot.lane.b32.xlu0 %v795, 90
      %v1414 = vpop.permute.xlu0 %1413
      %1415 = vrot.lane.b32.xlu0 %v796, 90
      %v1416 = vpop.permute.xlu0 %1415
      %1417 = vrot.lane.b32.xlu0 %v797, 90
      %v1418 = vpop.permute.xlu0 %1417
      %1419 = vrot.lane.b32.xlu0 %v798, 90
      %v1420 = vpop.permute.xlu0 %1419
      %1421 = vrot.lane.b32.xlu0 %v799, 90
      %v1422 = vpop.permute.xlu0 %1421
      %1423 = vrot.lane.b32.xlu0 %v800, 90
      %v1424 = vpop.permute.xlu0 %1423
      %1425 = vrot.lane.b32.xlu0 %v802, 90
      %v1426 = vpop.permute.xlu0 %1425
      %1427 = vrot.lane.b32.xlu0 %v803, 90
      %v1428 = vpop.permute.xlu0 %1427
      %1429 = vrot.lane.b32.xlu0 %v804, 90
      %v1430 = vpop.permute.xlu0 %1429
      %1431 = vrot.lane.b32.xlu0 %v805, 90
      %v1432 = vpop.permute.xlu0 %1431
      %1433 = vrot.lane.b32.xlu0 %v806, 90
      %v1434 = vpop.permute.xlu0 %1433
      %1435 = vrot.lane.b32.xlu0 %v807, 90
      %v1436 = vpop.permute.xlu0 %1435
      %1437 = vrot.lane.b32.xlu0 %v808, 90
      %v1438 = vpop.permute.xlu0 %1437
      %1439 = vrot.lane.b32.xlu0 %v810, 90
      %v1440 = vpop.permute.xlu0 %1439
      %1441 = vrot.lane.b32.xlu0 %v811, 90
      %v1442 = vpop.permute.xlu0 %1441
      %1443 = vrot.lane.b32.xlu0 %v812, 90
      %v1444 = vpop.permute.xlu0 %1443
      %1445 = vrot.lane.b32.xlu0 %v813, 90
      %v1446 = vpop.permute.xlu0 %1445
      %1447 = vrot.lane.b32.xlu0 %v814, 90
      %v1448 = vpop.permute.xlu0 %1447
      %1449 = vrot.lane.b32.xlu0 %v815, 90
      %v1450 = vpop.permute.xlu0 %1449
      %1451 = vrot.lane.b32.xlu0 %v816, 90
      %v1452 = vpop.permute.xlu0 %1451
      %v1453 = vsel %vm261, %v1398, %v1400
      %v1454 = vsel %vm261, %v1400, %v1402
      %v1455 = vsel %vm261, %v1402, %v1404
      %v1456 = vsel %vm261, %v1404, %v1406
      %v1457 = vsel %vm261, %v1406, %v1408
      %v1458 = vsel %vm261, %v1408, %v1410
      %v1459 = vsel %vm261, %v1412, %v1414
      %v1460 = vsel %vm261, %v1414, %v1416
      %v1461 = vsel %vm261, %v1416, %v1418
      %v1462 = vsel %vm261, %v1418, %v1420
      %v1463 = vsel %vm261, %v1420, %v1422
      %v1464 = vsel %vm261, %v1422, %v1424
      %v1465 = vsel %vm261, %v1426, %v1428
      %v1466 = vsel %vm261, %v1428, %v1430
      %v1467 = vsel %vm261, %v1430, %v1432
      %v1468 = vsel %vm261, %v1432, %v1434
      %v1469 = vsel %vm261, %v1434, %v1436
      %v1470 = vsel %vm261, %v1436, %v1438
      %v1471 = vsel %vm261, %v1440, %v1442
      %v1472 = vsel %vm261, %v1442, %v1444
      %v1473 = vsel %vm261, %v1444, %v1446
      %v1474 = vsel %vm261, %v1446, %v1448
      %v1475 = vsel %vm261, %v1448, %v1450
      %v1476 = vsel %vm261, %v1450, %v1452
      %s1477 = smul.u32 %s780, 12
      %s1478 = smul.addr %s1477, 8
      %s1479 = scalar_lea.vmem [#allocation6], %s1478
      %v1480 = vld [vmem:[%s1479] sm:$0xff]
      %v1481 = vld [vmem:[%s1479 + $0x8] sm:$0xff]
      %v1482 = vld [vmem:[%s1479 + $0x10] sm:$0xff]
      %v1483 = vld [vmem:[%s1479 + $0x18] sm:$0xff]
      %v1484 = vld [vmem:[%s1479 + $0x20] sm:$0xff]
      %v1485 = vld [vmem:[%s1479 + $0x28] sm:$0xff]
      %v1486 = vld [vmem:[%s1479 + $0x30] sm:$0xff]
      %v1487 = vld [vmem:[%s1479 + $0x38] sm:$0xff]
      %v1488 = vld [vmem:[%s1479 + $0x40] sm:$0xff]
      %v1489 = vld [vmem:[%s1479 + $0x48] sm:$0xff]
      %v1490 = vld [vmem:[%s1479 + $0x50] sm:$0xff]
      %v1491 = vld [vmem:[%s1479 + $0x58] sm:$0xff]
      %1492 = vrot.lane.b32.xlu0 %v785, 19
      %v1493 = vpop.permute.xlu0 %1492
      %1494 = vrot.lane.b32.xlu0 %v786, 19
      %v1495 = vpop.permute.xlu0 %1494
      %1496 = vrot.lane.b32.xlu0 %v787, 19
      %v1497 = vpop.permute.xlu0 %1496
      %1498 = vrot.lane.b32.xlu0 %v788, 19
      %v1499 = vpop.permute.xlu0 %1498
      %1500 = vrot.lane.b32.xlu0 %v789, 19
      %v1501 = vpop.permute.xlu0 %1500
      %1502 = vrot.lane.b32.xlu0 %v790, 19
      %v1503 = vpop.permute.xlu0 %1502
      %1504 = vrot.lane.b32.xlu0 %v791, 19
      %v1505 = vpop.permute.xlu0 %1504
      %1506 = vrot.lane.b32.xlu0 %v793, 19
      %v1507 = vpop.permute.xlu0 %1506
      %1508 = vrot.lane.b32.xlu0 %v794, 19
      %v1509 = vpop.permute.xlu0 %1508
      %1510 = vrot.lane.b32.xlu0 %v795, 19
      %v1511 = vpop.permute.xlu0 %1510
      %1512 = vrot.lane.b32.xlu0 %v796, 19
      %v1513 = vpop.permute.xlu0 %1512
      %1514 = vrot.lane.b32.xlu0 %v797, 19
      %v1515 = vpop.permute.xlu0 %1514
      %1516 = vrot.lane.b32.xlu0 %v798, 19
      %v1517 = vpop.permute.xlu0 %1516
      %1518 = vrot.lane.b32.xlu0 %v799, 19
      %v1519 = vpop.permute.xlu0 %1518
      %1520 = vrot.lane.b32.xlu0 %v801, 19
      %v1521 = vpop.permute.xlu0 %1520
      %1522 = vrot.lane.b32.xlu0 %v802, 19
      %v1523 = vpop.permute.xlu0 %1522
      %1524 = vrot.lane.b32.xlu0 %v803, 19
      %v1525 = vpop.permute.xlu0 %1524
      %1526 = vrot.lane.b32.xlu0 %v804, 19
      %v1527 = vpop.permute.xlu0 %1526
      %1528 = vrot.lane.b32.xlu0 %v805, 19
      %v1529 = vpop.permute.xlu0 %1528
      %1530 = vrot.lane.b32.xlu0 %v806, 19
      %v1531 = vpop.permute.xlu0 %1530
      %1532 = vrot.lane.b32.xlu0 %v807, 19
      %v1533 = vpop.permute.xlu0 %1532
      %1534 = vrot.lane.b32.xlu0 %v809, 19
      %v1535 = vpop.permute.xlu0 %1534
      %1536 = vrot.lane.b32.xlu0 %v810, 19
      %v1537 = vpop.permute.xlu0 %1536
      %1538 = vrot.lane.b32.xlu0 %v811, 19
      %v1539 = vpop.permute.xlu0 %1538
      %1540 = vrot.lane.b32.xlu0 %v812, 19
      %v1541 = vpop.permute.xlu0 %1540
      %1542 = vrot.lane.b32.xlu0 %v813, 19
      %v1543 = vpop.permute.xlu0 %1542
      %1544 = vrot.lane.b32.xlu0 %v814, 19
      %v1545 = vpop.permute.xlu0 %1544
      %1546 = vrot.lane.b32.xlu0 %v815, 19
      %v1547 = vpop.permute.xlu0 %1546
      %1548 = vrot.lane.b32.xlu0 %v901, 19
      %v1549 = vpop.permute.xlu0 %1548
      %1550 = vrot.lane.b32.xlu0 %v902, 19
      %v1551 = vpop.permute.xlu0 %1550
      %1552 = vrot.lane.b32.xlu0 %v903, 19
      %v1553 = vpop.permute.xlu0 %1552
      %1554 = vrot.lane.b32.xlu0 %v904, 19
      %v1555 = vpop.permute.xlu0 %1554
      %1556 = vrot.lane.b32.xlu0 %v905, 19
      %v1557 = vpop.permute.xlu0 %1556
      %1558 = vrot.lane.b32.xlu0 %v906, 19
      %v1559 = vpop.permute.xlu0 %1558
      %1560 = vrot.lane.b32.xlu0 %v858, 19
      %v1561 = vpop.permute.xlu0 %1560
      %1562 = vrot.lane.b32.xlu0 %v907, 19
      %v1563 = vpop.permute.xlu0 %1562
      %1564 = vrot.lane.b32.xlu0 %v908, 19
      %v1565 = vpop.permute.xlu0 %1564
      %1566 = vrot.lane.b32.xlu0 %v909, 19
      %v1567 = vpop.permute.xlu0 %1566
      %1568 = vrot.lane.b32.xlu0 %v910, 19
      %v1569 = vpop.permute.xlu0 %1568
      %1570 = vrot.lane.b32.xlu0 %v911, 19
      %v1571 = vpop.permute.xlu0 %1570
      %1572 = vrot.lane.b32.xlu0 %v912, 19
      %v1573 = vpop.permute.xlu0 %1572
      %1574 = vrot.lane.b32.xlu0 %v872, 19
      %v1575 = vpop.permute.xlu0 %1574
      %1576 = vrot.lane.b32.xlu0 %v913, 19
      %v1577 = vpop.permute.xlu0 %1576
      %1578 = vrot.lane.b32.xlu0 %v914, 19
      %v1579 = vpop.permute.xlu0 %1578
      %1580 = vrot.lane.b32.xlu0 %v915, 19
      %v1581 = vpop.permute.xlu0 %1580
      %1582 = vrot.lane.b32.xlu0 %v916, 19
      %v1583 = vpop.permute.xlu0 %1582
      %1584 = vrot.lane.b32.xlu0 %v917, 19
      %v1585 = vpop.permute.xlu0 %1584
      %1586 = vrot.lane.b32.xlu0 %v918, 19
      %v1587 = vpop.permute.xlu0 %1586
      %1588 = vrot.lane.b32.xlu0 %v886, 19
      %v1589 = vpop.permute.xlu0 %1588
      %1590 = vrot.lane.b32.xlu0 %v919, 19
      %v1591 = vpop.permute.xlu0 %1590
      %1592 = vrot.lane.b32.xlu0 %v920, 19
      %v1593 = vpop.permute.xlu0 %1592
      %1594 = vrot.lane.b32.xlu0 %v921, 19
      %v1595 = vpop.permute.xlu0 %1594
      %1596 = vrot.lane.b32.xlu0 %v922, 19
      %v1597 = vpop.permute.xlu0 %1596
      %1598 = vrot.lane.b32.xlu0 %v923, 19
      %v1599 = vpop.permute.xlu0 %1598
      %1600 = vrot.lane.b32.xlu0 %v924, 19
      %v1601 = vpop.permute.xlu0 %1600
      %1602 = vrot.lane.b32.xlu0 %v900, 19
      %v1603 = vpop.permute.xlu0 %1602
      %1604 = vrot.lane.b32.xlu0 %v981, 19
      %v1605 = vpop.permute.xlu0 %1604
      %1606 = vrot.lane.b32.xlu0 %v982, 19
      %v1607 = vpop.permute.xlu0 %1606
      %1608 = vrot.lane.b32.xlu0 %v983, 19
      %v1609 = vpop.permute.xlu0 %1608
      %1610 = vrot.lane.b32.xlu0 %v984, 19
      %v1611 = vpop.permute.xlu0 %1610
      %1612 = vrot.lane.b32.xlu0 %v985, 19
      %v1613 = vpop.permute.xlu0 %1612
      %1614 = vrot.lane.b32.xlu0 %v986, 19
      %v1615 = vpop.permute.xlu0 %1614
      %1616 = vrot.lane.b32.xlu0 %v938, 19
      %v1617 = vpop.permute.xlu0 %1616
      %1618 = vrot.lane.b32.xlu0 %v987, 19
      %v1619 = vpop.permute.xlu0 %1618
      %1620 = vrot.lane.b32.xlu0 %v988, 19
      %v1621 = vpop.permute.xlu0 %1620
      %1622 = vrot.lane.b32.xlu0 %v989, 19
      %v1623 = vpop.permute.xlu0 %1622
      %1624 = vrot.lane.b32.xlu0 %v990, 19
      %v1625 = vpop.permute.xlu0 %1624
      %1626 = vrot.lane.b32.xlu0 %v991, 19
      %v1627 = vpop.permute.xlu0 %1626
      %1628 = vrot.lane.b32.xlu0 %v992, 19
      %v1629 = vpop.permute.xlu0 %1628
      %1630 = vrot.lane.b32.xlu0 %v952, 19
      %v1631 = vpop.permute.xlu0 %1630
      %1632 = vrot.lane.b32.xlu0 %v993, 19
      %v1633 = vpop.permute.xlu0 %1632
      %1634 = vrot.lane.b32.xlu0 %v994, 19
      %v1635 = vpop.permute.xlu0 %1634
      %1636 = vrot.lane.b32.xlu0 %v995, 19
      %v1637 = vpop.permute.xlu0 %1636
      %1638 = vrot.lane.b32.xlu0 %v996, 19
      %v1639 = vpop.permute.xlu0 %1638
      %1640 = vrot.lane.b32.xlu0 %v997, 19
      %v1641 = vpop.permute.xlu0 %1640
      %1642 = vrot.lane.b32.xlu0 %v998, 19
      %v1643 = vpop.permute.xlu0 %1642
      %1644 = vrot.lane.b32.xlu0 %v966, 19
      %v1645 = vpop.permute.xlu0 %1644
      %1646 = vrot.lane.b32.xlu0 %v999, 19
      %v1647 = vpop.permute.xlu0 %1646
      %1648 = vrot.lane.b32.xlu0 %v1000, 19
      %v1649 = vpop.permute.xlu0 %1648
      %1650 = vrot.lane.b32.xlu0 %v1001, 19
      %v1651 = vpop.permute.xlu0 %1650
      %1652 = vrot.lane.b32.xlu0 %v1002, 19
      %v1653 = vpop.permute.xlu0 %1652
      %1654 = vrot.lane.b32.xlu0 %v1003, 19
      %v1655 = vpop.permute.xlu0 %1654
      %1656 = vrot.lane.b32.xlu0 %v1004, 19
      %v1657 = vpop.permute.xlu0 %1656
      %1658 = vrot.lane.b32.xlu0 %v980, 19
      %v1659 = vpop.permute.xlu0 %1658
      %1660 = vrot.lane.b32.xlu0 %v1061, 19
      %v1661 = vpop.permute.xlu0 %1660
      %1662 = vrot.lane.b32.xlu0 %v1062, 19
      %v1663 = vpop.permute.xlu0 %1662
      %1664 = vrot.lane.b32.xlu0 %v1063, 19
      %v1665 = vpop.permute.xlu0 %1664
      %1666 = vrot.lane.b32.xlu0 %v1064, 19
      %v1667 = vpop.permute.xlu0 %1666
      %1668 = vrot.lane.b32.xlu0 %v1065, 19
      %v1669 = vpop.permute.xlu0 %1668
      %1670 = vrot.lane.b32.xlu0 %v1066, 19
      %v1671 = vpop.permute.xlu0 %1670
      %1672 = vrot.lane.b32.xlu0 %v1018, 19
      %v1673 = vpop.permute.xlu0 %1672
      %1674 = vrot.lane.b32.xlu0 %v1067, 19
      %v1675 = vpop.permute.xlu0 %1674
      %1676 = vrot.lane.b32.xlu0 %v1068, 19
      %v1677 = vpop.permute.xlu0 %1676
      %1678 = vrot.lane.b32.xlu0 %v1069, 19
      %v1679 = vpop.permute.xlu0 %1678
      %1680 = vrot.lane.b32.xlu0 %v1070, 19
      %v1681 = vpop.permute.xlu0 %1680
      %1682 = vrot.lane.b32.xlu0 %v1071, 19
      %v1683 = vpop.permute.xlu0 %1682
      %1684 = vrot.lane.b32.xlu0 %v1072, 19
      %v1685 = vpop.permute.xlu0 %1684
      %1686 = vrot.lane.b32.xlu0 %v1032, 19
      %v1687 = vpop.permute.xlu0 %1686
      %1688 = vrot.lane.b32.xlu0 %v1073, 19
      %v1689 = vpop.permute.xlu0 %1688
      %1690 = vrot.lane.b32.xlu0 %v1074, 19
      %v1691 = vpop.permute.xlu0 %1690
      %1692 = vrot.lane.b32.xlu0 %v1075, 19
      %v1693 = vpop.permute.xlu0 %1692
      %1694 = vrot.lane.b32.xlu0 %v1076, 19
      %v1695 = vpop.permute.xlu0 %1694
      %1696 = vrot.lane.b32.xlu0 %v1077, 19
      %v1697 = vpop.permute.xlu0 %1696
      %1698 = vrot.lane.b32.xlu0 %v1078, 19
      %v1699 = vpop.permute.xlu0 %1698
      %1700 = vrot.lane.b32.xlu0 %v1046, 19
      %v1701 = vpop.permute.xlu0 %1700
      %1702 = vrot.lane.b32.xlu0 %v1079, 19
      %v1703 = vpop.permute.xlu0 %1702
      %1704 = vrot.lane.b32.xlu0 %v1080, 19
      %v1705 = vpop.permute.xlu0 %1704
      %1706 = vrot.lane.b32.xlu0 %v1081, 19
      %v1707 = vpop.permute.xlu0 %1706
      %1708 = vrot.lane.b32.xlu0 %v1082, 19
      %v1709 = vpop.permute.xlu0 %1708
      %1710 = vrot.lane.b32.xlu0 %v1083, 19
      %v1711 = vpop.permute.xlu0 %1710
      %1712 = vrot.lane.b32.xlu0 %v1084, 19
      %v1713 = vpop.permute.xlu0 %1712
      %1714 = vrot.lane.b32.xlu0 %v1060, 19
      %v1715 = vpop.permute.xlu0 %1714
      %1716 = vrot.lane.b32.xlu0 %v1086, 19
      %v1717 = vpop.permute.xlu0 %1716
      %1718 = vrot.lane.b32.xlu0 %v1133, 19
      %v1719 = vpop.permute.xlu0 %1718
      %1720 = vrot.lane.b32.xlu0 %v1134, 19
      %v1721 = vpop.permute.xlu0 %1720
      %1722 = vrot.lane.b32.xlu0 %v1135, 19
      %v1723 = vpop.permute.xlu0 %1722
      %1724 = vrot.lane.b32.xlu0 %v1136, 19
      %v1725 = vpop.permute.xlu0 %1724
      %1726 = vrot.lane.b32.xlu0 %v1137, 19
      %v1727 = vpop.permute.xlu0 %1726
      %1728 = vrot.lane.b32.xlu0 %v1096, 19
      %v1729 = vpop.permute.xlu0 %1728
      %1730 = vrot.lane.b32.xlu0 %v1098, 19
      %v1731 = vpop.permute.xlu0 %1730
      %1732 = vrot.lane.b32.xlu0 %v1138, 19
      %v1733 = vpop.permute.xlu0 %1732
      %1734 = vrot.lane.b32.xlu0 %v1139, 19
      %v1735 = vpop.permute.xlu0 %1734
      %1736 = vrot.lane.b32.xlu0 %v1140, 19
      %v1737 = vpop.permute.xlu0 %1736
      %1738 = vrot.lane.b32.xlu0 %v1141, 19
      %v1739 = vpop.permute.xlu0 %1738
      %1740 = vrot.lane.b32.xlu0 %v1142, 19
      %v1741 = vpop.permute.xlu0 %1740
      %1742 = vrot.lane.b32.xlu0 %v1108, 19
      %v1743 = vpop.permute.xlu0 %1742
      %1744 = vrot.lane.b32.xlu0 %v1110, 19
      %v1745 = vpop.permute.xlu0 %1744
      %1746 = vrot.lane.b32.xlu0 %v1143, 19
      %v1747 = vpop.permute.xlu0 %1746
      %1748 = vrot.lane.b32.xlu0 %v1144, 19
      %v1749 = vpop.permute.xlu0 %1748
      %1750 = vrot.lane.b32.xlu0 %v1145, 19
      %v1751 = vpop.permute.xlu0 %1750
      %1752 = vrot.lane.b32.xlu0 %v1146, 19
      %v1753 = vpop.permute.xlu0 %1752
      %1754 = vrot.lane.b32.xlu0 %v1147, 19
      %v1755 = vpop.permute.xlu0 %1754
      %1756 = vrot.lane.b32.xlu0 %v1120, 19
      %v1757 = vpop.permute.xlu0 %1756
      %1758 = vrot.lane.b32.xlu0 %v1122, 19
      %v1759 = vpop.permute.xlu0 %1758
      %1760 = vrot.lane.b32.xlu0 %v1148, 19
      %v1761 = vpop.permute.xlu0 %1760
      %1762 = vrot.lane.b32.xlu0 %v1149, 19
      %v1763 = vpop.permute.xlu0 %1762
      %1764 = vrot.lane.b32.xlu0 %v1150, 19
      %v1765 = vpop.permute.xlu0 %1764
      %1766 = vrot.lane.b32.xlu0 %v1151, 19
      %v1767 = vpop.permute.xlu0 %1766
      %1768 = vrot.lane.b32.xlu0 %v1152, 19
      %v1769 = vpop.permute.xlu0 %1768
      %1770 = vrot.lane.b32.xlu0 %v1132, 19
      %v1771 = vpop.permute.xlu0 %1770
      %1772 = vrot.lane.b32.xlu0 %v1158, 19
      %v1773 = vpop.permute.xlu0 %1772
      %1774 = vrot.lane.b32.xlu0 %v1213, 19
      %v1775 = vpop.permute.xlu0 %1774
      %1776 = vrot.lane.b32.xlu0 %v1214, 19
      %v1777 = vpop.permute.xlu0 %1776
      %1778 = vrot.lane.b32.xlu0 %v1215, 19
      %v1779 = vpop.permute.xlu0 %1778
      %1780 = vrot.lane.b32.xlu0 %v1216, 19
      %v1781 = vpop.permute.xlu0 %1780
      %1782 = vrot.lane.b32.xlu0 %v1217, 19
      %v1783 = vpop.permute.xlu0 %1782
      %1784 = vrot.lane.b32.xlu0 %v1218, 19
      %v1785 = vpop.permute.xlu0 %1784
      %1786 = vrot.lane.b32.xlu0 %v1172, 19
      %v1787 = vpop.permute.xlu0 %1786
      %1788 = vrot.lane.b32.xlu0 %v1219, 19
      %v1789 = vpop.permute.xlu0 %1788
      %1790 = vrot.lane.b32.xlu0 %v1220, 19
      %v1791 = vpop.permute.xlu0 %1790
      %1792 = vrot.lane.b32.xlu0 %v1221, 19
      %v1793 = vpop.permute.xlu0 %1792
      %1794 = vrot.lane.b32.xlu0 %v1222, 19
      %v1795 = vpop.permute.xlu0 %1794
      %1796 = vrot.lane.b32.xlu0 %v1223, 19
      %v1797 = vpop.permute.xlu0 %1796
      %1798 = vrot.lane.b32.xlu0 %v1224, 19
      %v1799 = vpop.permute.xlu0 %1798
      %1800 = vrot.lane.b32.xlu0 %v1186, 19
      %v1801 = vpop.permute.xlu0 %1800
      %1802 = vrot.lane.b32.xlu0 %v1225, 19
      %v1803 = vpop.permute.xlu0 %1802
      %1804 = vrot.lane.b32.xlu0 %v1226, 19
      %v1805 = vpop.permute.xlu0 %1804
      %1806 = vrot.lane.b32.xlu0 %v1227, 19
      %v1807 = vpop.permute.xlu0 %1806
      %1808 = vrot.lane.b32.xlu0 %v1228, 19
      %v1809 = vpop.permute.xlu0 %1808
      %1810 = vrot.lane.b32.xlu0 %v1229, 19
      %v1811 = vpop.permute.xlu0 %1810
      %1812 = vrot.lane.b32.xlu0 %v1230, 19
      %v1813 = vpop.permute.xlu0 %1812
      %1814 = vrot.lane.b32.xlu0 %v1200, 19
      %v1815 = vpop.permute.xlu0 %1814
      %1816 = vrot.lane.b32.xlu0 %v1231, 19
      %v1817 = vpop.permute.xlu0 %1816
      %1818 = vrot.lane.b32.xlu0 %v1232, 19
      %v1819 = vpop.permute.xlu0 %1818
      %1820 = vrot.lane.b32.xlu0 %v1233, 19
      %v1821 = vpop.permute.xlu0 %1820
      %1822 = vrot.lane.b32.xlu0 %v1234, 19
      %v1823 = vpop.permute.xlu0 %1822
      %1824 = vrot.lane.b32.xlu0 %v1235, 19
      %v1825 = vpop.permute.xlu0 %1824
      %1826 = vrot.lane.b32.xlu0 %v1236, 19
      %v1827 = vpop.permute.xlu0 %1826
      %1828 = vrot.lane.b32.xlu0 %v1238, 19
      %v1829 = vpop.permute.xlu0 %1828
      %1830 = vrot.lane.b32.xlu0 %v1293, 19
      %v1831 = vpop.permute.xlu0 %1830
      %1832 = vrot.lane.b32.xlu0 %v1294, 19
      %v1833 = vpop.permute.xlu0 %1832
      %1834 = vrot.lane.b32.xlu0 %v1295, 19
      %v1835 = vpop.permute.xlu0 %1834
      %1836 = vrot.lane.b32.xlu0 %v1296, 19
      %v1837 = vpop.permute.xlu0 %1836
      %1838 = vrot.lane.b32.xlu0 %v1297, 19
      %v1839 = vpop.permute.xlu0 %1838
      %1840 = vrot.lane.b32.xlu0 %v1298, 19
      %v1841 = vpop.permute.xlu0 %1840
      %1842 = vrot.lane.b32.xlu0 %v1252, 19
      %v1843 = vpop.permute.xlu0 %1842
      %1844 = vrot.lane.b32.xlu0 %v1299, 19
      %v1845 = vpop.permute.xlu0 %1844
      %1846 = vrot.lane.b32.xlu0 %v1300, 19
      %v1847 = vpop.permute.xlu0 %1846
      %1848 = vrot.lane.b32.xlu0 %v1301, 19
      %v1849 = vpop.permute.xlu0 %1848
      %1850 = vrot.lane.b32.xlu0 %v1302, 19
      %v1851 = vpop.permute.xlu0 %1850
      %1852 = vrot.lane.b32.xlu0 %v1303, 19
      %v1853 = vpop.permute.xlu0 %1852
      %1854 = vrot.lane.b32.xlu0 %v1304, 19
      %v1855 = vpop.permute.xlu0 %1854
      %1856 = vrot.lane.b32.xlu0 %v1266, 19
      %v1857 = vpop.permute.xlu0 %1856
      %1858 = vrot.lane.b32.xlu0 %v1305, 19
      %v1859 = vpop.permute.xlu0 %1858
      %1860 = vrot.lane.b32.xlu0 %v1306, 19
      %v1861 = vpop.permute.xlu0 %1860
      %1862 = vrot.lane.b32.xlu0 %v1307, 19
      %v1863 = vpop.permute.xlu0 %1862
      %1864 = vrot.lane.b32.xlu0 %v1308, 19
      %v1865 = vpop.permute.xlu0 %1864
      %1866 = vrot.lane.b32.xlu0 %v1309, 19
      %v1867 = vpop.permute.xlu0 %1866
      %1868 = vrot.lane.b32.xlu0 %v1310, 19
      %v1869 = vpop.permute.xlu0 %1868
      %1870 = vrot.lane.b32.xlu0 %v1280, 19
      %v1871 = vpop.permute.xlu0 %1870
      %1872 = vrot.lane.b32.xlu0 %v1311, 19
      %v1873 = vpop.permute.xlu0 %1872
      %1874 = vrot.lane.b32.xlu0 %v1312, 19
      %v1875 = vpop.permute.xlu0 %1874
      %1876 = vrot.lane.b32.xlu0 %v1313, 19
      %v1877 = vpop.permute.xlu0 %1876
      %1878 = vrot.lane.b32.xlu0 %v1314, 19
      %v1879 = vpop.permute.xlu0 %1878
      %1880 = vrot.lane.b32.xlu0 %v1315, 19
      %v1881 = vpop.permute.xlu0 %1880
      %1882 = vrot.lane.b32.xlu0 %v1316, 19
      %v1883 = vpop.permute.xlu0 %1882
      %1884 = vrot.lane.b32.xlu0 %v1318, 19
      %v1885 = vpop.permute.xlu0 %1884
      %1886 = vrot.lane.b32.xlu0 %v1373, 19
      %v1887 = vpop.permute.xlu0 %1886
      %1888 = vrot.lane.b32.xlu0 %v1374, 19
      %v1889 = vpop.permute.xlu0 %1888
      %1890 = vrot.lane.b32.xlu0 %v1375, 19
      %v1891 = vpop.permute.xlu0 %1890
      %1892 = vrot.lane.b32.xlu0 %v1376, 19
      %v1893 = vpop.permute.xlu0 %1892
      %1894 = vrot.lane.b32.xlu0 %v1377, 19
      %v1895 = vpop.permute.xlu0 %1894
      %1896 = vrot.lane.b32.xlu0 %v1378, 19
      %v1897 = vpop.permute.xlu0 %1896
      %1898 = vrot.lane.b32.xlu0 %v1332, 19
      %v1899 = vpop.permute.xlu0 %1898
      %1900 = vrot.lane.b32.xlu0 %v1379, 19
      %v1901 = vpop.permute.xlu0 %1900
      %1902 = vrot.lane.b32.xlu0 %v1380, 19
      %v1903 = vpop.permute.xlu0 %1902
      %1904 = vrot.lane.b32.xlu0 %v1381, 19
      %v1905 = vpop.permute.xlu0 %1904
      %1906 = vrot.lane.b32.xlu0 %v1382, 19
      %v1907 = vpop.permute.xlu0 %1906
      %1908 = vrot.lane.b32.xlu0 %v1383, 19
      %v1909 = vpop.permute.xlu0 %1908
      %1910 = vrot.lane.b32.xlu0 %v1384, 19
      %v1911 = vpop.permute.xlu0 %1910
      %1912 = vrot.lane.b32.xlu0 %v1346, 19
      %v1913 = vpop.permute.xlu0 %1912
      %1914 = vrot.lane.b32.xlu0 %v1385, 19
      %v1915 = vpop.permute.xlu0 %1914
      %1916 = vrot.lane.b32.xlu0 %v1386, 19
      %v1917 = vpop.permute.xlu0 %1916
      %1918 = vrot.lane.b32.xlu0 %v1387, 19
      %v1919 = vpop.permute.xlu0 %1918
      %1920 = vrot.lane.b32.xlu0 %v1388, 19
      %v1921 = vpop.permute.xlu0 %1920
      %1922 = vrot.lane.b32.xlu0 %v1389, 19
      %v1923 = vpop.permute.xlu0 %1922
      %1924 = vrot.lane.b32.xlu0 %v1390, 19
      %v1925 = vpop.permute.xlu0 %1924
      %1926 = vrot.lane.b32.xlu0 %v1360, 19
      %v1927 = vpop.permute.xlu0 %1926
      %1928 = vrot.lane.b32.xlu0 %v1391, 19
      %v1929 = vpop.permute.xlu0 %1928
      %1930 = vrot.lane.b32.xlu0 %v1392, 19
      %v1931 = vpop.permute.xlu0 %1930
      %1932 = vrot.lane.b32.xlu0 %v1393, 19
      %v1933 = vpop.permute.xlu0 %1932
      %1934 = vrot.lane.b32.xlu0 %v1394, 19
      %v1935 = vpop.permute.xlu0 %1934
      %1936 = vrot.lane.b32.xlu0 %v1395, 19
      %v1937 = vpop.permute.xlu0 %1936
      %1938 = vrot.lane.b32.xlu0 %v1396, 19
      %v1939 = vpop.permute.xlu0 %1938
      %1940 = vrot.lane.b32.xlu0 %v1398, 19
      %v1941 = vpop.permute.xlu0 %1940
      %1942 = vrot.lane.b32.xlu0 %v1453, 19
      %v1943 = vpop.permute.xlu0 %1942
      %1944 = vrot.lane.b32.xlu0 %v1454, 19
      %v1945 = vpop.permute.xlu0 %1944
      %1946 = vrot.lane.b32.xlu0 %v1455, 19
      %v1947 = vpop.permute.xlu0 %1946
      %1948 = vrot.lane.b32.xlu0 %v1456, 19
      %v1949 = vpop.permute.xlu0 %1948
      %1950 = vrot.lane.b32.xlu0 %v1457, 19
      %v1951 = vpop.permute.xlu0 %1950
      %1952 = vrot.lane.b32.xlu0 %v1458, 19
      %v1953 = vpop.permute.xlu0 %1952
      %1954 = vrot.lane.b32.xlu0 %v1412, 19
      %v1955 = vpop.permute.xlu0 %1954
      %1956 = vrot.lane.b32.xlu0 %v1459, 19
      %v1957 = vpop.permute.xlu0 %1956
      %1958 = vrot.lane.b32.xlu0 %v1460, 19
      %v1959 = vpop.permute.xlu0 %1958
      %1960 = vrot.lane.b32.xlu0 %v1461, 19
      %v1961 = vpop.permute.xlu0 %1960
      %1962 = vrot.lane.b32.xlu0 %v1462, 19
      %v1963 = vpop.permute.xlu0 %1962
      %1964 = vrot.lane.b32.xlu0 %v1463, 19
      %v1965 = vpop.permute.xlu0 %1964
      %1966 = vrot.lane.b32.xlu0 %v1464, 19
      %v1967 = vpop.permute.xlu0 %1966
      %1968 = vrot.lane.b32.xlu0 %v1426, 19
      %v1969 = vpop.permute.xlu0 %1968
      %1970 = vrot.lane.b32.xlu0 %v1465, 19
      %v1971 = vpop.permute.xlu0 %1970
      %1972 = vrot.lane.b32.xlu0 %v1466, 19
      %v1973 = vpop.permute.xlu0 %1972
      %1974 = vrot.lane.b32.xlu0 %v1467, 19
      %v1975 = vpop.permute.xlu0 %1974
      %1976 = vrot.lane.b32.xlu0 %v1468, 19
      %v1977 = vpop.permute.xlu0 %1976
      %1978 = vrot.lane.b32.xlu0 %v1469, 19
      %v1979 = vpop.permute.xlu0 %1978
      %1980 = vrot.lane.b32.xlu0 %v1470, 19
      %v1981 = vpop.permute.xlu0 %1980
      %1982 = vrot.lane.b32.xlu0 %v1440, 19
      %v1983 = vpop.permute.xlu0 %1982
      %1984 = vrot.lane.b32.xlu0 %v1471, 19
      %v1985 = vpop.permute.xlu0 %1984
      %1986 = vrot.lane.b32.xlu0 %v1472, 19
      %v1987 = vpop.permute.xlu0 %1986
      %1988 = vrot.lane.b32.xlu0 %v1473, 19
      %v1989 = vpop.permute.xlu0 %1988
      %1990 = vrot.lane.b32.xlu0 %v1474, 19
      %v1991 = vpop.permute.xlu0 %1990
      %1992 = vrot.lane.b32.xlu0 %v1475, 19
      %v1993 = vpop.permute.xlu0 %1992
      %1994 = vrot.lane.b32.xlu0 %v1476, 19
      %v1995 = vpop.permute.xlu0 %1994
      %v1996 = vsel %vm398, %v1493, %v1495
      %v1997 = vsel %vm398, %v1495, %v1497
      %v1998 = vsel %vm398, %v1497, %v1499
      %v1999 = vsel %vm398, %v1499, %v1501
      %v2000 = vsel %vm398, %v1501, %v1503
      %v2001 = vsel %vm398, %v1503, %v1505
      %v2002 = vsel %vm398, %v1507, %v1509
      %v2003 = vsel %vm398, %v1509, %v1511
      %v2004 = vsel %vm398, %v1511, %v1513
      %v2005 = vsel %vm398, %v1513, %v1515
      %v2006 = vsel %vm398, %v1515, %v1517
      %v2007 = vsel %vm398, %v1517, %v1519
      %v2008 = vsel %vm398, %v1521, %v1523
      %v2009 = vsel %vm398, %v1523, %v1525
      %v2010 = vsel %vm398, %v1525, %v1527
      %v2011 = vsel %vm398, %v1527, %v1529
      %v2012 = vsel %vm398, %v1529, %v1531
      %v2013 = vsel %vm398, %v1531, %v1533
      %v2014 = vsel %vm398, %v1535, %v1537
      %v2015 = vsel %vm398, %v1537, %v1539
      %v2016 = vsel %vm398, %v1539, %v1541
      %v2017 = vsel %vm398, %v1541, %v1543
      %v2018 = vsel %vm398, %v1543, %v1545
      %v2019 = vsel %vm398, %v1545, %v1547
      %v2020 = vsel %vm398, %v1549, %v1551
      %v2021 = vsel %vm398, %v1551, %v1553
      %v2022 = vsel %vm398, %v1553, %v1555
      %v2023 = vsel %vm398, %v1555, %v1557
      %v2024 = vsel %vm398, %v1557, %v1559
      %v2025 = vsel %vm398, %v1559, %v1561
      %v2026 = vsel %vm398, %v1563, %v1565
      %v2027 = vsel %vm398, %v1565, %v1567
      %v2028 = vsel %vm398, %v1567, %v1569
      %v2029 = vsel %vm398, %v1569, %v1571
      %v2030 = vsel %vm398, %v1571, %v1573
      %v2031 = vsel %vm398, %v1573, %v1575
      %v2032 = vsel %vm398, %v1577, %v1579
      %v2033 = vsel %vm398, %v1579, %v1581
      %v2034 = vsel %vm398, %v1581, %v1583
      %v2035 = vsel %vm398, %v1583, %v1585
      %v2036 = vsel %vm398, %v1585, %v1587
      %v2037 = vsel %vm398, %v1587, %v1589
      %v2038 = vsel %vm398, %v1591, %v1593
      %v2039 = vsel %vm398, %v1593, %v1595
      %v2040 = vsel %vm398, %v1595, %v1597
      %v2041 = vsel %vm398, %v1597, %v1599
      %v2042 = vsel %vm398, %v1599, %v1601
      %v2043 = vsel %vm398, %v1601, %v1603
      %v2044 = vsel %vm398, %v1605, %v1607
      %v2045 = vsel %vm398, %v1607, %v1609
      %v2046 = vsel %vm398, %v1609, %v1611
      %v2047 = vsel %vm398, %v1611, %v1613
      %v2048 = vsel %vm398, %v1613, %v1615
      %v2049 = vsel %vm398, %v1615, %v1617
      %v2050 = vsel %vm398, %v1619, %v1621
      %v2051 = vsel %vm398, %v1621, %v1623
      %v2052 = vsel %vm398, %v1623, %v1625
      %v2053 = vsel %vm398, %v1625, %v1627
      %v2054 = vsel %vm398, %v1627, %v1629
      %v2055 = vsel %vm398, %v1629, %v1631
      %v2056 = vsel %vm398, %v1633, %v1635
      %v2057 = vsel %vm398, %v1635, %v1637
      %v2058 = vsel %vm398, %v1637, %v1639
      %v2059 = vsel %vm398, %v1639, %v1641
      %v2060 = vsel %vm398, %v1641, %v1643
      %v2061 = vsel %vm398, %v1643, %v1645
      %v2062 = vsel %vm398, %v1647, %v1649
      %v2063 = vsel %vm398, %v1649, %v1651
      %v2064 = vsel %vm398, %v1651, %v1653
      %v2065 = vsel %vm398, %v1653, %v1655
      %v2066 = vsel %vm398, %v1655, %v1657
      %v2067 = vsel %vm398, %v1657, %v1659
      %v2068 = vsel %vm398, %v1661, %v1663
      %v2069 = vsel %vm398, %v1663, %v1665
      %v2070 = vsel %vm398, %v1665, %v1667
      %v2071 = vsel %vm398, %v1667, %v1669
      %v2072 = vsel %vm398, %v1669, %v1671
      %v2073 = vsel %vm398, %v1671, %v1673
      %v2074 = vsel %vm398, %v1675, %v1677
      %v2075 = vsel %vm398, %v1677, %v1679
      %v2076 = vsel %vm398, %v1679, %v1681
      %v2077 = vsel %vm398, %v1681, %v1683
      %v2078 = vsel %vm398, %v1683, %v1685
      %v2079 = vsel %vm398, %v1685, %v1687
      %v2080 = vsel %vm398, %v1689, %v1691
      %v2081 = vsel %vm398, %v1691, %v1693
      %v2082 = vsel %vm398, %v1693, %v1695
      %v2083 = vsel %vm398, %v1695, %v1697
      %v2084 = vsel %vm398, %v1697, %v1699
      %v2085 = vsel %vm398, %v1699, %v1701
      %v2086 = vsel %vm398, %v1703, %v1705
      %v2087 = vsel %vm398, %v1705, %v1707
      %v2088 = vsel %vm398, %v1707, %v1709
      %v2089 = vsel %vm398, %v1709, %v1711
      %v2090 = vsel %vm398, %v1711, %v1713
      %v2091 = vsel %vm398, %v1713, %v1715
      %v2092 = vsel %vm398, %v1717, %v1719
      %v2093 = vsel %vm398, %v1719, %v1721
      %v2094 = vsel %vm398, %v1721, %v1723
      %v2095 = vsel %vm398, %v1723, %v1725
      %v2096 = vsel %vm398, %v1725, %v1727
      %v2097 = vsel %vm398, %v1727, %v1729
      %v2098 = vsel %vm398, %v1731, %v1733
      %v2099 = vsel %vm398, %v1733, %v1735
      %v2100 = vsel %vm398, %v1735, %v1737
      %v2101 = vsel %vm398, %v1737, %v1739
      %v2102 = vsel %vm398, %v1739, %v1741
      %v2103 = vsel %vm398, %v1741, %v1743
      %v2104 = vsel %vm398, %v1745, %v1747
      %v2105 = vsel %vm398, %v1747, %v1749
      %v2106 = vsel %vm398, %v1749, %v1751
      %v2107 = vsel %vm398, %v1751, %v1753
      %v2108 = vsel %vm398, %v1753, %v1755
      %v2109 = vsel %vm398, %v1755, %v1757
      %v2110 = vsel %vm398, %v1759, %v1761
      %v2111 = vsel %vm398, %v1761, %v1763
      %v2112 = vsel %vm398, %v1763, %v1765
      %v2113 = vsel %vm398, %v1765, %v1767
      %v2114 = vsel %vm398, %v1767, %v1769
      %v2115 = vsel %vm398, %v1769, %v1771
      %v2116 = vsel %vm398, %v1773, %v1775
      %v2117 = vsel %vm398, %v1775, %v1777
      %v2118 = vsel %vm398, %v1777, %v1779
      %v2119 = vsel %vm398, %v1779, %v1781
      %v2120 = vsel %vm398, %v1781, %v1783
      %v2121 = vsel %vm398, %v1783, %v1785
      %v2122 = vsel %vm398, %v1787, %v1789
      %v2123 = vsel %vm398, %v1789, %v1791
      %v2124 = vsel %vm398, %v1791, %v1793
      %v2125 = vsel %vm398, %v1793, %v1795
      %v2126 = vsel %vm398, %v1795, %v1797
      %v2127 = vsel %vm398, %v1797, %v1799
      %v2128 = vsel %vm398, %v1801, %v1803
      %v2129 = vsel %vm398, %v1803, %v1805
      %v2130 = vsel %vm398, %v1805, %v1807
      %v2131 = vsel %vm398, %v1807, %v1809
      %v2132 = vsel %vm398, %v1809, %v1811
      %v2133 = vsel %vm398, %v1811, %v1813
      %v2134 = vsel %vm398, %v1815, %v1817
      %v2135 = vsel %vm398, %v1817, %v1819
      %v2136 = vsel %vm398, %v1819, %v1821
      %v2137 = vsel %vm398, %v1821, %v1823
      %v2138 = vsel %vm398, %v1823, %v1825
      %v2139 = vsel %vm398, %v1825, %v1827
      %v2140 = vsel %vm398, %v1829, %v1831
      %v2141 = vsel %vm398, %v1831, %v1833
      %v2142 = vsel %vm398, %v1833, %v1835
      %v2143 = vsel %vm398, %v1835, %v1837
      %v2144 = vsel %vm398, %v1837, %v1839
      %v2145 = vsel %vm398, %v1839, %v1841
      %v2146 = vsel %vm398, %v1843, %v1845
      %v2147 = vsel %vm398, %v1845, %v1847
      %v2148 = vsel %vm398, %v1847, %v1849
      %v2149 = vsel %vm398, %v1849, %v1851
      %v2150 = vsel %vm398, %v1851, %v1853
      %v2151 = vsel %vm398, %v1853, %v1855
      %v2152 = vsel %vm398, %v1857, %v1859
      %v2153 = vsel %vm398, %v1859, %v1861
      %v2154 = vsel %vm398, %v1861, %v1863
      %v2155 = vsel %vm398, %v1863, %v1865
      %v2156 = vsel %vm398, %v1865, %v1867
      %v2157 = vsel %vm398, %v1867, %v1869
      %v2158 = vsel %vm398, %v1871, %v1873
      %v2159 = vsel %vm398, %v1873, %v1875
      %v2160 = vsel %vm398, %v1875, %v1877
      %v2161 = vsel %vm398, %v1877, %v1879
      %v2162 = vsel %vm398, %v1879, %v1881
      %v2163 = vsel %vm398, %v1881, %v1883
      %v2164 = vsel %vm398, %v1885, %v1887
      %v2165 = vsel %vm398, %v1887, %v1889
      %v2166 = vsel %vm398, %v1889, %v1891
      %v2167 = vsel %vm398, %v1891, %v1893
      %v2168 = vsel %vm398, %v1893, %v1895
      %v2169 = vsel %vm398, %v1895, %v1897
      %v2170 = vsel %vm398, %v1899, %v1901
      %v2171 = vsel %vm398, %v1901, %v1903
      %v2172 = vsel %vm398, %v1903, %v1905
      %v2173 = vsel %vm398, %v1905, %v1907
      %v2174 = vsel %vm398, %v1907, %v1909
      %v2175 = vsel %vm398, %v1909, %v1911
      %v2176 = vsel %vm398, %v1913, %v1915
      %v2177 = vsel %vm398, %v1915, %v1917
      %v2178 = vsel %vm398, %v1917, %v1919
      %v2179 = vsel %vm398, %v1919, %v1921
      %v2180 = vsel %vm398, %v1921, %v1923
      %v2181 = vsel %vm398, %v1923, %v1925
      %v2182 = vsel %vm398, %v1927, %v1929
      %v2183 = vsel %vm398, %v1929, %v1931
      %v2184 = vsel %vm398, %v1931, %v1933
      %v2185 = vsel %vm398, %v1933, %v1935
      %v2186 = vsel %vm398, %v1935, %v1937
      %v2187 = vsel %vm398, %v1937, %v1939
      %v2188 = vsel %vm398, %v1941, %v1943
      %v2189 = vsel %vm398, %v1943, %v1945
      %v2190 = vsel %vm398, %v1945, %v1947
      %v2191 = vsel %vm398, %v1947, %v1949
      %v2192 = vsel %vm398, %v1949, %v1951
      %v2193 = vsel %vm398, %v1951, %v1953
      %v2194 = vsel %vm398, %v1955, %v1957
      %v2195 = vsel %vm398, %v1957, %v1959
      %v2196 = vsel %vm398, %v1959, %v1961
      %v2197 = vsel %vm398, %v1961, %v1963
      %v2198 = vsel %vm398, %v1963, %v1965
      %v2199 = vsel %vm398, %v1965, %v1967
      %v2200 = vsel %vm398, %v1969, %v1971
      %v2201 = vsel %vm398, %v1971, %v1973
      %v2202 = vsel %vm398, %v1973, %v1975
      %v2203 = vsel %vm398, %v1975, %v1977
      %v2204 = vsel %vm398, %v1977, %v1979
      %v2205 = vsel %vm398, %v1979, %v1981
      %v2206 = vsel %vm398, %v1983, %v1985
      %v2207 = vsel %vm398, %v1985, %v1987
      %v2208 = vsel %vm398, %v1987, %v1989
      %v2209 = vsel %vm398, %v1989, %v1991
      %v2210 = vsel %vm398, %v1991, %v1993
      %v2211 = vsel %vm398, %v1993, %v1995
      %vm2428 = vcmask 261120
      %v2430 = vsel %vm2428, %v1482, 0
      %v2433 = vsel %vm2428, %v1485, 0
      %v2436 = vsel %vm2428, %v1488, 0
      %v2439 = vsel %vm2428, %v1491, 0
      %2441 = vmatpush.msra.mxu0 %v2086
      %2442 = vmatpush.msra.mxu0 %v2080
      %2443 = vmatpush.msra.mxu0 %v2074
      %2444 = vmatpush.msra.mxu0 %v2068
      %2445 = vmatpush.msra.mxu0 %v2062
      %2446 = vmatpush.msra.mxu0 %v2056
      %2447 = vmatpush.msra.mxu0 %v2050
      %2448 = vmatpush.msra.mxu0 %v2044
      %2449 = vmatpush.msra.mxu0 %v2038
      %2450 = vmatpush.msra.mxu0 %v2032
      %2451 = vmatpush.msra.mxu0 %v2026
      %2452 = vmatpush.msra.mxu0 %v2020
      %2453 = vmatpush.msra.mxu0 %v2014
      %2454 = vmatpush.msra.mxu0 %v2008
      %2455 = vmatpush.msra.mxu0 %v2002
      %2456 = vmatpush.msra.mxu0 %v1996
      %2457 = vmatmul.f32.gmra.mxu0 %v1480
      %v2458 = vpop.f32.mrf.mxu0
      %v2459 = vadd.f32 0.0, %v2458
      %2460 = vmatmul.f32.gmra.mxu0 %v1483
      %v2461 = vpop.f32.mrf.mxu0
      %v2462 = vadd.f32 0.0, %v2461
      %2463 = vmatmul.f32.gmra.mxu0 %v1486
      %v2464 = vpop.f32.mrf.mxu0
      %v2465 = vadd.f32 0.0, %v2464
      %2466 = vmatmul.f32.gmra.mxu0 %v1489
      %v2467 = vpop.f32.mrf.mxu0
      %v2468 = vadd.f32 0.0, %v2467
      %2469 = vdwg.mxu0
      %2470 = vmatpush.msra.mxu0 %v2182
      %2471 = vmatpush.msra.mxu0 %v2176
      %2472 = vmatpush.msra.mxu0 %v2170
      %2473 = vmatpush.msra.mxu0 %v2164
      %2474 = vmatpush.msra.mxu0 %v2158
      %2475 = vmatpush.msra.mxu0 %v2152
      %2476 = vmatpush.msra.mxu0 %v2146
      %2477 = vmatpush.msra.mxu0 %v2140
      %2478 = vmatpush.msra.mxu0 %v2134
      %2479 = vmatpush.msra.mxu0 %v2128
      %2480 = vmatpush.msra.mxu0 %v2122
      %2481 = vmatpush.msra.mxu0 %v2116
      %2482 = vmatpush.msra.mxu0 %v2110
      %2483 = vmatpush.msra.mxu0 %v2104
      %2484 = vmatpush.msra.mxu0 %v2098
      %2485 = vmatpush.msra.mxu0 %v2092
      %2486 = vmatmul.f32.gmra.mxu0 %v1481
      %v2487 = vpop.f32.mrf.mxu0
      %v2488 = vadd.f32 %v2459, %v2487
      %2489 = vmatmul.f32.gmra.mxu0 %v1484
      %v2490 = vpop.f32.mrf.mxu0
      %v2491 = vadd.f32 %v2462, %v2490
      %2492 = vmatmul.f32.gmra.mxu0 %v1487
      %v2493 = vpop.f32.mrf.mxu0
      %v2494 = vadd.f32 %v2465, %v2493
      %2495 = vmatmul.f32.gmra.mxu0 %v1490
      %v2496 = vpop.f32.mrf.mxu0
      %v2497 = vadd.f32 %v2468, %v2496
      %2498 = vdwg.mxu0
      %2499 = vmatpush.msra.mxu0 0.0
      %2500 = vmatpush.msra.mxu0 0.0
      %2501 = vmatpush.msra.mxu0 0.0
      %2502 = vmatpush.msra.mxu0 0.0
      %2503 = vmatpush.msra.mxu0 0.0
      %2504 = vmatpush.msra.mxu0 0.0
      %2505 = vmatpush.msra.mxu0 0.0
      %2506 = vmatpush.msra.mxu0 0.0
      %2507 = vmatpush.msra.mxu0 0.0
      %2508 = vmatpush.msra.mxu0 0.0
      %2509 = vmatpush.msra.mxu0 0.0
      %2510 = vmatpush.msra.mxu0 0.0
      %2511 = vmatpush.msra.mxu0 %v2206
      %2512 = vmatpush.msra.mxu0 %v2200
      %2513 = vmatpush.msra.mxu0 %v2194
      %2514 = vmatpush.msra.mxu0 %v2188
      %2515 = vmatmul.f32.gmra.mxu0 %v2430
      %v2516 = vpop.f32.mrf.mxu0
      %v2517 = vadd.f32 %v2488, %v2516
      %2518 = vmatmul.f32.gmra.mxu0 %v2433
      %v2519 = vpop.f32.mrf.mxu0
      %v2520 = vadd.f32 %v2491, %v2519
      %2521 = vmatmul.f32.gmra.mxu0 %v2436
      %v2522 = vpop.f32.mrf.mxu0
      %v2523 = vadd.f32 %v2494, %v2522
      %2524 = vmatmul.f32.gmra.mxu0 %v2439
      %v2525 = vpop.f32.mrf.mxu0
      %v2526 = vadd.f32 %v2497, %v2525
      %2527 = vdwg.mxu0
      %2528 = vmatpush.msra.mxu0 %v2087
      %2529 = vmatpush.msra.mxu0 %v2081
      %2530 = vmatpush.msra.mxu0 %v2075
      %2531 = vmatpush.msra.mxu0 %v2069
      %2532 = vmatpush.msra.mxu0 %v2063
      %2533 = vmatpush.msra.mxu0 %v2057
      %2534 = vmatpush.msra.mxu0 %v2051
      %2535 = vmatpush.msra.mxu0 %v2045
      %2536 = vmatpush.msra.mxu0 %v2039
      %2537 = vmatpush.msra.mxu0 %v2033
      %2538 = vmatpush.msra.mxu0 %v2027
      %2539 = vmatpush.msra.mxu0 %v2021
      %2540 = vmatpush.msra.mxu0 %v2015
      %2541 = vmatpush.msra.mxu0 %v2009
      %2542 = vmatpush.msra.mxu0 %v2003
      %2543 = vmatpush.msra.mxu0 %v1997
      %2544 = vmatmul.f32.gmra.mxu0 %v1480
      %v2545 = vpop.f32.mrf.mxu0
      %v2546 = vadd.f32 0.0, %v2545
      %2547 = vmatmul.f32.gmra.mxu0 %v1483
      %v2548 = vpop.f32.mrf.mxu0
      %v2549 = vadd.f32 0.0, %v2548
      %2550 = vmatmul.f32.gmra.mxu0 %v1486
      %v2551 = vpop.f32.mrf.mxu0
      %v2552 = vadd.f32 0.0, %v2551
      %2553 = vmatmul.f32.gmra.mxu0 %v1489
      %v2554 = vpop.f32.mrf.mxu0
      %v2555 = vadd.f32 0.0, %v2554
      %2556 = vdwg.mxu0
      %2557 = vmatpush.msra.mxu0 %v2183
      %2558 = vmatpush.msra.mxu0 %v2177
      %2559 = vmatpush.msra.mxu0 %v2171
      %2560 = vmatpush.msra.mxu0 %v2165
      %2561 = vmatpush.msra.mxu0 %v2159
      %2562 = vmatpush.msra.mxu0 %v2153
      %2563 = vmatpush.msra.mxu0 %v2147
      %2564 = vmatpush.msra.mxu0 %v2141
      %2565 = vmatpush.msra.mxu0 %v2135
      %2566 = vmatpush.msra.mxu0 %v2129
      %2567 = vmatpush.msra.mxu0 %v2123
      %2568 = vmatpush.msra.mxu0 %v2117
      %2569 = vmatpush.msra.mxu0 %v2111
      %2570 = vmatpush.msra.mxu0 %v2105
      %2571 = vmatpush.msra.mxu0 %v2099
      %2572 = vmatpush.msra.mxu0 %v2093
      %2573 = vmatmul.f32.gmra.mxu0 %v1481
      %v2574 = vpop.f32.mrf.mxu0
      %v2575 = vadd.f32 %v2546, %v2574
      %2576 = vmatmul.f32.gmra.mxu0 %v1484
      %v2577 = vpop.f32.mrf.mxu0
      %v2578 = vadd.f32 %v2549, %v2577
      %2579 = vmatmul.f32.gmra.mxu0 %v1487
      %v2580 = vpop.f32.mrf.mxu0
      %v2581 = vadd.f32 %v2552, %v2580
      %2582 = vmatmul.f32.gmra.mxu0 %v1490
      %v2583 = vpop.f32.mrf.mxu0
      %v2584 = vadd.f32 %v2555, %v2583
      %2585 = vdwg.mxu0
      %2586 = vmatpush.msra.mxu0 0.0
      %2587 = vmatpush.msra.mxu0 0.0
      %2588 = vmatpush.msra.mxu0 0.0
      %2589 = vmatpush.msra.mxu0 0.0
      %2590 = vmatpush.msra.mxu0 0.0
      %2591 = vmatpush.msra.mxu0 0.0
      %2592 = vmatpush.msra.mxu0 0.0
      %2593 = vmatpush.msra.mxu0 0.0
      %2594 = vmatpush.msra.mxu0 0.0
      %2595 = vmatpush.msra.mxu0 0.0
      %2596 = vmatpush.msra.mxu0 0.0
      %2597 = vmatpush.msra.mxu0 0.0
      %2598 = vmatpush.msra.mxu0 %v2207
      %2599 = vmatpush.msra.mxu0 %v2201
      %2600 = vmatpush.msra.mxu0 %v2195
      %2601 = vmatpush.msra.mxu0 %v2189
      %2602 = vmatmul.f32.gmra.mxu0 %v2430
      %v2603 = vpop.f32.mrf.mxu0
      %v2604 = vadd.f32 %v2575, %v2603
      %2605 = vmatmul.f32.gmra.mxu0 %v2433
      %v2606 = vpop.f32.mrf.mxu0
      %v2607 = vadd.f32 %v2578, %v2606
      %2608 = vmatmul.f32.gmra.mxu0 %v2436
      %v2609 = vpop.f32.mrf.mxu0
      %v2610 = vadd.f32 %v2581, %v2609
      %2611 = vmatmul.f32.gmra.mxu0 %v2439
      %v2612 = vpop.f32.mrf.mxu0
      %v2613 = vadd.f32 %v2584, %v2612
      %2614 = vdwg.mxu0
      %2615 = vmatpush.msra.mxu0 %v2088
      %2616 = vmatpush.msra.mxu0 %v2082
      %2617 = vmatpush.msra.mxu0 %v2076
      %2618 = vmatpush.msra.mxu0 %v2070
      %2619 = vmatpush.msra.mxu0 %v2064
      %2620 = vmatpush.msra.mxu0 %v2058
      %2621 = vmatpush.msra.mxu0 %v2052
      %2622 = vmatpush.msra.mxu0 %v2046
      %2623 = vmatpush.msra.mxu0 %v2040
      %2624 = vmatpush.msra.mxu0 %v2034
      %2625 = vmatpush.msra.mxu0 %v2028
      %2626 = vmatpush.msra.mxu0 %v2022
      %2627 = vmatpush.msra.mxu0 %v2016
      %2628 = vmatpush.msra.mxu0 %v2010
      %2629 = vmatpush.msra.mxu0 %v2004
      %2630 = vmatpush.msra.mxu0 %v1998
      %2631 = vmatmul.f32.gmra.mxu0 %v1480
      %v2632 = vpop.f32.mrf.mxu0
      %v2633 = vadd.f32 0.0, %v2632
      %2634 = vmatmul.f32.gmra.mxu0 %v1483
      %v2635 = vpop.f32.mrf.mxu0
      %v2636 = vadd.f32 0.0, %v2635
      %2637 = vmatmul.f32.gmra.mxu0 %v1486
      %v2638 = vpop.f32.mrf.mxu0
      %v2639 = vadd.f32 0.0, %v2638
      %2640 = vmatmul.f32.gmra.mxu0 %v1489
      %v2641 = vpop.f32.mrf.mxu0
      %v2642 = vadd.f32 0.0, %v2641
      %2643 = vdwg.mxu0
      %2644 = vmatpush.msra.mxu0 %v2184
      %2645 = vmatpush.msra.mxu0 %v2178
      %2646 = vmatpush.msra.mxu0 %v2172
      %2647 = vmatpush.msra.mxu0 %v2166
      %2648 = vmatpush.msra.mxu0 %v2160
      %2649 = vmatpush.msra.mxu0 %v2154
      %2650 = vmatpush.msra.mxu0 %v2148
      %2651 = vmatpush.msra.mxu0 %v2142
      %2652 = vmatpush.msra.mxu0 %v2136
      %2653 = vmatpush.msra.mxu0 %v2130
      %2654 = vmatpush.msra.mxu0 %v2124
      %2655 = vmatpush.msra.mxu0 %v2118
      %2656 = vmatpush.msra.mxu0 %v2112
      %2657 = vmatpush.msra.mxu0 %v2106
      %2658 = vmatpush.msra.mxu0 %v2100
      %2659 = vmatpush.msra.mxu0 %v2094
      %2660 = vmatmul.f32.gmra.mxu0 %v1481
      %v2661 = vpop.f32.mrf.mxu0
      %v2662 = vadd.f32 %v2633, %v2661
      %2663 = vmatmul.f32.gmra.mxu0 %v1484
      %v2664 = vpop.f32.mrf.mxu0
      %v2665 = vadd.f32 %v2636, %v2664
      %2666 = vmatmul.f32.gmra.mxu0 %v1487
      %v2667 = vpop.f32.mrf.mxu0
      %v2668 = vadd.f32 %v2639, %v2667
      %2669 = vmatmul.f32.gmra.mxu0 %v1490
      %v2670 = vpop.f32.mrf.mxu0
      %v2671 = vadd.f32 %v2642, %v2670
      %2672 = vdwg.mxu0
      %2673 = vmatpush.msra.mxu0 0.0
      %2674 = vmatpush.msra.mxu0 0.0
      %2675 = vmatpush.msra.mxu0 0.0
      %2676 = vmatpush.msra.mxu0 0.0
      %2677 = vmatpush.msra.mxu0 0.0
      %2678 = vmatpush.msra.mxu0 0.0
      %2679 = vmatpush.msra.mxu0 0.0
      %2680 = vmatpush.msra.mxu0 0.0
      %2681 = vmatpush.msra.mxu0 0.0
      %2682 = vmatpush.msra.mxu0 0.0
      %2683 = vmatpush.msra.mxu0 0.0
      %2684 = vmatpush.msra.mxu0 0.0
      %2685 = vmatpush.msra.mxu0 %v2208
      %2686 = vmatpush.msra.mxu0 %v2202
      %2687 = vmatpush.msra.mxu0 %v2196
      %2688 = vmatpush.msra.mxu0 %v2190
      %2689 = vmatmul.f32.gmra.mxu0 %v2430
      %v2690 = vpop.f32.mrf.mxu0
      %v2691 = vadd.f32 %v2662, %v2690
      %2692 = vmatmul.f32.gmra.mxu0 %v2433
      %v2693 = vpop.f32.mrf.mxu0
      %v2694 = vadd.f32 %v2665, %v2693
      %2695 = vmatmul.f32.gmra.mxu0 %v2436
      %v2696 = vpop.f32.mrf.mxu0
      %v2697 = vadd.f32 %v2668, %v2696
      %2698 = vmatmul.f32.gmra.mxu0 %v2439
      %v2699 = vpop.f32.mrf.mxu0
      %v2700 = vadd.f32 %v2671, %v2699
      %2701 = vdwg.mxu0
      %2702 = vmatpush.msra.mxu0 %v2089
      %2703 = vmatpush.msra.mxu0 %v2083
      %2704 = vmatpush.msra.mxu0 %v2077
      %2705 = vmatpush.msra.mxu0 %v2071
      %2706 = vmatpush.msra.mxu0 %v2065
      %2707 = vmatpush.msra.mxu0 %v2059
      %2708 = vmatpush.msra.mxu0 %v2053
      %2709 = vmatpush.msra.mxu0 %v2047
      %2710 = vmatpush.msra.mxu0 %v2041
      %2711 = vmatpush.msra.mxu0 %v2035
      %2712 = vmatpush.msra.mxu0 %v2029
      %2713 = vmatpush.msra.mxu0 %v2023
      %2714 = vmatpush.msra.mxu0 %v2017
      %2715 = vmatpush.msra.mxu0 %v2011
      %2716 = vmatpush.msra.mxu0 %v2005
      %2717 = vmatpush.msra.mxu0 %v1999
      %2718 = vmatmul.f32.gmra.mxu0 %v1480
      %v2719 = vpop.f32.mrf.mxu0
      %v2720 = vadd.f32 0.0, %v2719
      %2721 = vmatmul.f32.gmra.mxu0 %v1483
      %v2722 = vpop.f32.mrf.mxu0
      %v2723 = vadd.f32 0.0, %v2722
      %2724 = vmatmul.f32.gmra.mxu0 %v1486
      %v2725 = vpop.f32.mrf.mxu0
      %v2726 = vadd.f32 0.0, %v2725
      %2727 = vmatmul.f32.gmra.mxu0 %v1489
      %v2728 = vpop.f32.mrf.mxu0
      %v2729 = vadd.f32 0.0, %v2728
      %2730 = vdwg.mxu0
      %2731 = vmatpush.msra.mxu0 %v2185
      %2732 = vmatpush.msra.mxu0 %v2179
      %2733 = vmatpush.msra.mxu0 %v2173
      %2734 = vmatpush.msra.mxu0 %v2167
      %2735 = vmatpush.msra.mxu0 %v2161
      %2736 = vmatpush.msra.mxu0 %v2155
      %2737 = vmatpush.msra.mxu0 %v2149
      %2738 = vmatpush.msra.mxu0 %v2143
      %2739 = vmatpush.msra.mxu0 %v2137
      %2740 = vmatpush.msra.mxu0 %v2131
      %2741 = vmatpush.msra.mxu0 %v2125
      %2742 = vmatpush.msra.mxu0 %v2119
      %2743 = vmatpush.msra.mxu0 %v2113
      %2744 = vmatpush.msra.mxu0 %v2107
      %2745 = vmatpush.msra.mxu0 %v2101
      %2746 = vmatpush.msra.mxu0 %v2095
      %2747 = vmatmul.f32.gmra.mxu0 %v1481
      %v2748 = vpop.f32.mrf.mxu0
      %v2749 = vadd.f32 %v2720, %v2748
      %2750 = vmatmul.f32.gmra.mxu0 %v1484
      %v2751 = vpop.f32.mrf.mxu0
      %v2752 = vadd.f32 %v2723, %v2751
      %2753 = vmatmul.f32.gmra.mxu0 %v1487
      %v2754 = vpop.f32.mrf.mxu0
      %v2755 = vadd.f32 %v2726, %v2754
      %2756 = vmatmul.f32.gmra.mxu0 %v1490
      %v2757 = vpop.f32.mrf.mxu0
      %v2758 = vadd.f32 %v2729, %v2757
      %2759 = vdwg.mxu0
      %2760 = vmatpush.msra.mxu0 0.0
      %2761 = vmatpush.msra.mxu0 0.0
      %2762 = vmatpush.msra.mxu0 0.0
      %2763 = vmatpush.msra.mxu0 0.0
      %2764 = vmatpush.msra.mxu0 0.0
      %2765 = vmatpush.msra.mxu0 0.0
      %2766 = vmatpush.msra.mxu0 0.0
      %2767 = vmatpush.msra.mxu0 0.0
      %2768 = vmatpush.msra.mxu0 0.0
      %2769 = vmatpush.msra.mxu0 0.0
      %2770 = vmatpush.msra.mxu0 0.0
      %2771 = vmatpush.msra.mxu0 0.0
      %2772 = vmatpush.msra.mxu0 %v2209
      %2773 = vmatpush.msra.mxu0 %v2203
      %2774 = vmatpush.msra.mxu0 %v2197
      %2775 = vmatpush.msra.mxu0 %v2191
      %2776 = vmatmul.f32.gmra.mxu0 %v2430
      %v2777 = vpop.f32.mrf.mxu0
      %v2778 = vadd.f32 %v2749, %v2777
      %2779 = vmatmul.f32.gmra.mxu0 %v2433
      %v2780 = vpop.f32.mrf.mxu0
      %v2781 = vadd.f32 %v2752, %v2780
      %2782 = vmatmul.f32.gmra.mxu0 %v2436
      %v2783 = vpop.f32.mrf.mxu0
      %v2784 = vadd.f32 %v2755, %v2783
      %2785 = vmatmul.f32.gmra.mxu0 %v2439
      %v2786 = vpop.f32.mrf.mxu0
      %v2787 = vadd.f32 %v2758, %v2786
      %2788 = vdwg.mxu0
      %2789 = vmatpush.msra.mxu0 %v2090
      %2790 = vmatpush.msra.mxu0 %v2084
      %2791 = vmatpush.msra.mxu0 %v2078
      %2792 = vmatpush.msra.mxu0 %v2072
      %2793 = vmatpush.msra.mxu0 %v2066
      %2794 = vmatpush.msra.mxu0 %v2060
      %2795 = vmatpush.msra.mxu0 %v2054
      %2796 = vmatpush.msra.mxu0 %v2048
      %2797 = vmatpush.msra.mxu0 %v2042
      %2798 = vmatpush.msra.mxu0 %v2036
      %2799 = vmatpush.msra.mxu0 %v2030
      %2800 = vmatpush.msra.mxu0 %v2024
      %2801 = vmatpush.msra.mxu0 %v2018
      %2802 = vmatpush.msra.mxu0 %v2012
      %2803 = vmatpush.msra.mxu0 %v2006
      %2804 = vmatpush.msra.mxu0 %v2000
      %2805 = vmatmul.f32.gmra.mxu0 %v1480
      %v2806 = vpop.f32.mrf.mxu0
      %v2807 = vadd.f32 0.0, %v2806
      %2808 = vmatmul.f32.gmra.mxu0 %v1483
      %v2809 = vpop.f32.mrf.mxu0
      %v2810 = vadd.f32 0.0, %v2809
      %2811 = vmatmul.f32.gmra.mxu0 %v1486
      %v2812 = vpop.f32.mrf.mxu0
      %v2813 = vadd.f32 0.0, %v2812
      %2814 = vmatmul.f32.gmra.mxu0 %v1489
      %v2815 = vpop.f32.mrf.mxu0
      %v2816 = vadd.f32 0.0, %v2815
      %2817 = vdwg.mxu0
      %2818 = vmatpush.msra.mxu0 %v2186
      %2819 = vmatpush.msra.mxu0 %v2180
      %2820 = vmatpush.msra.mxu0 %v2174
      %2821 = vmatpush.msra.mxu0 %v2168
      %2822 = vmatpush.msra.mxu0 %v2162
      %2823 = vmatpush.msra.mxu0 %v2156
      %2824 = vmatpush.msra.mxu0 %v2150
      %2825 = vmatpush.msra.mxu0 %v2144
      %2826 = vmatpush.msra.mxu0 %v2138
      %2827 = vmatpush.msra.mxu0 %v2132
      %2828 = vmatpush.msra.mxu0 %v2126
      %2829 = vmatpush.msra.mxu0 %v2120
      %2830 = vmatpush.msra.mxu0 %v2114
      %2831 = vmatpush.msra.mxu0 %v2108
      %2832 = vmatpush.msra.mxu0 %v2102
      %2833 = vmatpush.msra.mxu0 %v2096
      %2834 = vmatmul.f32.gmra.mxu0 %v1481
      %v2835 = vpop.f32.mrf.mxu0
      %v2836 = vadd.f32 %v2807, %v2835
      %2837 = vmatmul.f32.gmra.mxu0 %v1484
      %v2838 = vpop.f32.mrf.mxu0
      %v2839 = vadd.f32 %v2810, %v2838
      %2840 = vmatmul.f32.gmra.mxu0 %v1487
      %v2841 = vpop.f32.mrf.mxu0
      %v2842 = vadd.f32 %v2813, %v2841
      %2843 = vmatmul.f32.gmra.mxu0 %v1490
      %v2844 = vpop.f32.mrf.mxu0
      %v2845 = vadd.f32 %v2816, %v2844
      %2846 = vdwg.mxu0
      %2847 = vmatpush.msra.mxu0 0.0
      %2848 = vmatpush.msra.mxu0 0.0
      %2849 = vmatpush.msra.mxu0 0.0
      %2850 = vmatpush.msra.mxu0 0.0
      %2851 = vmatpush.msra.mxu0 0.0
      %2852 = vmatpush.msra.mxu0 0.0
      %2853 = vmatpush.msra.mxu0 0.0
      %2854 = vmatpush.msra.mxu0 0.0
      %2855 = vmatpush.msra.mxu0 0.0
      %2856 = vmatpush.msra.mxu0 0.0
      %2857 = vmatpush.msra.mxu0 0.0
      %2858 = vmatpush.msra.mxu0 0.0
      %2859 = vmatpush.msra.mxu0 %v2210
      %2860 = vmatpush.msra.mxu0 %v2204
      %2861 = vmatpush.msra.mxu0 %v2198
      %2862 = vmatpush.msra.mxu0 %v2192
      %2863 = vmatmul.f32.gmra.mxu0 %v2430
      %v2864 = vpop.f32.mrf.mxu0
      %v2865 = vadd.f32 %v2836, %v2864
      %2866 = vmatmul.f32.gmra.mxu0 %v2433
      %v2867 = vpop.f32.mrf.mxu0
      %v2868 = vadd.f32 %v2839, %v2867
      %2869 = vmatmul.f32.gmra.mxu0 %v2436
      %v2870 = vpop.f32.mrf.mxu0
      %v2871 = vadd.f32 %v2842, %v2870
      %2872 = vmatmul.f32.gmra.mxu0 %v2439
      %v2873 = vpop.f32.mrf.mxu0
      %v2874 = vadd.f32 %v2845, %v2873
      %2875 = vdwg.mxu0
      %2876 = vmatpush.msra.mxu0 %v2091
      %2877 = vmatpush.msra.mxu0 %v2085
      %2878 = vmatpush.msra.mxu0 %v2079
      %2879 = vmatpush.msra.mxu0 %v2073
      %2880 = vmatpush.msra.mxu0 %v2067
      %2881 = vmatpush.msra.mxu0 %v2061
      %2882 = vmatpush.msra.mxu0 %v2055
      %2883 = vmatpush.msra.mxu0 %v2049
      %2884 = vmatpush.msra.mxu0 %v2043
      %2885 = vmatpush.msra.mxu0 %v2037
      %2886 = vmatpush.msra.mxu0 %v2031
      %2887 = vmatpush.msra.mxu0 %v2025
      %2888 = vmatpush.msra.mxu0 %v2019
      %2889 = vmatpush.msra.mxu0 %v2013
      %2890 = vmatpush.msra.mxu0 %v2007
      %2891 = vmatpush.msra.mxu0 %v2001
      %2892 = vmatmul.f32.gmra.mxu0 %v1480
      %v2893 = vpop.f32.mrf.mxu0
      %v2894 = vadd.f32 0.0, %v2893
      %2895 = vmatmul.f32.gmra.mxu0 %v1483
      %v2896 = vpop.f32.mrf.mxu0
      %v2897 = vadd.f32 0.0, %v2896
      %2898 = vmatmul.f32.gmra.mxu0 %v1486
      %v2899 = vpop.f32.mrf.mxu0
      %v2900 = vadd.f32 0.0, %v2899
      %2901 = vmatmul.f32.gmra.mxu0 %v1489
      %v2902 = vpop.f32.mrf.mxu0
      %v2903 = vadd.f32 0.0, %v2902
      %2904 = vdwg.mxu0
      %2905 = vmatpush.msra.mxu0 %v2187
      %2906 = vmatpush.msra.mxu0 %v2181
      %2907 = vmatpush.msra.mxu0 %v2175
      %2908 = vmatpush.msra.mxu0 %v2169
      %2909 = vmatpush.msra.mxu0 %v2163
      %2910 = vmatpush.msra.mxu0 %v2157
      %2911 = vmatpush.msra.mxu0 %v2151
      %2912 = vmatpush.msra.mxu0 %v2145
      %2913 = vmatpush.msra.mxu0 %v2139
      %2914 = vmatpush.msra.mxu0 %v2133
      %2915 = vmatpush.msra.mxu0 %v2127
      %2916 = vmatpush.msra.mxu0 %v2121
      %2917 = vmatpush.msra.mxu0 %v2115
      %2918 = vmatpush.msra.mxu0 %v2109
      %2919 = vmatpush.msra.mxu0 %v2103
      %2920 = vmatpush.msra.mxu0 %v2097
      %2921 = vmatmul.f32.gmra.mxu0 %v1481
      %v2922 = vpop.f32.mrf.mxu0
      %v2923 = vadd.f32 %v2894, %v2922
      %2924 = vmatmul.f32.gmra.mxu0 %v1484
      %v2925 = vpop.f32.mrf.mxu0
      %v2926 = vadd.f32 %v2897, %v2925
      %2927 = vmatmul.f32.gmra.mxu0 %v1487
      %v2928 = vpop.f32.mrf.mxu0
      %v2929 = vadd.f32 %v2900, %v2928
      %2930 = vmatmul.f32.gmra.mxu0 %v1490
      %v2931 = vpop.f32.mrf.mxu0
      %v2932 = vadd.f32 %v2903, %v2931
      %2933 = vdwg.mxu0
      %2934 = vmatpush.msra.mxu0 0.0
      %2935 = vmatpush.msra.mxu0 0.0
      %2936 = vmatpush.msra.mxu0 0.0
      %2937 = vmatpush.msra.mxu0 0.0
      %2938 = vmatpush.msra.mxu0 0.0
      %2939 = vmatpush.msra.mxu0 0.0
      %2940 = vmatpush.msra.mxu0 0.0
      %2941 = vmatpush.msra.mxu0 0.0
      %2942 = vmatpush.msra.mxu0 0.0
      %2943 = vmatpush.msra.mxu0 0.0
      %2944 = vmatpush.msra.mxu0 0.0
      %2945 = vmatpush.msra.mxu0 0.0
      %2946 = vmatpush.msra.mxu0 %v2211
      %2947 = vmatpush.msra.mxu0 %v2205
      %2948 = vmatpush.msra.mxu0 %v2199
      %2949 = vmatpush.msra.mxu0 %v2193
      %2950 = vmatmul.f32.gmra.mxu0 %v2430
      %v2951 = vpop.f32.mrf.mxu0
      %v2952 = vadd.f32 %v2923, %v2951
      %2953 = vmatmul.f32.gmra.mxu0 %v2433
      %v2954 = vpop.f32.mrf.mxu0
      %v2955 = vadd.f32 %v2926, %v2954
      %2956 = vmatmul.f32.gmra.mxu0 %v2436
      %v2957 = vpop.f32.mrf.mxu0
      %v2958 = vadd.f32 %v2929, %v2957
      %2959 = vmatmul.f32.gmra.mxu0 %v2439
      %v2960 = vpop.f32.mrf.mxu0
      %v2961 = vadd.f32 %v2932, %v2960
      %2962 = vdwg.mxu0
      %v2963 = vmul.f32 %v2517, %v719
      %v2964 = vmul.f32 %v2604, %v720
      %v2965 = vmul.f32 %v2691, %v721
      %v2966 = vmul.f32 %v2778, %v722
      %v2967 = vmul.f32 %v2865, %v723
      %v2968 = vmul.f32 %v2952, %v724
      %v2969 = vmul.f32 %v2520, %v719
      %v2970 = vmul.f32 %v2607, %v720
      %v2971 = vmul.f32 %v2694, %v721
      %v2972 = vmul.f32 %v2781, %v722
      %v2973 = vmul.f32 %v2868, %v723
      %v2974 = vmul.f32 %v2955, %v724
      %v2975 = vmul.f32 %v2523, %v719
      %v2976 = vmul.f32 %v2610, %v720
      %v2977 = vmul.f32 %v2697, %v721
      %v2978 = vmul.f32 %v2784, %v722
      %v2979 = vmul.f32 %v2871, %v723
      %v2980 = vmul.f32 %v2958, %v724
      %v2981 = vmul.f32 %v2526, %v719
      %v2982 = vmul.f32 %v2613, %v720
      %v2983 = vmul.f32 %v2700, %v721
      %v2984 = vmul.f32 %v2787, %v722
      %v2985 = vmul.f32 %v2874, %v723
      %v2986 = vmul.f32 %v2961, %v724
      %v2987 = vadd.f32 %v2963, %v2964
      %v2988 = vadd.f32 %v2987, %v2965
      %v2989 = vadd.f32 %v2988, %v2966
      %v2990 = vadd.f32 %v2989, %v2967
      %v2991 = vadd.f32 %v2990, %v2968
      %2992 = vadd.xlane.f32.xlu0 %v2991
      %v2993 = vpop.xlane.xlu0 %2992
      %v2994 = vadd.f32 %v2969, %v2970
      %v2995 = vadd.f32 %v2994, %v2971
      %v2996 = vadd.f32 %v2995, %v2972
      %v2997 = vadd.f32 %v2996, %v2973
      %v2998 = vadd.f32 %v2997, %v2974
      %2999 = vadd.xlane.f32.xlu0 %v2998
      %v3000 = vpop.xlane.xlu0 %2999
      %v3001 = vadd.f32 %v2975, %v2976
      %v3002 = vadd.f32 %v3001, %v2977
      %v3003 = vadd.f32 %v3002, %v2978
      %v3004 = vadd.f32 %v3003, %v2979
      %v3005 = vadd.f32 %v3004, %v2980
      %3006 = vadd.xlane.f32.xlu0 %v3005
      %v3007 = vpop.xlane.xlu0 %3006
      %v3008 = vadd.f32 %v2981, %v2982
      %v3009 = vadd.f32 %v3008, %v2983
      %v3010 = vadd.f32 %v3009, %v2984
      %v3011 = vadd.f32 %v3010, %v2985
      %v3012 = vadd.f32 %v3011, %v2986
      %3013 = vadd.xlane.f32.xlu0 %v3012
      %v3014 = vpop.xlane.xlu0 %3013
      %v3015 = vmul.f32 %v2963, %v2517
      %v3016 = vmul.f32 %v2964, %v2604
      %v3017 = vmul.f32 %v2965, %v2691
      %v3018 = vmul.f32 %v2966, %v2778
      %v3019 = vmul.f32 %v2967, %v2865
      %v3020 = vmul.f32 %v2968, %v2952
      %v3021 = vmul.f32 %v2969, %v2520
      %v3022 = vmul.f32 %v2970, %v2607
      %v3023 = vmul.f32 %v2971, %v2694
      %v3024 = vmul.f32 %v2972, %v2781
      %v3025 = vmul.f32 %v2973, %v2868
      %v3026 = vmul.f32 %v2974, %v2955
      %v3027 = vmul.f32 %v2975, %v2523
      %v3028 = vmul.f32 %v2976, %v2610
      %v3029 = vmul.f32 %v2977, %v2697
      %v3030 = vmul.f32 %v2978, %v2784
      %v3031 = vmul.f32 %v2979, %v2871
      %v3032 = vmul.f32 %v2980, %v2958
      %v3033 = vmul.f32 %v2981, %v2526
      %v3034 = vmul.f32 %v2982, %v2613
      %v3035 = vmul.f32 %v2983, %v2700
      %v3036 = vmul.f32 %v2984, %v2787
      %v3037 = vmul.f32 %v2985, %v2874
      %v3038 = vmul.f32 %v2986, %v2961
      %v3039 = vadd.f32 %v3015, %v3016
      %v3040 = vadd.f32 %v3039, %v3017
      %v3041 = vadd.f32 %v3040, %v3018
      %v3042 = vadd.f32 %v3041, %v3019
      %v3043 = vadd.f32 %v3042, %v3020
      %3044 = vadd.xlane.f32.xlu0 %v3043
      %v3045 = vpop.xlane.xlu0 %3044
      %v3046 = vadd.f32 %v3021, %v3022
      %v3047 = vadd.f32 %v3046, %v3023
      %v3048 = vadd.f32 %v3047, %v3024
      %v3049 = vadd.f32 %v3048, %v3025
      %v3050 = vadd.f32 %v3049, %v3026
      %3051 = vadd.xlane.f32.xlu0 %v3050
      %v3052 = vpop.xlane.xlu0 %3051
      %v3053 = vadd.f32 %v3027, %v3028
      %v3054 = vadd.f32 %v3053, %v3029
      %v3055 = vadd.f32 %v3054, %v3030
      %v3056 = vadd.f32 %v3055, %v3031
      %v3057 = vadd.f32 %v3056, %v3032
      %3058 = vadd.xlane.f32.xlu0 %v3057
      %v3059 = vpop.xlane.xlu0 %3058
      %v3060 = vadd.f32 %v3033, %v3034
      %v3061 = vadd.f32 %v3060, %v3035
      %v3062 = vadd.f32 %v3061, %v3036
      %v3063 = vadd.f32 %v3062, %v3037
      %v3064 = vadd.f32 %v3063, %v3038
      %3065 = vadd.xlane.f32.xlu0 %v3064
      %v3066 = vpop.xlane.xlu0 %3065
      %v3067 = vrcp.pop 512.0
      %v3068 = vmul.f32 512.0, %v3067
      %v3069 = vsub.f32 1.0, %v3068
      %v3070 = vmul.f32 %v3067, %v3069
      %v3071 = vadd.f32 %v3067, %v3070
      %vm3072 = vweird.f32 %v3067
      %v3073 = vsel %vm3072, %v3067, %v3071
      %v3074 = vmul.f32 %v2993, %v3073
      %v3075 = vmul.f32 %v3000, %v3073
      %v3076 = vmul.f32 %v3007, %v3073
      %v3077 = vmul.f32 %v3014, %v3073
      %v3078 = vmul.f32 %v3074, 512.0
      %v3079 = vmul.f32 %v3075, 512.0
      %v3080 = vmul.f32 %v3076, 512.0
      %v3081 = vmul.f32 %v3077, 512.0
      %v3082 = vmul.f32 %v3078, %v3074
      %v3083 = vmul.f32 %v3079, %v3075
      %v3084 = vmul.f32 %v3080, %v3076
      %v3085 = vmul.f32 %v3081, %v3077
      %v3086 = vsub.f32 %v3045, %v3082
      %v3087 = vsub.f32 %v3052, %v3083
      %v3088 = vsub.f32 %v3059, %v3084
      %v3089 = vsub.f32 %v3066, %v3085
      %v3090 = vrcp.pop 511.0
      %v3091 = vmul.f32 511.0, %v3090
      %v3092 = vsub.f32 1.0, %v3091
      %v3093 = vmul.f32 %v3090, %v3092
      %v3094 = vadd.f32 %v3090, %v3093
      %vm3095 = vweird.f32 %v3090
      %v3096 = vsel %vm3095, %v3090, %v3094
      %v3097 = vmul.f32 %v3086, %v3096
      %v3098 = vmul.f32 %v3087, %v3096
      %v3099 = vmul.f32 %v3088, %v3096
      %v3100 = vmul.f32 %v3089, %v3096
      %v3101 = vmax.f32 %v3097, 0.0
      %v3102 = vmax.f32 %v3098, 0.0
      %v3103 = vmax.f32 %v3099, 0.0
      %v3104 = vmax.f32 %v3100, 0.0
      %s3105 = smul.u32 %s780, 32
      %s3106 = scalar_lea.vmem %s4, %s3105
      %v3107 = vld [vmem:[%s3106] sm:$0xff]
      %v3108 = vld [vmem:[%s3106 + $0x8] sm:$0xff]
      %v3109 = vld [vmem:[%s3106 + $0x10] sm:$0xff]
      %v3110 = vld [vmem:[%s3106 + $0x18] sm:$0xff]
      %v3111 = vrsqrt.pop %v3101
      %v3112 = vmul.f32 %v3111, %v3101
      %v3113 = vmul.f32 %v3112, %v3111
      %v3114 = vmul.f32 0.5, %v3113
      %v3115 = vsub.f32 1.5, %v3114
      %v3116 = vmul.f32 %v3111, %v3115
      %v3117 = vmul.f32 %v3101, %v3116
      %vm3118 = vcmp.eq.f32.partialorder %v3101, inf
      %v3119 = vsel %vm3118, %v3101, %v3117
      %vm3120 = vcmp.eq.f32.partialorder %v3101, 0.0
      %v3121 = vand.u32 %v3101, 2147483648
      %v3122 = vsel %vm3120, %v3121, %v3119
      %v3123 = vrsqrt.pop %v3102
      %v3124 = vmul.f32 %v3123, %v3102
      %v3125 = vmul.f32 %v3124, %v3123
      %v3126 = vmul.f32 0.5, %v3125
      %v3127 = vsub.f32 1.5, %v3126
      %v3128 = vmul.f32 %v3123, %v3127
      %v3129 = vmul.f32 %v3102, %v3128
      %vm3130 = vcmp.eq.f32.partialorder %v3102, inf
      %v3131 = vsel %vm3130, %v3102, %v3129
      %vm3132 = vcmp.eq.f32.partialorder %v3102, 0.0
      %v3133 = vand.u32 %v3102, 2147483648
      %v3134 = vsel %vm3132, %v3133, %v3131
      %v3135 = vrsqrt.pop %v3103
      %v3136 = vmul.f32 %v3135, %v3103
      %v3137 = vmul.f32 %v3136, %v3135
      %v3138 = vmul.f32 0.5, %v3137
      %v3139 = vsub.f32 1.5, %v3138
      %v3140 = vmul.f32 %v3135, %v3139
      %v3141 = vmul.f32 %v3103, %v3140
      %vm3142 = vcmp.eq.f32.partialorder %v3103, inf
      %v3143 = vsel %vm3142, %v3103, %v3141
      %vm3144 = vcmp.eq.f32.partialorder %v3103, 0.0
      %v3145 = vand.u32 %v3103, 2147483648
      %v3146 = vsel %vm3144, %v3145, %v3143
      %v3147 = vrsqrt.pop %v3104
      %v3148 = vmul.f32 %v3147, %v3104
      %v3149 = vmul.f32 %v3148, %v3147
      %v3150 = vmul.f32 0.5, %v3149
      %v3151 = vsub.f32 1.5, %v3150
      %v3152 = vmul.f32 %v3147, %v3151
      %v3153 = vmul.f32 %v3104, %v3152
      %vm3154 = vcmp.eq.f32.partialorder %v3104, inf
      %v3155 = vsel %vm3154, %v3104, %v3153
      %vm3156 = vcmp.eq.f32.partialorder %v3104, 0.0
      %v3157 = vand.u32 %v3104, 2147483648
      %v3158 = vsel %vm3156, %v3157, %v3155
      %v3159 = vadd.f32 %v3122, 1e-05
      %v3160 = vadd.f32 %v3134, 1e-05
      %v3161 = vadd.f32 %v3146, 1e-05
      %v3162 = vadd.f32 %v3158, 1e-05
      %v3163 = vrcp.pop %v3159
      %v3164 = vmul.f32 %v3159, %v3163
      %v3165 = vsub.f32 1.0, %v3164
      %v3166 = vmul.f32 %v3163, %v3165
      %v3167 = vadd.f32 %v3163, %v3166
      %vm3168 = vweird.f32 %v3159
      %vm3169 = vweird.f32 %v3163
      %vm3170 = vmor %vm3168, %vm3169
      %v3171 = vsel %vm3170, %v3163, %v3167
      %v3172 = vand.u32 2147483647, %v3159
      %vm3173 = vcmp.eq.f32.partialorder %v3172, 8.507059e+37
      %v3174 = vand.u32 %v3159, 2147483648
      %v3175 = vor.u32 1.1754944e-38, %v3174
      %v3176 = vsel %vm3173, %v3175, %v3171
      %v3177 = vmul.f32 %v3107, %v3176
      %v3178 = vrcp.pop %v3160
      %v3179 = vmul.f32 %v3160, %v3178
      %v3180 = vsub.f32 1.0, %v3179
      %v3181 = vmul.f32 %v3178, %v3180
      %v3182 = vadd.f32 %v3178, %v3181
      %vm3183 = vweird.f32 %v3160
      %vm3184 = vweird.f32 %v3178
      %vm3185 = vmor %vm3183, %vm3184
      %v3186 = vsel %vm3185, %v3178, %v3182
      %v3187 = vand.u32 2147483647, %v3160
      %vm3188 = vcmp.eq.f32.partialorder %v3187, 8.507059e+37
      %v3189 = vand.u32 %v3160, 2147483648
      %v3190 = vor.u32 1.1754944e-38, %v3189
      %v3191 = vsel %vm3188, %v3190, %v3186
      %v3192 = vmul.f32 %v3108, %v3191
      %v3193 = vrcp.pop %v3161
      %v3194 = vmul.f32 %v3161, %v3193
      %v3195 = vsub.f32 1.0, %v3194
      %v3196 = vmul.f32 %v3193, %v3195
      %v3197 = vadd.f32 %v3193, %v3196
      %vm3198 = vweird.f32 %v3161
      %vm3199 = vweird.f32 %v3193
      %vm3200 = vmor %vm3198, %vm3199
      %v3201 = vsel %vm3200, %v3193, %v3197
      %v3202 = vand.u32 2147483647, %v3161
      %vm3203 = vcmp.eq.f32.partialorder %v3202, 8.507059e+37
      %v3204 = vand.u32 %v3161, 2147483648
      %v3205 = vor.u32 1.1754944e-38, %v3204
      %v3206 = vsel %vm3203, %v3205, %v3201
      %v3207 = vmul.f32 %v3109, %v3206
      %v3208 = vrcp.pop %v3162
      %v3209 = vmul.f32 %v3162, %v3208
      %v3210 = vsub.f32 1.0, %v3209
      %v3211 = vmul.f32 %v3208, %v3210
      %v3212 = vadd.f32 %v3208, %v3211
      %vm3213 = vweird.f32 %v3162
      %vm3214 = vweird.f32 %v3208
      %vm3215 = vmor %vm3213, %vm3214
      %v3216 = vsel %vm3215, %v3208, %v3212
      %v3217 = vand.u32 2147483647, %v3162
      %vm3218 = vcmp.eq.f32.partialorder %v3217, 8.507059e+37
      %v3219 = vand.u32 %v3162, 2147483648
      %v3220 = vor.u32 1.1754944e-38, %v3219
      %v3221 = vsel %vm3218, %v3220, %v3216
      %v3222 = vmul.f32 %v3110, %v3221
      %3224 = vset.pattern.permute.xlu0 0
      %3225 = vperm.xlu0 %3224, %v3177
      %v3226 = vpop.permute.xlu0 %3225
      %3229 = vset.pattern.permute.xlu0 0
      %3230 = vperm.xlu0 %3229, %v3192
      %v3231 = vpop.permute.xlu0 %3230
      %3234 = vset.pattern.permute.xlu0 0
      %3235 = vperm.xlu0 %3234, %v3207
      %v3236 = vpop.permute.xlu0 %3235
      %3239 = vset.pattern.permute.xlu0 0
      %3240 = vperm.xlu0 %3239, %v3222
      %v3241 = vpop.permute.xlu0 %3240
      %v3243 = vmul.f32 %v2517, %v3226
      %v3244 = vmul.f32 %v2604, %v3226
      %v3245 = vmul.f32 %v2691, %v3226
      %v3246 = vmul.f32 %v2778, %v3226
      %v3247 = vmul.f32 %v2865, %v3226
      %v3248 = vmul.f32 %v2952, %v3226
      %v3249 = vmul.f32 %v2520, %v3231
      %v3250 = vmul.f32 %v2607, %v3231
      %v3251 = vmul.f32 %v2694, %v3231
      %v3252 = vmul.f32 %v2781, %v3231
      %v3253 = vmul.f32 %v2868, %v3231
      %v3254 = vmul.f32 %v2955, %v3231
      %v3255 = vmul.f32 %v2523, %v3236
      %v3256 = vmul.f32 %v2610, %v3236
      %v3257 = vmul.f32 %v2697, %v3236
      %v3258 = vmul.f32 %v2784, %v3236
      %v3259 = vmul.f32 %v2871, %v3236
      %v3260 = vmul.f32 %v2958, %v3236
      %v3261 = vmul.f32 %v2526, %v3241
      %v3262 = vmul.f32 %v2613, %v3241
      %v3263 = vmul.f32 %v2700, %v3241
      %v3264 = vmul.f32 %v2787, %v3241
      %v3265 = vmul.f32 %v2874, %v3241
      %v3266 = vmul.f32 %v2961, %v3241
      %v3267 = vmax.f32 %v3243, 0.0
      %v3268 = vmax.f32 %v3244, 0.0
      %v3269 = vmax.f32 %v3245, 0.0
      %v3270 = vmax.f32 %v3246, 0.0
      %v3271 = vmax.f32 %v3247, 0.0
      %v3272 = vmax.f32 %v3248, 0.0
      %v3273 = vmax.f32 %v3249, 0.0
      %v3274 = vmax.f32 %v3250, 0.0
      %v3275 = vmax.f32 %v3251, 0.0
      %v3276 = vmax.f32 %v3252, 0.0
      %v3277 = vmax.f32 %v3253, 0.0
      %v3278 = vmax.f32 %v3254, 0.0
      %v3279 = vmax.f32 %v3255, 0.0
      %v3280 = vmax.f32 %v3256, 0.0
      %v3281 = vmax.f32 %v3257, 0.0
      %v3282 = vmax.f32 %v3258, 0.0
      %v3283 = vmax.f32 %v3259, 0.0
      %v3284 = vmax.f32 %v3260, 0.0
      %v3285 = vmax.f32 %v3261, 0.0
      %v3286 = vmax.f32 %v3262, 0.0
      %v3287 = vmax.f32 %v3263, 0.0
      %v3288 = vmax.f32 %v3264, 0.0
      %v3289 = vmax.f32 %v3265, 0.0
      %v3290 = vmax.f32 %v3266, 0.0
      %v3291 = vmul.f32 %v3267, %v719
      %v3292 = vmul.f32 %v3268, %v720
      %v3293 = vmul.f32 %v3269, %v721
      %v3294 = vmul.f32 %v3270, %v722
      %v3295 = vmul.f32 %v3271, %v723
      %v3296 = vmul.f32 %v3272, %v724
      %v3297 = vmul.f32 %v3273, %v719
      %v3298 = vmul.f32 %v3274, %v720
      %v3299 = vmul.f32 %v3275, %v721
      %v3300 = vmul.f32 %v3276, %v722
      %v3301 = vmul.f32 %v3277, %v723
      %v3302 = vmul.f32 %v3278, %v724
      %v3303 = vmul.f32 %v3279, %v719
      %v3304 = vmul.f32 %v3280, %v720
      %v3305 = vmul.f32 %v3281, %v721
      %v3306 = vmul.f32 %v3282, %v722
      %v3307 = vmul.f32 %v3283, %v723
      %v3308 = vmul.f32 %v3284, %v724
      %v3309 = vmul.f32 %v3285, %v719
      %v3310 = vmul.f32 %v3286, %v720
      %v3311 = vmul.f32 %v3287, %v721
      %v3312 = vmul.f32 %v3288, %v722
      %v3313 = vmul.f32 %v3289, %v723
      %v3314 = vmul.f32 %v3290, %v724
      %3315 = vst [vmem:[#allocation2 + $0x8] sm:$0xff] %v3291
      %3316 = vst [vmem:[#allocation2 + $0x10] sm:$0xff] %v3292
      %3317 = vst [vmem:[#allocation2 + $0x18] sm:$0xff] %v3293
      %3318 = vst [vmem:[#allocation2 + $0x20] sm:$0xff] %v3294
      %3319 = vst [vmem:[#allocation2 + $0x28] sm:$0xff] %v3295
      %3320 = vst [vmem:[#allocation2 + $0x30] sm:$0xff] %v3296
      %3321 = vst [vmem:[#allocation2 + $0x48] sm:$0xff] %v3297
      %3322 = vst [vmem:[#allocation2 + $0x50] sm:$0xff] %v3298
      %3323 = vst [vmem:[#allocation2 + $0x58] sm:$0xff] %v3299
      %3324 = vst [vmem:[#allocation2 + $0x60] sm:$0xff] %v3300
      %3325 = vst [vmem:[#allocation2 + $0x68] sm:$0xff] %v3301
      %3326 = vst [vmem:[#allocation2 + $0x70] sm:$0xff] %v3302
      %3327 = vst [vmem:[#allocation2 + $0x88] sm:$0xff] %v3303
      %3328 = vst [vmem:[#allocation2 + $0x90] sm:$0xff] %v3304
      %3329 = vst [vmem:[#allocation2 + $0x98] sm:$0xff] %v3305
      %3330 = vst [vmem:[#allocation2 + $0xa0] sm:$0xff] %v3306
      %3331 = vst [vmem:[#allocation2 + $0xa8] sm:$0xff] %v3307
      %3332 = vst [vmem:[#allocation2 + $0xb0] sm:$0xff] %v3308
      %3333 = vst [vmem:[#allocation2 + $0xc8] sm:$0xff] %v3309
      %3334 = vst [vmem:[#allocation2 + $0xd0] sm:$0xff] %v3310
      %3335 = vst [vmem:[#allocation2 + $0xd8] sm:$0xff] %v3311
      %3336 = vst [vmem:[#allocation2 + $0xe0] sm:$0xff] %v3312
      %3337 = vst [vmem:[#allocation2 + $0xe8] sm:$0xff] %v3313
      %3338 = vst [vmem:[#allocation2 + $0xf0] sm:$0xff] %v3314
    $region38: #{tpu_custom_call.1} parent=1 // loop_footer
      %s784 = sadd.s32 1, %s780
    $region39: #{tpu_custom_call.1} parent=1 // loop_footer_branch
      %779 = sbr.rel target = $region35
    $region40: #{tpu_custom_call.1} parent=1 // loop_exit
      _
    %v3339 = vld [vmem:[#allocation2] sm:$0xff]
    %v3340 = vld [vmem:[#allocation2 + $0x8] sm:$0xff]
    %v3341 = vld [vmem:[#allocation2 + $0x10] sm:$0xff]
    %v3342 = vld [vmem:[#allocation2 + $0x18] sm:$0xff]
    %v3343 = vld [vmem:[#allocation2 + $0x20] sm:$0xff]
    %v3344 = vld [vmem:[#allocation2 + $0x28] sm:$0xff]
    %v3345 = vld [vmem:[#allocation2 + $0x30] sm:$0xff]
    %v3346 = vld [vmem:[#allocation2 + $0x38] sm:$0xff]
    %v3347 = vld [vmem:[#allocation2 + $0x40] sm:$0xff]
    %v3348 = vld [vmem:[#allocation2 + $0x48] sm:$0xff]
    %v3349 = vld [vmem:[#allocation2 + $0x50] sm:$0xff]
    %v3350 = vld [vmem:[#allocation2 + $0x58] sm:$0xff]
    %v3351 = vld [vmem:[#allocation2 + $0x60] sm:$0xff]
    %v3352 = vld [vmem:[#allocation2 + $0x68] sm:$0xff]
    %v3353 = vld [vmem:[#allocation2 + $0x70] sm:$0xff]
    %v3354 = vld [vmem:[#allocation2 + $0x78] sm:$0xff]
    %v3355 = vld [vmem:[#allocation2 + $0x80] sm:$0xff]
    %v3356 = vld [vmem:[#allocation2 + $0x88] sm:$0xff]
    %v3357 = vld [vmem:[#allocation2 + $0x90] sm:$0xff]
    %v3358 = vld [vmem:[#allocation2 + $0x98] sm:$0xff]
    %v3359 = vld [vmem:[#allocation2 + $0xa0] sm:$0xff]
    %v3360 = vld [vmem:[#allocation2 + $0xa8] sm:$0xff]
    %v3361 = vld [vmem:[#allocation2 + $0xb0] sm:$0xff]
    %v3362 = vld [vmem:[#allocation2 + $0xb8] sm:$0xff]
    %v3363 = vld [vmem:[#allocation2 + $0xc0] sm:$0xff]
    %v3364 = vld [vmem:[#allocation2 + $0xc8] sm:$0xff]
    %v3365 = vld [vmem:[#allocation2 + $0xd0] sm:$0xff]
    %v3366 = vld [vmem:[#allocation2 + $0xd8] sm:$0xff]
    %v3367 = vld [vmem:[#allocation2 + $0xe0] sm:$0xff]
    %v3368 = vld [vmem:[#allocation2 + $0xe8] sm:$0xff]
    %v3369 = vld [vmem:[#allocation2 + $0xf0] sm:$0xff]
    %v3370 = vld [vmem:[#allocation2 + $0xf8] sm:$0xff]
    %3399 = vrot.lane.b32.xlu0 %v3339, 127
    %v3400 = vpop.permute.xlu0 %3399
    %3401 = vrot.lane.b32.xlu0 %v3340, 127
    %v3402 = vpop.permute.xlu0 %3401
    %3403 = vrot.lane.b32.xlu0 %v3341, 127
    %v3404 = vpop.permute.xlu0 %3403
    %3405 = vrot.lane.b32.xlu0 %v3342, 127
    %v3406 = vpop.permute.xlu0 %3405
    %3407 = vrot.lane.b32.xlu0 %v3343, 127
    %v3408 = vpop.permute.xlu0 %3407
    %3409 = vrot.lane.b32.xlu0 %v3344, 127
    %v3410 = vpop.permute.xlu0 %3409
    %3411 = vrot.lane.b32.xlu0 %v3345, 127
    %v3412 = vpop.permute.xlu0 %3411
    %3413 = vrot.lane.b32.xlu0 %v3347, 127
    %v3414 = vpop.permute.xlu0 %3413
    %3415 = vrot.lane.b32.xlu0 %v3348, 127
    %v3416 = vpop.permute.xlu0 %3415
    %3417 = vrot.lane.b32.xlu0 %v3349, 127
    %v3418 = vpop.permute.xlu0 %3417
    %3419 = vrot.lane.b32.xlu0 %v3350, 127
    %v3420 = vpop.permute.xlu0 %3419
    %3421 = vrot.lane.b32.xlu0 %v3351, 127
    %v3422 = vpop.permute.xlu0 %3421
    %3423 = vrot.lane.b32.xlu0 %v3352, 127
    %v3424 = vpop.permute.xlu0 %3423
    %3425 = vrot.lane.b32.xlu0 %v3353, 127
    %v3426 = vpop.permute.xlu0 %3425
    %3427 = vrot.lane.b32.xlu0 %v3355, 127
    %v3428 = vpop.permute.xlu0 %3427
    %3429 = vrot.lane.b32.xlu0 %v3356, 127
    %v3430 = vpop.permute.xlu0 %3429
    %3431 = vrot.lane.b32.xlu0 %v3357, 127
    %v3432 = vpop.permute.xlu0 %3431
    %3433 = vrot.lane.b32.xlu0 %v3358, 127
    %v3434 = vpop.permute.xlu0 %3433
    %3435 = vrot.lane.b32.xlu0 %v3359, 127
    %v3436 = vpop.permute.xlu0 %3435
    %3437 = vrot.lane.b32.xlu0 %v3360, 127
    %v3438 = vpop.permute.xlu0 %3437
    %3439 = vrot.lane.b32.xlu0 %v3361, 127
    %v3440 = vpop.permute.xlu0 %3439
    %3441 = vrot.lane.b32.xlu0 %v3363, 127
    %v3442 = vpop.permute.xlu0 %3441
    %3443 = vrot.lane.b32.xlu0 %v3364, 127
    %v3444 = vpop.permute.xlu0 %3443
    %3445 = vrot.lane.b32.xlu0 %v3365, 127
    %v3446 = vpop.permute.xlu0 %3445
    %3447 = vrot.lane.b32.xlu0 %v3366, 127
    %v3448 = vpop.permute.xlu0 %3447
    %3449 = vrot.lane.b32.xlu0 %v3367, 127
    %v3450 = vpop.permute.xlu0 %3449
    %3451 = vrot.lane.b32.xlu0 %v3368, 127
    %v3452 = vpop.permute.xlu0 %3451
    %3453 = vrot.lane.b32.xlu0 %v3369, 127
    %v3454 = vpop.permute.xlu0 %3453
    %v3455 = vsel %vm116, %v3400, %v3402
    %v3456 = vsel %vm116, %v3402, %v3404
    %v3457 = vsel %vm116, %v3404, %v3406
    %v3458 = vsel %vm116, %v3406, %v3408
    %v3459 = vsel %vm116, %v3408, %v3410
    %v3460 = vsel %vm116, %v3410, %v3412
    %v3461 = vsel %vm116, %v3414, %v3416
    %v3462 = vsel %vm116, %v3416, %v3418
    %v3463 = vsel %vm116, %v3418, %v3420
    %v3464 = vsel %vm116, %v3420, %v3422
    %v3465 = vsel %vm116, %v3422, %v3424
    %v3466 = vsel %vm116, %v3424, %v3426
    %v3467 = vsel %vm116, %v3428, %v3430
    %v3468 = vsel %vm116, %v3430, %v3432
    %v3469 = vsel %vm116, %v3432, %v3434
    %v3470 = vsel %vm116, %v3434, %v3436
    %v3471 = vsel %vm116, %v3436, %v3438
    %v3472 = vsel %vm116, %v3438, %v3440
    %v3473 = vsel %vm116, %v3442, %v3444
    %v3474 = vsel %vm116, %v3444, %v3446
    %v3475 = vsel %vm116, %v3446, %v3448
    %v3476 = vsel %vm116, %v3448, %v3450
    %v3477 = vsel %vm116, %v3450, %v3452
    %v3478 = vsel %vm116, %v3452, %v3454
    %3479 = vrot.lane.b32.xlu0 %v3339, 126
    %v3480 = vpop.permute.xlu0 %3479
    %3481 = vrot.lane.b32.xlu0 %v3340, 126
    %v3482 = vpop.permute.xlu0 %3481
    %3483 = vrot.lane.b32.xlu0 %v3341, 126
    %v3484 = vpop.permute.xlu0 %3483
    %3485 = vrot.lane.b32.xlu0 %v3342, 126
    %v3486 = vpop.permute.xlu0 %3485
    %3487 = vrot.lane.b32.xlu0 %v3343, 126
    %v3488 = vpop.permute.xlu0 %3487
    %3489 = vrot.lane.b32.xlu0 %v3344, 126
    %v3490 = vpop.permute.xlu0 %3489
    %3491 = vrot.lane.b32.xlu0 %v3345, 126
    %v3492 = vpop.permute.xlu0 %3491
    %3493 = vrot.lane.b32.xlu0 %v3347, 126
    %v3494 = vpop.permute.xlu0 %3493
    %3495 = vrot.lane.b32.xlu0 %v3348, 126
    %v3496 = vpop.permute.xlu0 %3495
    %3497 = vrot.lane.b32.xlu0 %v3349, 126
    %v3498 = vpop.permute.xlu0 %3497
    %3499 = vrot.lane.b32.xlu0 %v3350, 126
    %v3500 = vpop.permute.xlu0 %3499
    %3501 = vrot.lane.b32.xlu0 %v3351, 126
    %v3502 = vpop.permute.xlu0 %3501
    %3503 = vrot.lane.b32.xlu0 %v3352, 126
    %v3504 = vpop.permute.xlu0 %3503
    %3505 = vrot.lane.b32.xlu0 %v3353, 126
    %v3506 = vpop.permute.xlu0 %3505
    %3507 = vrot.lane.b32.xlu0 %v3355, 126
    %v3508 = vpop.permute.xlu0 %3507
    %3509 = vrot.lane.b32.xlu0 %v3356, 126
    %v3510 = vpop.permute.xlu0 %3509
    %3511 = vrot.lane.b32.xlu0 %v3357, 126
    %v3512 = vpop.permute.xlu0 %3511
    %3513 = vrot.lane.b32.xlu0 %v3358, 126
    %v3514 = vpop.permute.xlu0 %3513
    %3515 = vrot.lane.b32.xlu0 %v3359, 126
    %v3516 = vpop.permute.xlu0 %3515
    %3517 = vrot.lane.b32.xlu0 %v3360, 126
    %v3518 = vpop.permute.xlu0 %3517
    %3519 = vrot.lane.b32.xlu0 %v3361, 126
    %v3520 = vpop.permute.xlu0 %3519
    %3521 = vrot.lane.b32.xlu0 %v3363, 126
    %v3522 = vpop.permute.xlu0 %3521
    %3523 = vrot.lane.b32.xlu0 %v3364, 126
    %v3524 = vpop.permute.xlu0 %3523
    %3525 = vrot.lane.b32.xlu0 %v3365, 126
    %v3526 = vpop.permute.xlu0 %3525
    %3527 = vrot.lane.b32.xlu0 %v3366, 126
    %v3528 = vpop.permute.xlu0 %3527
    %3529 = vrot.lane.b32.xlu0 %v3367, 126
    %v3530 = vpop.permute.xlu0 %3529
    %3531 = vrot.lane.b32.xlu0 %v3368, 126
    %v3532 = vpop.permute.xlu0 %3531
    %3533 = vrot.lane.b32.xlu0 %v3369, 126
    %v3534 = vpop.permute.xlu0 %3533
    %v3535 = vsel %vm137, %v3480, %v3482
    %v3536 = vsel %vm137, %v3482, %v3484
    %v3537 = vsel %vm137, %v3484, %v3486
    %v3538 = vsel %vm137, %v3486, %v3488
    %v3539 = vsel %vm137, %v3488, %v3490
    %v3540 = vsel %vm137, %v3490, %v3492
    %v3541 = vsel %vm137, %v3494, %v3496
    %v3542 = vsel %vm137, %v3496, %v3498
    %v3543 = vsel %vm137, %v3498, %v3500
    %v3544 = vsel %vm137, %v3500, %v3502
    %v3545 = vsel %vm137, %v3502, %v3504
    %v3546 = vsel %vm137, %v3504, %v3506
    %v3547 = vsel %vm137, %v3508, %v3510
    %v3548 = vsel %vm137, %v3510, %v3512
    %v3549 = vsel %vm137, %v3512, %v3514
    %v3550 = vsel %vm137, %v3514, %v3516
    %v3551 = vsel %vm137, %v3516, %v3518
    %v3552 = vsel %vm137, %v3518, %v3520
    %v3553 = vsel %vm137, %v3522, %v3524
    %v3554 = vsel %vm137, %v3524, %v3526
    %v3555 = vsel %vm137, %v3526, %v3528
    %v3556 = vsel %vm137, %v3528, %v3530
    %v3557 = vsel %vm137, %v3530, %v3532
    %v3558 = vsel %vm137, %v3532, %v3534
    %3559 = vrot.lane.b32.xlu0 %v3339, 110
    %v3560 = vpop.permute.xlu0 %3559
    %3561 = vrot.lane.b32.xlu0 %v3340, 110
    %v3562 = vpop.permute.xlu0 %3561
    %3563 = vrot.lane.b32.xlu0 %v3341, 110
    %v3564 = vpop.permute.xlu0 %3563
    %3565 = vrot.lane.b32.xlu0 %v3342, 110
    %v3566 = vpop.permute.xlu0 %3565
    %3567 = vrot.lane.b32.xlu0 %v3343, 110
    %v3568 = vpop.permute.xlu0 %3567
    %3569 = vrot.lane.b32.xlu0 %v3344, 110
    %v3570 = vpop.permute.xlu0 %3569
    %3571 = vrot.lane.b32.xlu0 %v3345, 110
    %v3572 = vpop.permute.xlu0 %3571
    %3573 = vrot.lane.b32.xlu0 %v3347, 110
    %v3574 = vpop.permute.xlu0 %3573
    %3575 = vrot.lane.b32.xlu0 %v3348, 110
    %v3576 = vpop.permute.xlu0 %3575
    %3577 = vrot.lane.b32.xlu0 %v3349, 110
    %v3578 = vpop.permute.xlu0 %3577
    %3579 = vrot.lane.b32.xlu0 %v3350, 110
    %v3580 = vpop.permute.xlu0 %3579
    %3581 = vrot.lane.b32.xlu0 %v3351, 110
    %v3582 = vpop.permute.xlu0 %3581
    %3583 = vrot.lane.b32.xlu0 %v3352, 110
    %v3584 = vpop.permute.xlu0 %3583
    %3585 = vrot.lane.b32.xlu0 %v3353, 110
    %v3586 = vpop.permute.xlu0 %3585
    %3587 = vrot.lane.b32.xlu0 %v3355, 110
    %v3588 = vpop.permute.xlu0 %3587
    %3589 = vrot.lane.b32.xlu0 %v3356, 110
    %v3590 = vpop.permute.xlu0 %3589
    %3591 = vrot.lane.b32.xlu0 %v3357, 110
    %v3592 = vpop.permute.xlu0 %3591
    %3593 = vrot.lane.b32.xlu0 %v3358, 110
    %v3594 = vpop.permute.xlu0 %3593
    %3595 = vrot.lane.b32.xlu0 %v3359, 110
    %v3596 = vpop.permute.xlu0 %3595
    %3597 = vrot.lane.b32.xlu0 %v3360, 110
    %v3598 = vpop.permute.xlu0 %3597
    %3599 = vrot.lane.b32.xlu0 %v3361, 110
    %v3600 = vpop.permute.xlu0 %3599
    %3601 = vrot.lane.b32.xlu0 %v3363, 110
    %v3602 = vpop.permute.xlu0 %3601
    %3603 = vrot.lane.b32.xlu0 %v3364, 110
    %v3604 = vpop.permute.xlu0 %3603
    %3605 = vrot.lane.b32.xlu0 %v3365, 110
    %v3606 = vpop.permute.xlu0 %3605
    %3607 = vrot.lane.b32.xlu0 %v3366, 110
    %v3608 = vpop.permute.xlu0 %3607
    %3609 = vrot.lane.b32.xlu0 %v3367, 110
    %v3610 = vpop.permute.xlu0 %3609
    %3611 = vrot.lane.b32.xlu0 %v3368, 110
    %v3612 = vpop.permute.xlu0 %3611
    %3613 = vrot.lane.b32.xlu0 %v3369, 110
    %v3614 = vpop.permute.xlu0 %3613
    %v3615 = vsel %vm158, %v3560, %v3562
    %v3616 = vsel %vm158, %v3562, %v3564
    %v3617 = vsel %vm158, %v3564, %v3566
    %v3618 = vsel %vm158, %v3566, %v3568
    %v3619 = vsel %vm158, %v3568, %v3570
    %v3620 = vsel %vm158, %v3570, %v3572
    %v3621 = vsel %vm158, %v3574, %v3576
    %v3622 = vsel %vm158, %v3576, %v3578
    %v3623 = vsel %vm158, %v3578, %v3580
    %v3624 = vsel %vm158, %v3580, %v3582
    %v3625 = vsel %vm158, %v3582, %v3584
    %v3626 = vsel %vm158, %v3584, %v3586
    %v3627 = vsel %vm158, %v3588, %v3590
    %v3628 = vsel %vm158, %v3590, %v3592
    %v3629 = vsel %vm158, %v3592, %v3594
    %v3630 = vsel %vm158, %v3594, %v3596
    %v3631 = vsel %vm158, %v3596, %v3598
    %v3632 = vsel %vm158, %v3598, %v3600
    %v3633 = vsel %vm158, %v3602, %v3604
    %v3634 = vsel %vm158, %v3604, %v3606
    %v3635 = vsel %vm158, %v3606, %v3608
    %v3636 = vsel %vm158, %v3608, %v3610
    %v3637 = vsel %vm158, %v3610, %v3612
    %v3638 = vsel %vm158, %v3612, %v3614
    %3639 = vrot.lane.b32.xlu0 %v3340, 109
    %v3640 = vpop.permute.xlu0 %3639
    %3641 = vrot.lane.b32.xlu0 %v3341, 109
    %v3642 = vpop.permute.xlu0 %3641
    %3643 = vrot.lane.b32.xlu0 %v3342, 109
    %v3644 = vpop.permute.xlu0 %3643
    %3645 = vrot.lane.b32.xlu0 %v3343, 109
    %v3646 = vpop.permute.xlu0 %3645
    %3647 = vrot.lane.b32.xlu0 %v3344, 109
    %v3648 = vpop.permute.xlu0 %3647
    %3649 = vrot.lane.b32.xlu0 %v3345, 109
    %v3650 = vpop.permute.xlu0 %3649
    %3651 = vrot.lane.b32.xlu0 %v3348, 109
    %v3652 = vpop.permute.xlu0 %3651
    %3653 = vrot.lane.b32.xlu0 %v3349, 109
    %v3654 = vpop.permute.xlu0 %3653
    %3655 = vrot.lane.b32.xlu0 %v3350, 109
    %v3656 = vpop.permute.xlu0 %3655
    %3657 = vrot.lane.b32.xlu0 %v3351, 109
    %v3658 = vpop.permute.xlu0 %3657
    %3659 = vrot.lane.b32.xlu0 %v3352, 109
    %v3660 = vpop.permute.xlu0 %3659
    %3661 = vrot.lane.b32.xlu0 %v3353, 109
    %v3662 = vpop.permute.xlu0 %3661
    %3663 = vrot.lane.b32.xlu0 %v3356, 109
    %v3664 = vpop.permute.xlu0 %3663
    %3665 = vrot.lane.b32.xlu0 %v3357, 109
    %v3666 = vpop.permute.xlu0 %3665
    %3667 = vrot.lane.b32.xlu0 %v3358, 109
    %v3668 = vpop.permute.xlu0 %3667
    %3669 = vrot.lane.b32.xlu0 %v3359, 109
    %v3670 = vpop.permute.xlu0 %3669
    %3671 = vrot.lane.b32.xlu0 %v3360, 109
    %v3672 = vpop.permute.xlu0 %3671
    %3673 = vrot.lane.b32.xlu0 %v3361, 109
    %v3674 = vpop.permute.xlu0 %3673
    %3675 = vrot.lane.b32.xlu0 %v3364, 109
    %v3676 = vpop.permute.xlu0 %3675
    %3677 = vrot.lane.b32.xlu0 %v3365, 109
    %v3678 = vpop.permute.xlu0 %3677
    %3679 = vrot.lane.b32.xlu0 %v3366, 109
    %v3680 = vpop.permute.xlu0 %3679
    %3681 = vrot.lane.b32.xlu0 %v3367, 109
    %v3682 = vpop.permute.xlu0 %3681
    %3683 = vrot.lane.b32.xlu0 %v3368, 109
    %v3684 = vpop.permute.xlu0 %3683
    %3685 = vrot.lane.b32.xlu0 %v3369, 109
    %v3686 = vpop.permute.xlu0 %3685
    %v3687 = vsel %vm177, %v3640, %v3642
    %v3688 = vsel %vm177, %v3642, %v3644
    %v3689 = vsel %vm177, %v3644, %v3646
    %v3690 = vsel %vm177, %v3646, %v3648
    %v3691 = vsel %vm177, %v3648, %v3650
    %v3692 = vsel %vm177, %v3652, %v3654
    %v3693 = vsel %vm177, %v3654, %v3656
    %v3694 = vsel %vm177, %v3656, %v3658
    %v3695 = vsel %vm177, %v3658, %v3660
    %v3696 = vsel %vm177, %v3660, %v3662
    %v3697 = vsel %vm177, %v3664, %v3666
    %v3698 = vsel %vm177, %v3666, %v3668
    %v3699 = vsel %vm177, %v3668, %v3670
    %v3700 = vsel %vm177, %v3670, %v3672
    %v3701 = vsel %vm177, %v3672, %v3674
    %v3702 = vsel %vm177, %v3676, %v3678
    %v3703 = vsel %vm177, %v3678, %v3680
    %v3704 = vsel %vm177, %v3680, %v3682
    %v3705 = vsel %vm177, %v3682, %v3684
    %v3706 = vsel %vm177, %v3684, %v3686
    %3711 = vrot.lane.b32.xlu0 %v3340, 108
    %v3712 = vpop.permute.xlu0 %3711
    %3713 = vrot.lane.b32.xlu0 %v3341, 108
    %v3714 = vpop.permute.xlu0 %3713
    %3715 = vrot.lane.b32.xlu0 %v3342, 108
    %v3716 = vpop.permute.xlu0 %3715
    %3717 = vrot.lane.b32.xlu0 %v3343, 108
    %v3718 = vpop.permute.xlu0 %3717
    %3719 = vrot.lane.b32.xlu0 %v3344, 108
    %v3720 = vpop.permute.xlu0 %3719
    %3721 = vrot.lane.b32.xlu0 %v3345, 108
    %v3722 = vpop.permute.xlu0 %3721
    %3723 = vrot.lane.b32.xlu0 %v3346, 108
    %v3724 = vpop.permute.xlu0 %3723
    %3725 = vrot.lane.b32.xlu0 %v3348, 108
    %v3726 = vpop.permute.xlu0 %3725
    %3727 = vrot.lane.b32.xlu0 %v3349, 108
    %v3728 = vpop.permute.xlu0 %3727
    %3729 = vrot.lane.b32.xlu0 %v3350, 108
    %v3730 = vpop.permute.xlu0 %3729
    %3731 = vrot.lane.b32.xlu0 %v3351, 108
    %v3732 = vpop.permute.xlu0 %3731
    %3733 = vrot.lane.b32.xlu0 %v3352, 108
    %v3734 = vpop.permute.xlu0 %3733
    %3735 = vrot.lane.b32.xlu0 %v3353, 108
    %v3736 = vpop.permute.xlu0 %3735
    %3737 = vrot.lane.b32.xlu0 %v3354, 108
    %v3738 = vpop.permute.xlu0 %3737
    %3739 = vrot.lane.b32.xlu0 %v3356, 108
    %v3740 = vpop.permute.xlu0 %3739
    %3741 = vrot.lane.b32.xlu0 %v3357, 108
    %v3742 = vpop.permute.xlu0 %3741
    %3743 = vrot.lane.b32.xlu0 %v3358, 108
    %v3744 = vpop.permute.xlu0 %3743
    %3745 = vrot.lane.b32.xlu0 %v3359, 108
    %v3746 = vpop.permute.xlu0 %3745
    %3747 = vrot.lane.b32.xlu0 %v3360, 108
    %v3748 = vpop.permute.xlu0 %3747
    %3749 = vrot.lane.b32.xlu0 %v3361, 108
    %v3750 = vpop.permute.xlu0 %3749
    %3751 = vrot.lane.b32.xlu0 %v3362, 108
    %v3752 = vpop.permute.xlu0 %3751
    %3753 = vrot.lane.b32.xlu0 %v3364, 108
    %v3754 = vpop.permute.xlu0 %3753
    %3755 = vrot.lane.b32.xlu0 %v3365, 108
    %v3756 = vpop.permute.xlu0 %3755
    %3757 = vrot.lane.b32.xlu0 %v3366, 108
    %v3758 = vpop.permute.xlu0 %3757
    %3759 = vrot.lane.b32.xlu0 %v3367, 108
    %v3760 = vpop.permute.xlu0 %3759
    %3761 = vrot.lane.b32.xlu0 %v3368, 108
    %v3762 = vpop.permute.xlu0 %3761
    %3763 = vrot.lane.b32.xlu0 %v3369, 108
    %v3764 = vpop.permute.xlu0 %3763
    %3765 = vrot.lane.b32.xlu0 %v3370, 108
    %v3766 = vpop.permute.xlu0 %3765
    %v3767 = vsel %vm198, %v3712, %v3714
    %v3768 = vsel %vm198, %v3714, %v3716
    %v3769 = vsel %vm198, %v3716, %v3718
    %v3770 = vsel %vm198, %v3718, %v3720
    %v3771 = vsel %vm198, %v3720, %v3722
    %v3772 = vsel %vm198, %v3722, %v3724
    %v3773 = vsel %vm198, %v3726, %v3728
    %v3774 = vsel %vm198, %v3728, %v3730
    %v3775 = vsel %vm198, %v3730, %v3732
    %v3776 = vsel %vm198, %v3732, %v3734
    %v3777 = vsel %vm198, %v3734, %v3736
    %v3778 = vsel %vm198, %v3736, %v3738
    %v3779 = vsel %vm198, %v3740, %v3742
    %v3780 = vsel %vm198, %v3742, %v3744
    %v3781 = vsel %vm198, %v3744, %v3746
    %v3782 = vsel %vm198, %v3746, %v3748
    %v3783 = vsel %vm198, %v3748, %v3750
    %v3784 = vsel %vm198, %v3750, %v3752
    %v3785 = vsel %vm198, %v3754, %v3756
    %v3786 = vsel %vm198, %v3756, %v3758
    %v3787 = vsel %vm198, %v3758, %v3760
    %v3788 = vsel %vm198, %v3760, %v3762
    %v3789 = vsel %vm198, %v3762, %v3764
    %v3790 = vsel %vm198, %v3764, %v3766
    %3791 = vrot.lane.b32.xlu0 %v3340, 92
    %v3792 = vpop.permute.xlu0 %3791
    %3793 = vrot.lane.b32.xlu0 %v3341, 92
    %v3794 = vpop.permute.xlu0 %3793
    %3795 = vrot.lane.b32.xlu0 %v3342, 92
    %v3796 = vpop.permute.xlu0 %3795
    %3797 = vrot.lane.b32.xlu0 %v3343, 92
    %v3798 = vpop.permute.xlu0 %3797
    %3799 = vrot.lane.b32.xlu0 %v3344, 92
    %v3800 = vpop.permute.xlu0 %3799
    %3801 = vrot.lane.b32.xlu0 %v3345, 92
    %v3802 = vpop.permute.xlu0 %3801
    %3803 = vrot.lane.b32.xlu0 %v3346, 92
    %v3804 = vpop.permute.xlu0 %3803
    %3805 = vrot.lane.b32.xlu0 %v3348, 92
    %v3806 = vpop.permute.xlu0 %3805
    %3807 = vrot.lane.b32.xlu0 %v3349, 92
    %v3808 = vpop.permute.xlu0 %3807
    %3809 = vrot.lane.b32.xlu0 %v3350, 92
    %v3810 = vpop.permute.xlu0 %3809
    %3811 = vrot.lane.b32.xlu0 %v3351, 92
    %v3812 = vpop.permute.xlu0 %3811
    %3813 = vrot.lane.b32.xlu0 %v3352, 92
    %v3814 = vpop.permute.xlu0 %3813
    %3815 = vrot.lane.b32.xlu0 %v3353, 92
    %v3816 = vpop.permute.xlu0 %3815
    %3817 = vrot.lane.b32.xlu0 %v3354, 92
    %v3818 = vpop.permute.xlu0 %3817
    %3819 = vrot.lane.b32.xlu0 %v3356, 92
    %v3820 = vpop.permute.xlu0 %3819
    %3821 = vrot.lane.b32.xlu0 %v3357, 92
    %v3822 = vpop.permute.xlu0 %3821
    %3823 = vrot.lane.b32.xlu0 %v3358, 92
    %v3824 = vpop.permute.xlu0 %3823
    %3825 = vrot.lane.b32.xlu0 %v3359, 92
    %v3826 = vpop.permute.xlu0 %3825
    %3827 = vrot.lane.b32.xlu0 %v3360, 92
    %v3828 = vpop.permute.xlu0 %3827
    %3829 = vrot.lane.b32.xlu0 %v3361, 92
    %v3830 = vpop.permute.xlu0 %3829
    %3831 = vrot.lane.b32.xlu0 %v3362, 92
    %v3832 = vpop.permute.xlu0 %3831
    %3833 = vrot.lane.b32.xlu0 %v3364, 92
    %v3834 = vpop.permute.xlu0 %3833
    %3835 = vrot.lane.b32.xlu0 %v3365, 92
    %v3836 = vpop.permute.xlu0 %3835
    %3837 = vrot.lane.b32.xlu0 %v3366, 92
    %v3838 = vpop.permute.xlu0 %3837
    %3839 = vrot.lane.b32.xlu0 %v3367, 92
    %v3840 = vpop.permute.xlu0 %3839
    %3841 = vrot.lane.b32.xlu0 %v3368, 92
    %v3842 = vpop.permute.xlu0 %3841
    %3843 = vrot.lane.b32.xlu0 %v3369, 92
    %v3844 = vpop.permute.xlu0 %3843
    %3845 = vrot.lane.b32.xlu0 %v3370, 92
    %v3846 = vpop.permute.xlu0 %3845
    %v3847 = vsel %vm219, %v3792, %v3794
    %v3848 = vsel %vm219, %v3794, %v3796
    %v3849 = vsel %vm219, %v3796, %v3798
    %v3850 = vsel %vm219, %v3798, %v3800
    %v3851 = vsel %vm219, %v3800, %v3802
    %v3852 = vsel %vm219, %v3802, %v3804
    %v3853 = vsel %vm219, %v3806, %v3808
    %v3854 = vsel %vm219, %v3808, %v3810
    %v3855 = vsel %vm219, %v3810, %v3812
    %v3856 = vsel %vm219, %v3812, %v3814
    %v3857 = vsel %vm219, %v3814, %v3816
    %v3858 = vsel %vm219, %v3816, %v3818
    %v3859 = vsel %vm219, %v3820, %v3822
    %v3860 = vsel %vm219, %v3822, %v3824
    %v3861 = vsel %vm219, %v3824, %v3826
    %v3862 = vsel %vm219, %v3826, %v3828
    %v3863 = vsel %vm219, %v3828, %v3830
    %v3864 = vsel %vm219, %v3830, %v3832
    %v3865 = vsel %vm219, %v3834, %v3836
    %v3866 = vsel %vm219, %v3836, %v3838
    %v3867 = vsel %vm219, %v3838, %v3840
    %v3868 = vsel %vm219, %v3840, %v3842
    %v3869 = vsel %vm219, %v3842, %v3844
    %v3870 = vsel %vm219, %v3844, %v3846
    %3871 = vrot.lane.b32.xlu0 %v3340, 91
    %v3872 = vpop.permute.xlu0 %3871
    %3873 = vrot.lane.b32.xlu0 %v3341, 91
    %v3874 = vpop.permute.xlu0 %3873
    %3875 = vrot.lane.b32.xlu0 %v3342, 91
    %v3876 = vpop.permute.xlu0 %3875
    %3877 = vrot.lane.b32.xlu0 %v3343, 91
    %v3878 = vpop.permute.xlu0 %3877
    %3879 = vrot.lane.b32.xlu0 %v3344, 91
    %v3880 = vpop.permute.xlu0 %3879
    %3881 = vrot.lane.b32.xlu0 %v3345, 91
    %v3882 = vpop.permute.xlu0 %3881
    %3883 = vrot.lane.b32.xlu0 %v3346, 91
    %v3884 = vpop.permute.xlu0 %3883
    %3885 = vrot.lane.b32.xlu0 %v3348, 91
    %v3886 = vpop.permute.xlu0 %3885
    %3887 = vrot.lane.b32.xlu0 %v3349, 91
    %v3888 = vpop.permute.xlu0 %3887
    %3889 = vrot.lane.b32.xlu0 %v3350, 91
    %v3890 = vpop.permute.xlu0 %3889
    %3891 = vrot.lane.b32.xlu0 %v3351, 91
    %v3892 = vpop.permute.xlu0 %3891
    %3893 = vrot.lane.b32.xlu0 %v3352, 91
    %v3894 = vpop.permute.xlu0 %3893
    %3895 = vrot.lane.b32.xlu0 %v3353, 91
    %v3896 = vpop.permute.xlu0 %3895
    %3897 = vrot.lane.b32.xlu0 %v3354, 91
    %v3898 = vpop.permute.xlu0 %3897
    %3899 = vrot.lane.b32.xlu0 %v3356, 91
    %v3900 = vpop.permute.xlu0 %3899
    %3901 = vrot.lane.b32.xlu0 %v3357, 91
    %v3902 = vpop.permute.xlu0 %3901
    %3903 = vrot.lane.b32.xlu0 %v3358, 91
    %v3904 = vpop.permute.xlu0 %3903
    %3905 = vrot.lane.b32.xlu0 %v3359, 91
    %v3906 = vpop.permute.xlu0 %3905
    %3907 = vrot.lane.b32.xlu0 %v3360, 91
    %v3908 = vpop.permute.xlu0 %3907
    %3909 = vrot.lane.b32.xlu0 %v3361, 91
    %v3910 = vpop.permute.xlu0 %3909
    %3911 = vrot.lane.b32.xlu0 %v3362, 91
    %v3912 = vpop.permute.xlu0 %3911
    %3913 = vrot.lane.b32.xlu0 %v3364, 91
    %v3914 = vpop.permute.xlu0 %3913
    %3915 = vrot.lane.b32.xlu0 %v3365, 91
    %v3916 = vpop.permute.xlu0 %3915
    %3917 = vrot.lane.b32.xlu0 %v3366, 91
    %v3918 = vpop.permute.xlu0 %3917
    %3919 = vrot.lane.b32.xlu0 %v3367, 91
    %v3920 = vpop.permute.xlu0 %3919
    %3921 = vrot.lane.b32.xlu0 %v3368, 91
    %v3922 = vpop.permute.xlu0 %3921
    %3923 = vrot.lane.b32.xlu0 %v3369, 91
    %v3924 = vpop.permute.xlu0 %3923
    %3925 = vrot.lane.b32.xlu0 %v3370, 91
    %v3926 = vpop.permute.xlu0 %3925
    %v3927 = vsel %vm240, %v3872, %v3874
    %v3928 = vsel %vm240, %v3874, %v3876
    %v3929 = vsel %vm240, %v3876, %v3878
    %v3930 = vsel %vm240, %v3878, %v3880
    %v3931 = vsel %vm240, %v3880, %v3882
    %v3932 = vsel %vm240, %v3882, %v3884
    %v3933 = vsel %vm240, %v3886, %v3888
    %v3934 = vsel %vm240, %v3888, %v3890
    %v3935 = vsel %vm240, %v3890, %v3892
    %v3936 = vsel %vm240, %v3892, %v3894
    %v3937 = vsel %vm240, %v3894, %v3896
    %v3938 = vsel %vm240, %v3896, %v3898
    %v3939 = vsel %vm240, %v3900, %v3902
    %v3940 = vsel %vm240, %v3902, %v3904
    %v3941 = vsel %vm240, %v3904, %v3906
    %v3942 = vsel %vm240, %v3906, %v3908
    %v3943 = vsel %vm240, %v3908, %v3910
    %v3944 = vsel %vm240, %v3910, %v3912
    %v3945 = vsel %vm240, %v3914, %v3916
    %v3946 = vsel %vm240, %v3916, %v3918
    %v3947 = vsel %vm240, %v3918, %v3920
    %v3948 = vsel %vm240, %v3920, %v3922
    %v3949 = vsel %vm240, %v3922, %v3924
    %v3950 = vsel %vm240, %v3924, %v3926
    %3951 = vrot.lane.b32.xlu0 %v3340, 90
    %v3952 = vpop.permute.xlu0 %3951
    %3953 = vrot.lane.b32.xlu0 %v3341, 90
    %v3954 = vpop.permute.xlu0 %3953
    %3955 = vrot.lane.b32.xlu0 %v3342, 90
    %v3956 = vpop.permute.xlu0 %3955
    %3957 = vrot.lane.b32.xlu0 %v3343, 90
    %v3958 = vpop.permute.xlu0 %3957
    %3959 = vrot.lane.b32.xlu0 %v3344, 90
    %v3960 = vpop.permute.xlu0 %3959
    %3961 = vrot.lane.b32.xlu0 %v3345, 90
    %v3962 = vpop.permute.xlu0 %3961
    %3963 = vrot.lane.b32.xlu0 %v3346, 90
    %v3964 = vpop.permute.xlu0 %3963
    %3965 = vrot.lane.b32.xlu0 %v3348, 90
    %v3966 = vpop.permute.xlu0 %3965
    %3967 = vrot.lane.b32.xlu0 %v3349, 90
    %v3968 = vpop.permute.xlu0 %3967
    %3969 = vrot.lane.b32.xlu0 %v3350, 90
    %v3970 = vpop.permute.xlu0 %3969
    %3971 = vrot.lane.b32.xlu0 %v3351, 90
    %v3972 = vpop.permute.xlu0 %3971
    %3973 = vrot.lane.b32.xlu0 %v3352, 90
    %v3974 = vpop.permute.xlu0 %3973
    %3975 = vrot.lane.b32.xlu0 %v3353, 90
    %v3976 = vpop.permute.xlu0 %3975
    %3977 = vrot.lane.b32.xlu0 %v3354, 90
    %v3978 = vpop.permute.xlu0 %3977
    %3979 = vrot.lane.b32.xlu0 %v3356, 90
    %v3980 = vpop.permute.xlu0 %3979
    %3981 = vrot.lane.b32.xlu0 %v3357, 90
    %v3982 = vpop.permute.xlu0 %3981
    %3983 = vrot.lane.b32.xlu0 %v3358, 90
    %v3984 = vpop.permute.xlu0 %3983
    %3985 = vrot.lane.b32.xlu0 %v3359, 90
    %v3986 = vpop.permute.xlu0 %3985
    %3987 = vrot.lane.b32.xlu0 %v3360, 90
    %v3988 = vpop.permute.xlu0 %3987
    %3989 = vrot.lane.b32.xlu0 %v3361, 90
    %v3990 = vpop.permute.xlu0 %3989
    %3991 = vrot.lane.b32.xlu0 %v3362, 90
    %v3992 = vpop.permute.xlu0 %3991
    %3993 = vrot.lane.b32.xlu0 %v3364, 90
    %v3994 = vpop.permute.xlu0 %3993
    %3995 = vrot.lane.b32.xlu0 %v3365, 90
    %v3996 = vpop.permute.xlu0 %3995
    %3997 = vrot.lane.b32.xlu0 %v3366, 90
    %v3998 = vpop.permute.xlu0 %3997
    %3999 = vrot.lane.b32.xlu0 %v3367, 90
    %v4000 = vpop.permute.xlu0 %3999
    %4001 = vrot.lane.b32.xlu0 %v3368, 90
    %v4002 = vpop.permute.xlu0 %4001
    %4003 = vrot.lane.b32.xlu0 %v3369, 90
    %v4004 = vpop.permute.xlu0 %4003
    %4005 = vrot.lane.b32.xlu0 %v3370, 90
    %v4006 = vpop.permute.xlu0 %4005
    %v4007 = vsel %vm261, %v3952, %v3954
    %v4008 = vsel %vm261, %v3954, %v3956
    %v4009 = vsel %vm261, %v3956, %v3958
    %v4010 = vsel %vm261, %v3958, %v3960
    %v4011 = vsel %vm261, %v3960, %v3962
    %v4012 = vsel %vm261, %v3962, %v3964
    %v4013 = vsel %vm261, %v3966, %v3968
    %v4014 = vsel %vm261, %v3968, %v3970
    %v4015 = vsel %vm261, %v3970, %v3972
    %v4016 = vsel %vm261, %v3972, %v3974
    %v4017 = vsel %vm261, %v3974, %v3976
    %v4018 = vsel %vm261, %v3976, %v3978
    %v4019 = vsel %vm261, %v3980, %v3982
    %v4020 = vsel %vm261, %v3982, %v3984
    %v4021 = vsel %vm261, %v3984, %v3986
    %v4022 = vsel %vm261, %v3986, %v3988
    %v4023 = vsel %vm261, %v3988, %v3990
    %v4024 = vsel %vm261, %v3990, %v3992
    %v4025 = vsel %vm261, %v3994, %v3996
    %v4026 = vsel %vm261, %v3996, %v3998
    %v4027 = vsel %vm261, %v3998, %v4000
    %v4028 = vsel %vm261, %v4000, %v4002
    %v4029 = vsel %vm261, %v4002, %v4004
    %v4030 = vsel %vm261, %v4004, %v4006
    %v4031 = vld [vmem:[%s5] sm:$0x7]
    %v4033 = vperm.slane %v4031, 0
    %v4034 = vperm.slane %v4031, 1
    %v4035 = vperm.slane %v4031, 2
    %4038 = vrot.lane.b32.xlu0 %v3339, 19
    %v4039 = vpop.permute.xlu0 %4038
    %4040 = vrot.lane.b32.xlu0 %v3340, 19
    %v4041 = vpop.permute.xlu0 %4040
    %4042 = vrot.lane.b32.xlu0 %v3341, 19
    %v4043 = vpop.permute.xlu0 %4042
    %4044 = vrot.lane.b32.xlu0 %v3342, 19
    %v4045 = vpop.permute.xlu0 %4044
    %4046 = vrot.lane.b32.xlu0 %v3343, 19
    %v4047 = vpop.permute.xlu0 %4046
    %4048 = vrot.lane.b32.xlu0 %v3344, 19
    %v4049 = vpop.permute.xlu0 %4048
    %4050 = vrot.lane.b32.xlu0 %v3345, 19
    %v4051 = vpop.permute.xlu0 %4050
    %4052 = vrot.lane.b32.xlu0 %v3347, 19
    %v4053 = vpop.permute.xlu0 %4052
    %4054 = vrot.lane.b32.xlu0 %v3348, 19
    %v4055 = vpop.permute.xlu0 %4054
    %4056 = vrot.lane.b32.xlu0 %v3349, 19
    %v4057 = vpop.permute.xlu0 %4056
    %4058 = vrot.lane.b32.xlu0 %v3350, 19
    %v4059 = vpop.permute.xlu0 %4058
    %4060 = vrot.lane.b32.xlu0 %v3351, 19
    %v4061 = vpop.permute.xlu0 %4060
    %4062 = vrot.lane.b32.xlu0 %v3352, 19
    %v4063 = vpop.permute.xlu0 %4062
    %4064 = vrot.lane.b32.xlu0 %v3353, 19
    %v4065 = vpop.permute.xlu0 %4064
    %4066 = vrot.lane.b32.xlu0 %v3355, 19
    %v4067 = vpop.permute.xlu0 %4066
    %4068 = vrot.lane.b32.xlu0 %v3356, 19
    %v4069 = vpop.permute.xlu0 %4068
    %4070 = vrot.lane.b32.xlu0 %v3357, 19
    %v4071 = vpop.permute.xlu0 %4070
    %4072 = vrot.lane.b32.xlu0 %v3358, 19
    %v4073 = vpop.permute.xlu0 %4072
    %4074 = vrot.lane.b32.xlu0 %v3359, 19
    %v4075 = vpop.permute.xlu0 %4074
    %4076 = vrot.lane.b32.xlu0 %v3360, 19
    %v4077 = vpop.permute.xlu0 %4076
    %4078 = vrot.lane.b32.xlu0 %v3361, 19
    %v4079 = vpop.permute.xlu0 %4078
    %4080 = vrot.lane.b32.xlu0 %v3363, 19
    %v4081 = vpop.permute.xlu0 %4080
    %4082 = vrot.lane.b32.xlu0 %v3364, 19
    %v4083 = vpop.permute.xlu0 %4082
    %4084 = vrot.lane.b32.xlu0 %v3365, 19
    %v4085 = vpop.permute.xlu0 %4084
    %4086 = vrot.lane.b32.xlu0 %v3366, 19
    %v4087 = vpop.permute.xlu0 %4086
    %4088 = vrot.lane.b32.xlu0 %v3367, 19
    %v4089 = vpop.permute.xlu0 %4088
    %4090 = vrot.lane.b32.xlu0 %v3368, 19
    %v4091 = vpop.permute.xlu0 %4090
    %4092 = vrot.lane.b32.xlu0 %v3369, 19
    %v4093 = vpop.permute.xlu0 %4092
    %4094 = vrot.lane.b32.xlu0 %v3455, 19
    %v4095 = vpop.permute.xlu0 %4094
    %4096 = vrot.lane.b32.xlu0 %v3456, 19
    %v4097 = vpop.permute.xlu0 %4096
    %4098 = vrot.lane.b32.xlu0 %v3457, 19
    %v4099 = vpop.permute.xlu0 %4098
    %4100 = vrot.lane.b32.xlu0 %v3458, 19
    %v4101 = vpop.permute.xlu0 %4100
    %4102 = vrot.lane.b32.xlu0 %v3459, 19
    %v4103 = vpop.permute.xlu0 %4102
    %4104 = vrot.lane.b32.xlu0 %v3460, 19
    %v4105 = vpop.permute.xlu0 %4104
    %4106 = vrot.lane.b32.xlu0 %v3412, 19
    %v4107 = vpop.permute.xlu0 %4106
    %4108 = vrot.lane.b32.xlu0 %v3461, 19
    %v4109 = vpop.permute.xlu0 %4108
    %4110 = vrot.lane.b32.xlu0 %v3462, 19
    %v4111 = vpop.permute.xlu0 %4110
    %4112 = vrot.lane.b32.xlu0 %v3463, 19
    %v4113 = vpop.permute.xlu0 %4112
    %4114 = vrot.lane.b32.xlu0 %v3464, 19
    %v4115 = vpop.permute.xlu0 %4114
    %4116 = vrot.lane.b32.xlu0 %v3465, 19
    %v4117 = vpop.permute.xlu0 %4116
    %4118 = vrot.lane.b32.xlu0 %v3466, 19
    %v4119 = vpop.permute.xlu0 %4118
    %4120 = vrot.lane.b32.xlu0 %v3426, 19
    %v4121 = vpop.permute.xlu0 %4120
    %4122 = vrot.lane.b32.xlu0 %v3467, 19
    %v4123 = vpop.permute.xlu0 %4122
    %4124 = vrot.lane.b32.xlu0 %v3468, 19
    %v4125 = vpop.permute.xlu0 %4124
    %4126 = vrot.lane.b32.xlu0 %v3469, 19
    %v4127 = vpop.permute.xlu0 %4126
    %4128 = vrot.lane.b32.xlu0 %v3470, 19
    %v4129 = vpop.permute.xlu0 %4128
    %4130 = vrot.lane.b32.xlu0 %v3471, 19
    %v4131 = vpop.permute.xlu0 %4130
    %4132 = vrot.lane.b32.xlu0 %v3472, 19
    %v4133 = vpop.permute.xlu0 %4132
    %4134 = vrot.lane.b32.xlu0 %v3440, 19
    %v4135 = vpop.permute.xlu0 %4134
    %4136 = vrot.lane.b32.xlu0 %v3473, 19
    %v4137 = vpop.permute.xlu0 %4136
    %4138 = vrot.lane.b32.xlu0 %v3474, 19
    %v4139 = vpop.permute.xlu0 %4138
    %4140 = vrot.lane.b32.xlu0 %v3475, 19
    %v4141 = vpop.permute.xlu0 %4140
    %4142 = vrot.lane.b32.xlu0 %v3476, 19
    %v4143 = vpop.permute.xlu0 %4142
    %4144 = vrot.lane.b32.xlu0 %v3477, 19
    %v4145 = vpop.permute.xlu0 %4144
    %4146 = vrot.lane.b32.xlu0 %v3478, 19
    %v4147 = vpop.permute.xlu0 %4146
    %4148 = vrot.lane.b32.xlu0 %v3454, 19
    %v4149 = vpop.permute.xlu0 %4148
    %4150 = vrot.lane.b32.xlu0 %v3535, 19
    %v4151 = vpop.permute.xlu0 %4150
    %4152 = vrot.lane.b32.xlu0 %v3536, 19
    %v4153 = vpop.permute.xlu0 %4152
    %4154 = vrot.lane.b32.xlu0 %v3537, 19
    %v4155 = vpop.permute.xlu0 %4154
    %4156 = vrot.lane.b32.xlu0 %v3538, 19
    %v4157 = vpop.permute.xlu0 %4156
    %4158 = vrot.lane.b32.xlu0 %v3539, 19
    %v4159 = vpop.permute.xlu0 %4158
    %4160 = vrot.lane.b32.xlu0 %v3540, 19
    %v4161 = vpop.permute.xlu0 %4160
    %4162 = vrot.lane.b32.xlu0 %v3492, 19
    %v4163 = vpop.permute.xlu0 %4162
    %4164 = vrot.lane.b32.xlu0 %v3541, 19
    %v4165 = vpop.permute.xlu0 %4164
    %4166 = vrot.lane.b32.xlu0 %v3542, 19
    %v4167 = vpop.permute.xlu0 %4166
    %4168 = vrot.lane.b32.xlu0 %v3543, 19
    %v4169 = vpop.permute.xlu0 %4168
    %4170 = vrot.lane.b32.xlu0 %v3544, 19
    %v4171 = vpop.permute.xlu0 %4170
    %4172 = vrot.lane.b32.xlu0 %v3545, 19
    %v4173 = vpop.permute.xlu0 %4172
    %4174 = vrot.lane.b32.xlu0 %v3546, 19
    %v4175 = vpop.permute.xlu0 %4174
    %4176 = vrot.lane.b32.xlu0 %v3506, 19
    %v4177 = vpop.permute.xlu0 %4176
    %4178 = vrot.lane.b32.xlu0 %v3547, 19
    %v4179 = vpop.permute.xlu0 %4178
    %4180 = vrot.lane.b32.xlu0 %v3548, 19
    %v4181 = vpop.permute.xlu0 %4180
    %4182 = vrot.lane.b32.xlu0 %v3549, 19
    %v4183 = vpop.permute.xlu0 %4182
    %4184 = vrot.lane.b32.xlu0 %v3550, 19
    %v4185 = vpop.permute.xlu0 %4184
    %4186 = vrot.lane.b32.xlu0 %v3551, 19
    %v4187 = vpop.permute.xlu0 %4186
    %4188 = vrot.lane.b32.xlu0 %v3552, 19
    %v4189 = vpop.permute.xlu0 %4188
    %4190 = vrot.lane.b32.xlu0 %v3520, 19
    %v4191 = vpop.permute.xlu0 %4190
    %4192 = vrot.lane.b32.xlu0 %v3553, 19
    %v4193 = vpop.permute.xlu0 %4192
    %4194 = vrot.lane.b32.xlu0 %v3554, 19
    %v4195 = vpop.permute.xlu0 %4194
    %4196 = vrot.lane.b32.xlu0 %v3555, 19
    %v4197 = vpop.permute.xlu0 %4196
    %4198 = vrot.lane.b32.xlu0 %v3556, 19
    %v4199 = vpop.permute.xlu0 %4198
    %4200 = vrot.lane.b32.xlu0 %v3557, 19
    %v4201 = vpop.permute.xlu0 %4200
    %4202 = vrot.lane.b32.xlu0 %v3558, 19
    %v4203 = vpop.permute.xlu0 %4202
    %4204 = vrot.lane.b32.xlu0 %v3534, 19
    %v4205 = vpop.permute.xlu0 %4204
    %4206 = vrot.lane.b32.xlu0 %v3615, 19
    %v4207 = vpop.permute.xlu0 %4206
    %4208 = vrot.lane.b32.xlu0 %v3616, 19
    %v4209 = vpop.permute.xlu0 %4208
    %4210 = vrot.lane.b32.xlu0 %v3617, 19
    %v4211 = vpop.permute.xlu0 %4210
    %4212 = vrot.lane.b32.xlu0 %v3618, 19
    %v4213 = vpop.permute.xlu0 %4212
    %4214 = vrot.lane.b32.xlu0 %v3619, 19
    %v4215 = vpop.permute.xlu0 %4214
    %4216 = vrot.lane.b32.xlu0 %v3620, 19
    %v4217 = vpop.permute.xlu0 %4216
    %4218 = vrot.lane.b32.xlu0 %v3572, 19
    %v4219 = vpop.permute.xlu0 %4218
    %4220 = vrot.lane.b32.xlu0 %v3621, 19
    %v4221 = vpop.permute.xlu0 %4220
    %4222 = vrot.lane.b32.xlu0 %v3622, 19
    %v4223 = vpop.permute.xlu0 %4222
    %4224 = vrot.lane.b32.xlu0 %v3623, 19
    %v4225 = vpop.permute.xlu0 %4224
    %4226 = vrot.lane.b32.xlu0 %v3624, 19
    %v4227 = vpop.permute.xlu0 %4226
    %4228 = vrot.lane.b32.xlu0 %v3625, 19
    %v4229 = vpop.permute.xlu0 %4228
    %4230 = vrot.lane.b32.xlu0 %v3626, 19
    %v4231 = vpop.permute.xlu0 %4230
    %4232 = vrot.lane.b32.xlu0 %v3586, 19
    %v4233 = vpop.permute.xlu0 %4232
    %4234 = vrot.lane.b32.xlu0 %v3627, 19
    %v4235 = vpop.permute.xlu0 %4234
    %4236 = vrot.lane.b32.xlu0 %v3628, 19
    %v4237 = vpop.permute.xlu0 %4236
    %4238 = vrot.lane.b32.xlu0 %v3629, 19
    %v4239 = vpop.permute.xlu0 %4238
    %4240 = vrot.lane.b32.xlu0 %v3630, 19
    %v4241 = vpop.permute.xlu0 %4240
    %4242 = vrot.lane.b32.xlu0 %v3631, 19
    %v4243 = vpop.permute.xlu0 %4242
    %4244 = vrot.lane.b32.xlu0 %v3632, 19
    %v4245 = vpop.permute.xlu0 %4244
    %4246 = vrot.lane.b32.xlu0 %v3600, 19
    %v4247 = vpop.permute.xlu0 %4246
    %4248 = vrot.lane.b32.xlu0 %v3633, 19
    %v4249 = vpop.permute.xlu0 %4248
    %4250 = vrot.lane.b32.xlu0 %v3634, 19
    %v4251 = vpop.permute.xlu0 %4250
    %4252 = vrot.lane.b32.xlu0 %v3635, 19
    %v4253 = vpop.permute.xlu0 %4252
    %4254 = vrot.lane.b32.xlu0 %v3636, 19
    %v4255 = vpop.permute.xlu0 %4254
    %4256 = vrot.lane.b32.xlu0 %v3637, 19
    %v4257 = vpop.permute.xlu0 %4256
    %4258 = vrot.lane.b32.xlu0 %v3638, 19
    %v4259 = vpop.permute.xlu0 %4258
    %4260 = vrot.lane.b32.xlu0 %v3614, 19
    %v4261 = vpop.permute.xlu0 %4260
    %4262 = vrot.lane.b32.xlu0 %v3640, 19
    %v4263 = vpop.permute.xlu0 %4262
    %4264 = vrot.lane.b32.xlu0 %v3687, 19
    %v4265 = vpop.permute.xlu0 %4264
    %4266 = vrot.lane.b32.xlu0 %v3688, 19
    %v4267 = vpop.permute.xlu0 %4266
    %4268 = vrot.lane.b32.xlu0 %v3689, 19
    %v4269 = vpop.permute.xlu0 %4268
    %4270 = vrot.lane.b32.xlu0 %v3690, 19
    %v4271 = vpop.permute.xlu0 %4270
    %4272 = vrot.lane.b32.xlu0 %v3691, 19
    %v4273 = vpop.permute.xlu0 %4272
    %4274 = vrot.lane.b32.xlu0 %v3650, 19
    %v4275 = vpop.permute.xlu0 %4274
    %4276 = vrot.lane.b32.xlu0 %v3652, 19
    %v4277 = vpop.permute.xlu0 %4276
    %4278 = vrot.lane.b32.xlu0 %v3692, 19
    %v4279 = vpop.permute.xlu0 %4278
    %4280 = vrot.lane.b32.xlu0 %v3693, 19
    %v4281 = vpop.permute.xlu0 %4280
    %4282 = vrot.lane.b32.xlu0 %v3694, 19
    %v4283 = vpop.permute.xlu0 %4282
    %4284 = vrot.lane.b32.xlu0 %v3695, 19
    %v4285 = vpop.permute.xlu0 %4284
    %4286 = vrot.lane.b32.xlu0 %v3696, 19
    %v4287 = vpop.permute.xlu0 %4286
    %4288 = vrot.lane.b32.xlu0 %v3662, 19
    %v4289 = vpop.permute.xlu0 %4288
    %4290 = vrot.lane.b32.xlu0 %v3664, 19
    %v4291 = vpop.permute.xlu0 %4290
    %4292 = vrot.lane.b32.xlu0 %v3697, 19
    %v4293 = vpop.permute.xlu0 %4292
    %4294 = vrot.lane.b32.xlu0 %v3698, 19
    %v4295 = vpop.permute.xlu0 %4294
    %4296 = vrot.lane.b32.xlu0 %v3699, 19
    %v4297 = vpop.permute.xlu0 %4296
    %4298 = vrot.lane.b32.xlu0 %v3700, 19
    %v4299 = vpop.permute.xlu0 %4298
    %4300 = vrot.lane.b32.xlu0 %v3701, 19
    %v4301 = vpop.permute.xlu0 %4300
    %4302 = vrot.lane.b32.xlu0 %v3674, 19
    %v4303 = vpop.permute.xlu0 %4302
    %4304 = vrot.lane.b32.xlu0 %v3676, 19
    %v4305 = vpop.permute.xlu0 %4304
    %4306 = vrot.lane.b32.xlu0 %v3702, 19
    %v4307 = vpop.permute.xlu0 %4306
    %4308 = vrot.lane.b32.xlu0 %v3703, 19
    %v4309 = vpop.permute.xlu0 %4308
    %4310 = vrot.lane.b32.xlu0 %v3704, 19
    %v4311 = vpop.permute.xlu0 %4310
    %4312 = vrot.lane.b32.xlu0 %v3705, 19
    %v4313 = vpop.permute.xlu0 %4312
    %4314 = vrot.lane.b32.xlu0 %v3706, 19
    %v4315 = vpop.permute.xlu0 %4314
    %4316 = vrot.lane.b32.xlu0 %v3686, 19
    %v4317 = vpop.permute.xlu0 %4316
    %4318 = vrot.lane.b32.xlu0 %v3712, 19
    %v4319 = vpop.permute.xlu0 %4318
    %4320 = vrot.lane.b32.xlu0 %v3767, 19
    %v4321 = vpop.permute.xlu0 %4320
    %4322 = vrot.lane.b32.xlu0 %v3768, 19
    %v4323 = vpop.permute.xlu0 %4322
    %4324 = vrot.lane.b32.xlu0 %v3769, 19
    %v4325 = vpop.permute.xlu0 %4324
    %4326 = vrot.lane.b32.xlu0 %v3770, 19
    %v4327 = vpop.permute.xlu0 %4326
    %4328 = vrot.lane.b32.xlu0 %v3771, 19
    %v4329 = vpop.permute.xlu0 %4328
    %4330 = vrot.lane.b32.xlu0 %v3772, 19
    %v4331 = vpop.permute.xlu0 %4330
    %4332 = vrot.lane.b32.xlu0 %v3726, 19
    %v4333 = vpop.permute.xlu0 %4332
    %4334 = vrot.lane.b32.xlu0 %v3773, 19
    %v4335 = vpop.permute.xlu0 %4334
    %4336 = vrot.lane.b32.xlu0 %v3774, 19
    %v4337 = vpop.permute.xlu0 %4336
    %4338 = vrot.lane.b32.xlu0 %v3775, 19
    %v4339 = vpop.permute.xlu0 %4338
    %4340 = vrot.lane.b32.xlu0 %v3776, 19
    %v4341 = vpop.permute.xlu0 %4340
    %4342 = vrot.lane.b32.xlu0 %v3777, 19
    %v4343 = vpop.permute.xlu0 %4342
    %4344 = vrot.lane.b32.xlu0 %v3778, 19
    %v4345 = vpop.permute.xlu0 %4344
    %4346 = vrot.lane.b32.xlu0 %v3740, 19
    %v4347 = vpop.permute.xlu0 %4346
    %4348 = vrot.lane.b32.xlu0 %v3779, 19
    %v4349 = vpop.permute.xlu0 %4348
    %4350 = vrot.lane.b32.xlu0 %v3780, 19
    %v4351 = vpop.permute.xlu0 %4350
    %4352 = vrot.lane.b32.xlu0 %v3781, 19
    %v4353 = vpop.permute.xlu0 %4352
    %4354 = vrot.lane.b32.xlu0 %v3782, 19
    %v4355 = vpop.permute.xlu0 %4354
    %4356 = vrot.lane.b32.xlu0 %v3783, 19
    %v4357 = vpop.permute.xlu0 %4356
    %4358 = vrot.lane.b32.xlu0 %v3784, 19
    %v4359 = vpop.permute.xlu0 %4358
    %4360 = vrot.lane.b32.xlu0 %v3754, 19
    %v4361 = vpop.permute.xlu0 %4360
    %4362 = vrot.lane.b32.xlu0 %v3785, 19
    %v4363 = vpop.permute.xlu0 %4362
    %4364 = vrot.lane.b32.xlu0 %v3786, 19
    %v4365 = vpop.permute.xlu0 %4364
    %4366 = vrot.lane.b32.xlu0 %v3787, 19
    %v4367 = vpop.permute.xlu0 %4366
    %4368 = vrot.lane.b32.xlu0 %v3788, 19
    %v4369 = vpop.permute.xlu0 %4368
    %4370 = vrot.lane.b32.xlu0 %v3789, 19
    %v4371 = vpop.permute.xlu0 %4370
    %4372 = vrot.lane.b32.xlu0 %v3790, 19
    %v4373 = vpop.permute.xlu0 %4372
    %4374 = vrot.lane.b32.xlu0 %v3792, 19
    %v4375 = vpop.permute.xlu0 %4374
    %4376 = vrot.lane.b32.xlu0 %v3847, 19
    %v4377 = vpop.permute.xlu0 %4376
    %4378 = vrot.lane.b32.xlu0 %v3848, 19
    %v4379 = vpop.permute.xlu0 %4378
    %4380 = vrot.lane.b32.xlu0 %v3849, 19
    %v4381 = vpop.permute.xlu0 %4380
    %4382 = vrot.lane.b32.xlu0 %v3850, 19
    %v4383 = vpop.permute.xlu0 %4382
    %4384 = vrot.lane.b32.xlu0 %v3851, 19
    %v4385 = vpop.permute.xlu0 %4384
    %4386 = vrot.lane.b32.xlu0 %v3852, 19
    %v4387 = vpop.permute.xlu0 %4386
    %4388 = vrot.lane.b32.xlu0 %v3806, 19
    %v4389 = vpop.permute.xlu0 %4388
    %4390 = vrot.lane.b32.xlu0 %v3853, 19
    %v4391 = vpop.permute.xlu0 %4390
    %4392 = vrot.lane.b32.xlu0 %v3854, 19
    %v4393 = vpop.permute.xlu0 %4392
    %4394 = vrot.lane.b32.xlu0 %v3855, 19
    %v4395 = vpop.permute.xlu0 %4394
    %4396 = vrot.lane.b32.xlu0 %v3856, 19
    %v4397 = vpop.permute.xlu0 %4396
    %4398 = vrot.lane.b32.xlu0 %v3857, 19
    %v4399 = vpop.permute.xlu0 %4398
    %4400 = vrot.lane.b32.xlu0 %v3858, 19
    %v4401 = vpop.permute.xlu0 %4400
    %4402 = vrot.lane.b32.xlu0 %v3820, 19
    %v4403 = vpop.permute.xlu0 %4402
    %4404 = vrot.lane.b32.xlu0 %v3859, 19
    %v4405 = vpop.permute.xlu0 %4404
    %4406 = vrot.lane.b32.xlu0 %v3860, 19
    %v4407 = vpop.permute.xlu0 %4406
    %4408 = vrot.lane.b32.xlu0 %v3861, 19
    %v4409 = vpop.permute.xlu0 %4408
    %4410 = vrot.lane.b32.xlu0 %v3862, 19
    %v4411 = vpop.permute.xlu0 %4410
    %4412 = vrot.lane.b32.xlu0 %v3863, 19
    %v4413 = vpop.permute.xlu0 %4412
    %4414 = vrot.lane.b32.xlu0 %v3864, 19
    %v4415 = vpop.permute.xlu0 %4414
    %4416 = vrot.lane.b32.xlu0 %v3834, 19
    %v4417 = vpop.permute.xlu0 %4416
    %4418 = vrot.lane.b32.xlu0 %v3865, 19
    %v4419 = vpop.permute.xlu0 %4418
    %4420 = vrot.lane.b32.xlu0 %v3866, 19
    %v4421 = vpop.permute.xlu0 %4420
    %4422 = vrot.lane.b32.xlu0 %v3867, 19
    %v4423 = vpop.permute.xlu0 %4422
    %4424 = vrot.lane.b32.xlu0 %v3868, 19
    %v4425 = vpop.permute.xlu0 %4424
    %4426 = vrot.lane.b32.xlu0 %v3869, 19
    %v4427 = vpop.permute.xlu0 %4426
    %4428 = vrot.lane.b32.xlu0 %v3870, 19
    %v4429 = vpop.permute.xlu0 %4428
    %4430 = vrot.lane.b32.xlu0 %v3872, 19
    %v4431 = vpop.permute.xlu0 %4430
    %4432 = vrot.lane.b32.xlu0 %v3927, 19
    %v4433 = vpop.permute.xlu0 %4432
    %4434 = vrot.lane.b32.xlu0 %v3928, 19
    %v4435 = vpop.permute.xlu0 %4434
    %4436 = vrot.lane.b32.xlu0 %v3929, 19
    %v4437 = vpop.permute.xlu0 %4436
    %4438 = vrot.lane.b32.xlu0 %v3930, 19
    %v4439 = vpop.permute.xlu0 %4438
    %4440 = vrot.lane.b32.xlu0 %v3931, 19
    %v4441 = vpop.permute.xlu0 %4440
    %4442 = vrot.lane.b32.xlu0 %v3932, 19
    %v4443 = vpop.permute.xlu0 %4442
    %4444 = vrot.lane.b32.xlu0 %v3886, 19
    %v4445 = vpop.permute.xlu0 %4444
    %4446 = vrot.lane.b32.xlu0 %v3933, 19
    %v4447 = vpop.permute.xlu0 %4446
    %4448 = vrot.lane.b32.xlu0 %v3934, 19
    %v4449 = vpop.permute.xlu0 %4448
    %4450 = vrot.lane.b32.xlu0 %v3935, 19
    %v4451 = vpop.permute.xlu0 %4450
    %4452 = vrot.lane.b32.xlu0 %v3936, 19
    %v4453 = vpop.permute.xlu0 %4452
    %4454 = vrot.lane.b32.xlu0 %v3937, 19
    %v4455 = vpop.permute.xlu0 %4454
    %4456 = vrot.lane.b32.xlu0 %v3938, 19
    %v4457 = vpop.permute.xlu0 %4456
    %4458 = vrot.lane.b32.xlu0 %v3900, 19
    %v4459 = vpop.permute.xlu0 %4458
    %4460 = vrot.lane.b32.xlu0 %v3939, 19
    %v4461 = vpop.permute.xlu0 %4460
    %4462 = vrot.lane.b32.xlu0 %v3940, 19
    %v4463 = vpop.permute.xlu0 %4462
    %4464 = vrot.lane.b32.xlu0 %v3941, 19
    %v4465 = vpop.permute.xlu0 %4464
    %4466 = vrot.lane.b32.xlu0 %v3942, 19
    %v4467 = vpop.permute.xlu0 %4466
    %4468 = vrot.lane.b32.xlu0 %v3943, 19
    %v4469 = vpop.permute.xlu0 %4468
    %4470 = vrot.lane.b32.xlu0 %v3944, 19
    %v4471 = vpop.permute.xlu0 %4470
    %4472 = vrot.lane.b32.xlu0 %v3914, 19
    %v4473 = vpop.permute.xlu0 %4472
    %4474 = vrot.lane.b32.xlu0 %v3945, 19
    %v4475 = vpop.permute.xlu0 %4474
    %4476 = vrot.lane.b32.xlu0 %v3946, 19
    %v4477 = vpop.permute.xlu0 %4476
    %4478 = vrot.lane.b32.xlu0 %v3947, 19
    %v4479 = vpop.permute.xlu0 %4478
    %4480 = vrot.lane.b32.xlu0 %v3948, 19
    %v4481 = vpop.permute.xlu0 %4480
    %4482 = vrot.lane.b32.xlu0 %v3949, 19
    %v4483 = vpop.permute.xlu0 %4482
    %4484 = vrot.lane.b32.xlu0 %v3950, 19
    %v4485 = vpop.permute.xlu0 %4484
    %4486 = vrot.lane.b32.xlu0 %v3952, 19
    %v4487 = vpop.permute.xlu0 %4486
    %4488 = vrot.lane.b32.xlu0 %v4007, 19
    %v4489 = vpop.permute.xlu0 %4488
    %4490 = vrot.lane.b32.xlu0 %v4008, 19
    %v4491 = vpop.permute.xlu0 %4490
    %4492 = vrot.lane.b32.xlu0 %v4009, 19
    %v4493 = vpop.permute.xlu0 %4492
    %4494 = vrot.lane.b32.xlu0 %v4010, 19
    %v4495 = vpop.permute.xlu0 %4494
    %4496 = vrot.lane.b32.xlu0 %v4011, 19
    %v4497 = vpop.permute.xlu0 %4496
    %4498 = vrot.lane.b32.xlu0 %v4012, 19
    %v4499 = vpop.permute.xlu0 %4498
    %4500 = vrot.lane.b32.xlu0 %v3966, 19
    %v4501 = vpop.permute.xlu0 %4500
    %4502 = vrot.lane.b32.xlu0 %v4013, 19
    %v4503 = vpop.permute.xlu0 %4502
    %4504 = vrot.lane.b32.xlu0 %v4014, 19
    %v4505 = vpop.permute.xlu0 %4504
    %4506 = vrot.lane.b32.xlu0 %v4015, 19
    %v4507 = vpop.permute.xlu0 %4506
    %4508 = vrot.lane.b32.xlu0 %v4016, 19
    %v4509 = vpop.permute.xlu0 %4508
    %4510 = vrot.lane.b32.xlu0 %v4017, 19
    %v4511 = vpop.permute.xlu0 %4510
    %4512 = vrot.lane.b32.xlu0 %v4018, 19
    %v4513 = vpop.permute.xlu0 %4512
    %4514 = vrot.lane.b32.xlu0 %v3980, 19
    %v4515 = vpop.permute.xlu0 %4514
    %4516 = vrot.lane.b32.xlu0 %v4019, 19
    %v4517 = vpop.permute.xlu0 %4516
    %4518 = vrot.lane.b32.xlu0 %v4020, 19
    %v4519 = vpop.permute.xlu0 %4518
    %4520 = vrot.lane.b32.xlu0 %v4021, 19
    %v4521 = vpop.permute.xlu0 %4520
    %4522 = vrot.lane.b32.xlu0 %v4022, 19
    %v4523 = vpop.permute.xlu0 %4522
    %4524 = vrot.lane.b32.xlu0 %v4023, 19
    %v4525 = vpop.permute.xlu0 %4524
    %4526 = vrot.lane.b32.xlu0 %v4024, 19
    %v4527 = vpop.permute.xlu0 %4526
    %4528 = vrot.lane.b32.xlu0 %v3994, 19
    %v4529 = vpop.permute.xlu0 %4528
    %4530 = vrot.lane.b32.xlu0 %v4025, 19
    %v4531 = vpop.permute.xlu0 %4530
    %4532 = vrot.lane.b32.xlu0 %v4026, 19
    %v4533 = vpop.permute.xlu0 %4532
    %4534 = vrot.lane.b32.xlu0 %v4027, 19
    %v4535 = vpop.permute.xlu0 %4534
    %4536 = vrot.lane.b32.xlu0 %v4028, 19
    %v4537 = vpop.permute.xlu0 %4536
    %4538 = vrot.lane.b32.xlu0 %v4029, 19
    %v4539 = vpop.permute.xlu0 %4538
    %4540 = vrot.lane.b32.xlu0 %v4030, 19
    %v4541 = vpop.permute.xlu0 %4540
    %v4542 = vsel %vm398, %v4039, %v4041
    %v4543 = vsel %vm398, %v4041, %v4043
    %v4544 = vsel %vm398, %v4043, %v4045
    %v4545 = vsel %vm398, %v4045, %v4047
    %v4546 = vsel %vm398, %v4047, %v4049
    %v4547 = vsel %vm398, %v4049, %v4051
    %v4548 = vsel %vm398, %v4053, %v4055
    %v4549 = vsel %vm398, %v4055, %v4057
    %v4550 = vsel %vm398, %v4057, %v4059
    %v4551 = vsel %vm398, %v4059, %v4061
    %v4552 = vsel %vm398, %v4061, %v4063
    %v4553 = vsel %vm398, %v4063, %v4065
    %v4554 = vsel %vm398, %v4067, %v4069
    %v4555 = vsel %vm398, %v4069, %v4071
    %v4556 = vsel %vm398, %v4071, %v4073
    %v4557 = vsel %vm398, %v4073, %v4075
    %v4558 = vsel %vm398, %v4075, %v4077
    %v4559 = vsel %vm398, %v4077, %v4079
    %v4560 = vsel %vm398, %v4081, %v4083
    %v4561 = vsel %vm398, %v4083, %v4085
    %v4562 = vsel %vm398, %v4085, %v4087
    %v4563 = vsel %vm398, %v4087, %v4089
    %v4564 = vsel %vm398, %v4089, %v4091
    %v4565 = vsel %vm398, %v4091, %v4093
    %v4566 = vsel %vm398, %v4095, %v4097
    %v4567 = vsel %vm398, %v4097, %v4099
    %v4568 = vsel %vm398, %v4099, %v4101
    %v4569 = vsel %vm398, %v4101, %v4103
    %v4570 = vsel %vm398, %v4103, %v4105
    %v4571 = vsel %vm398, %v4105, %v4107
    %v4572 = vsel %vm398, %v4109, %v4111
    %v4573 = vsel %vm398, %v4111, %v4113
    %v4574 = vsel %vm398, %v4113, %v4115
    %v4575 = vsel %vm398, %v4115, %v4117
    %v4576 = vsel %vm398, %v4117, %v4119
    %v4577 = vsel %vm398, %v4119, %v4121
    %v4578 = vsel %vm398, %v4123, %v4125
    %v4579 = vsel %vm398, %v4125, %v4127
    %v4580 = vsel %vm398, %v4127, %v4129
    %v4581 = vsel %vm398, %v4129, %v4131
    %v4582 = vsel %vm398, %v4131, %v4133
    %v4583 = vsel %vm398, %v4133, %v4135
    %v4584 = vsel %vm398, %v4137, %v4139
    %v4585 = vsel %vm398, %v4139, %v4141
    %v4586 = vsel %vm398, %v4141, %v4143
    %v4587 = vsel %vm398, %v4143, %v4145
    %v4588 = vsel %vm398, %v4145, %v4147
    %v4589 = vsel %vm398, %v4147, %v4149
    %v4590 = vsel %vm398, %v4151, %v4153
    %v4591 = vsel %vm398, %v4153, %v4155
    %v4592 = vsel %vm398, %v4155, %v4157
    %v4593 = vsel %vm398, %v4157, %v4159
    %v4594 = vsel %vm398, %v4159, %v4161
    %v4595 = vsel %vm398, %v4161, %v4163
    %v4596 = vsel %vm398, %v4165, %v4167
    %v4597 = vsel %vm398, %v4167, %v4169
    %v4598 = vsel %vm398, %v4169, %v4171
    %v4599 = vsel %vm398, %v4171, %v4173
    %v4600 = vsel %vm398, %v4173, %v4175
    %v4601 = vsel %vm398, %v4175, %v4177
    %v4602 = vsel %vm398, %v4179, %v4181
    %v4603 = vsel %vm398, %v4181, %v4183
    %v4604 = vsel %vm398, %v4183, %v4185
    %v4605 = vsel %vm398, %v4185, %v4187
    %v4606 = vsel %vm398, %v4187, %v4189
    %v4607 = vsel %vm398, %v4189, %v4191
    %v4608 = vsel %vm398, %v4193, %v4195
    %v4609 = vsel %vm398, %v4195, %v4197
    %v4610 = vsel %vm398, %v4197, %v4199
    %v4611 = vsel %vm398, %v4199, %v4201
    %v4612 = vsel %vm398, %v4201, %v4203
    %v4613 = vsel %vm398, %v4203, %v4205
    %v4614 = vsel %vm398, %v4207, %v4209
    %v4615 = vsel %vm398, %v4209, %v4211
    %v4616 = vsel %vm398, %v4211, %v4213
    %v4617 = vsel %vm398, %v4213, %v4215
    %v4618 = vsel %vm398, %v4215, %v4217
    %v4619 = vsel %vm398, %v4217, %v4219
    %v4620 = vsel %vm398, %v4221, %v4223
    %v4621 = vsel %vm398, %v4223, %v4225
    %v4622 = vsel %vm398, %v4225, %v4227
    %v4623 = vsel %vm398, %v4227, %v4229
    %v4624 = vsel %vm398, %v4229, %v4231
    %v4625 = vsel %vm398, %v4231, %v4233
    %v4626 = vsel %vm398, %v4235, %v4237
    %v4627 = vsel %vm398, %v4237, %v4239
    %v4628 = vsel %vm398, %v4239, %v4241
    %v4629 = vsel %vm398, %v4241, %v4243
    %v4630 = vsel %vm398, %v4243, %v4245
    %v4631 = vsel %vm398, %v4245, %v4247
    %v4632 = vsel %vm398, %v4249, %v4251
    %v4633 = vsel %vm398, %v4251, %v4253
    %v4634 = vsel %vm398, %v4253, %v4255
    %v4635 = vsel %vm398, %v4255, %v4257
    %v4636 = vsel %vm398, %v4257, %v4259
    %v4637 = vsel %vm398, %v4259, %v4261
    %v4638 = vsel %vm398, %v4263, %v4265
    %v4639 = vsel %vm398, %v4265, %v4267
    %v4640 = vsel %vm398, %v4267, %v4269
    %v4641 = vsel %vm398, %v4269, %v4271
    %v4642 = vsel %vm398, %v4271, %v4273
    %v4643 = vsel %vm398, %v4273, %v4275
    %v4644 = vsel %vm398, %v4277, %v4279
    %v4645 = vsel %vm398, %v4279, %v4281
    %v4646 = vsel %vm398, %v4281, %v4283
    %v4647 = vsel %vm398, %v4283, %v4285
    %v4648 = vsel %vm398, %v4285, %v4287
    %v4649 = vsel %vm398, %v4287, %v4289
    %v4650 = vsel %vm398, %v4291, %v4293
    %v4651 = vsel %vm398, %v4293, %v4295
    %v4652 = vsel %vm398, %v4295, %v4297
    %v4653 = vsel %vm398, %v4297, %v4299
    %v4654 = vsel %vm398, %v4299, %v4301
    %v4655 = vsel %vm398, %v4301, %v4303
    %v4656 = vsel %vm398, %v4305, %v4307
    %v4657 = vsel %vm398, %v4307, %v4309
    %v4658 = vsel %vm398, %v4309, %v4311
    %v4659 = vsel %vm398, %v4311, %v4313
    %v4660 = vsel %vm398, %v4313, %v4315
    %v4661 = vsel %vm398, %v4315, %v4317
    %v4662 = vsel %vm398, %v4319, %v4321
    %v4663 = vsel %vm398, %v4321, %v4323
    %v4664 = vsel %vm398, %v4323, %v4325
    %v4665 = vsel %vm398, %v4325, %v4327
    %v4666 = vsel %vm398, %v4327, %v4329
    %v4667 = vsel %vm398, %v4329, %v4331
    %v4668 = vsel %vm398, %v4333, %v4335
    %v4669 = vsel %vm398, %v4335, %v4337
    %v4670 = vsel %vm398, %v4337, %v4339
    %v4671 = vsel %vm398, %v4339, %v4341
    %v4672 = vsel %vm398, %v4341, %v4343
    %v4673 = vsel %vm398, %v4343, %v4345
    %v4674 = vsel %vm398, %v4347, %v4349
    %v4675 = vsel %vm398, %v4349, %v4351
    %v4676 = vsel %vm398, %v4351, %v4353
    %v4677 = vsel %vm398, %v4353, %v4355
    %v4678 = vsel %vm398, %v4355, %v4357
    %v4679 = vsel %vm398, %v4357, %v4359
    %v4680 = vsel %vm398, %v4361, %v4363
    %v4681 = vsel %vm398, %v4363, %v4365
    %v4682 = vsel %vm398, %v4365, %v4367
    %v4683 = vsel %vm398, %v4367, %v4369
    %v4684 = vsel %vm398, %v4369, %v4371
    %v4685 = vsel %vm398, %v4371, %v4373
    %v4686 = vsel %vm398, %v4375, %v4377
    %v4687 = vsel %vm398, %v4377, %v4379
    %v4688 = vsel %vm398, %v4379, %v4381
    %v4689 = vsel %vm398, %v4381, %v4383
    %v4690 = vsel %vm398, %v4383, %v4385
    %v4691 = vsel %vm398, %v4385, %v4387
    %v4692 = vsel %vm398, %v4389, %v4391
    %v4693 = vsel %vm398, %v4391, %v4393
    %v4694 = vsel %vm398, %v4393, %v4395
    %v4695 = vsel %vm398, %v4395, %v4397
    %v4696 = vsel %vm398, %v4397, %v4399
    %v4697 = vsel %vm398, %v4399, %v4401
    %v4698 = vsel %vm398, %v4403, %v4405
    %v4699 = vsel %vm398, %v4405, %v4407
    %v4700 = vsel %vm398, %v4407, %v4409
    %v4701 = vsel %vm398, %v4409, %v4411
    %v4702 = vsel %vm398, %v4411, %v4413
    %v4703 = vsel %vm398, %v4413, %v4415
    %v4704 = vsel %vm398, %v4417, %v4419
    %v4705 = vsel %vm398, %v4419, %v4421
    %v4706 = vsel %vm398, %v4421, %v4423
    %v4707 = vsel %vm398, %v4423, %v4425
    %v4708 = vsel %vm398, %v4425, %v4427
    %v4709 = vsel %vm398, %v4427, %v4429
    %v4710 = vsel %vm398, %v4431, %v4433
    %v4711 = vsel %vm398, %v4433, %v4435
    %v4712 = vsel %vm398, %v4435, %v4437
    %v4713 = vsel %vm398, %v4437, %v4439
    %v4714 = vsel %vm398, %v4439, %v4441
    %v4715 = vsel %vm398, %v4441, %v4443
    %v4716 = vsel %vm398, %v4445, %v4447
    %v4717 = vsel %vm398, %v4447, %v4449
    %v4718 = vsel %vm398, %v4449, %v4451
    %v4719 = vsel %vm398, %v4451, %v4453
    %v4720 = vsel %vm398, %v4453, %v4455
    %v4721 = vsel %vm398, %v4455, %v4457
    %v4722 = vsel %vm398, %v4459, %v4461
    %v4723 = vsel %vm398, %v4461, %v4463
    %v4724 = vsel %vm398, %v4463, %v4465
    %v4725 = vsel %vm398, %v4465, %v4467
    %v4726 = vsel %vm398, %v4467, %v4469
    %v4727 = vsel %vm398, %v4469, %v4471
    %v4728 = vsel %vm398, %v4473, %v4475
    %v4729 = vsel %vm398, %v4475, %v4477
    %v4730 = vsel %vm398, %v4477, %v4479
    %v4731 = vsel %vm398, %v4479, %v4481
    %v4732 = vsel %vm398, %v4481, %v4483
    %v4733 = vsel %vm398, %v4483, %v4485
    %v4734 = vsel %vm398, %v4487, %v4489
    %v4735 = vsel %vm398, %v4489, %v4491
    %v4736 = vsel %vm398, %v4491, %v4493
    %v4737 = vsel %vm398, %v4493, %v4495
    %v4738 = vsel %vm398, %v4495, %v4497
    %v4739 = vsel %vm398, %v4497, %v4499
    %v4740 = vsel %vm398, %v4501, %v4503
    %v4741 = vsel %vm398, %v4503, %v4505
    %v4742 = vsel %vm398, %v4505, %v4507
    %v4743 = vsel %vm398, %v4507, %v4509
    %v4744 = vsel %vm398, %v4509, %v4511
    %v4745 = vsel %vm398, %v4511, %v4513
    %v4746 = vsel %vm398, %v4515, %v4517
    %v4747 = vsel %vm398, %v4517, %v4519
    %v4748 = vsel %vm398, %v4519, %v4521
    %v4749 = vsel %vm398, %v4521, %v4523
    %v4750 = vsel %vm398, %v4523, %v4525
    %v4751 = vsel %vm398, %v4525, %v4527
    %v4752 = vsel %vm398, %v4529, %v4531
    %v4753 = vsel %vm398, %v4531, %v4533
    %v4754 = vsel %vm398, %v4533, %v4535
    %v4755 = vsel %vm398, %v4535, %v4537
    %v4756 = vsel %vm398, %v4537, %v4539
    %v4757 = vsel %vm398, %v4539, %v4541
    %vm4974 = vcmask 261120
    %v4975 = vsel %vm4974, %v4035, 0
    %4977 = vmatpush.msra.mxu0 %v4632
    %4978 = vmatpush.msra.mxu0 %v4626
    %4979 = vmatpush.msra.mxu0 %v4620
    %4980 = vmatpush.msra.mxu0 %v4614
    %4981 = vmatpush.msra.mxu0 %v4608
    %4982 = vmatpush.msra.mxu0 %v4602
    %4983 = vmatpush.msra.mxu0 %v4596
    %4984 = vmatpush.msra.mxu0 %v4590
    %4985 = vmatpush.msra.mxu0 %v4584
    %4986 = vmatpush.msra.mxu0 %v4578
    %4987 = vmatpush.msra.mxu0 %v4572
    %4988 = vmatpush.msra.mxu0 %v4566
    %4989 = vmatpush.msra.mxu0 %v4560
    %4990 = vmatpush.msra.mxu0 %v4554
    %4991 = vmatpush.msra.mxu0 %v4548
    %4992 = vmatpush.msra.mxu0 %v4542
    %4993 = vmatmul.f32.gmra.mxu0 %v4033
    %v4994 = vpop.f32.mrf.mxu0
    %v4995 = vadd.f32 0.0, %v4994
    %4996 = vdwg.mxu0
    %4997 = vmatpush.msra.mxu0 %v4728
    %4998 = vmatpush.msra.mxu0 %v4722
    %4999 = vmatpush.msra.mxu0 %v4716
    %5000 = vmatpush.msra.mxu0 %v4710
    %5001 = vmatpush.msra.mxu0 %v4704
    %5002 = vmatpush.msra.mxu0 %v4698
    %5003 = vmatpush.msra.mxu0 %v4692
    %5004 = vmatpush.msra.mxu0 %v4686
    %5005 = vmatpush.msra.mxu0 %v4680
    %5006 = vmatpush.msra.mxu0 %v4674
    %5007 = vmatpush.msra.mxu0 %v4668
    %5008 = vmatpush.msra.mxu0 %v4662
    %5009 = vmatpush.msra.mxu0 %v4656
    %5010 = vmatpush.msra.mxu0 %v4650
    %5011 = vmatpush.msra.mxu0 %v4644
    %5012 = vmatpush.msra.mxu0 %v4638
    %5013 = vmatmul.f32.gmra.mxu0 %v4034
    %v5014 = vpop.f32.mrf.mxu0
    %v5015 = vadd.f32 %v4995, %v5014
    %5016 = vdwg.mxu0
    %5017 = vmatpush.msra.mxu0 0.0
    %5018 = vmatpush.msra.mxu0 0.0
    %5019 = vmatpush.msra.mxu0 0.0
    %5020 = vmatpush.msra.mxu0 0.0
    %5021 = vmatpush.msra.mxu0 0.0
    %5022 = vmatpush.msra.mxu0 0.0
    %5023 = vmatpush.msra.mxu0 0.0
    %5024 = vmatpush.msra.mxu0 0.0
    %5025 = vmatpush.msra.mxu0 0.0
    %5026 = vmatpush.msra.mxu0 0.0
    %5027 = vmatpush.msra.mxu0 0.0
    %5028 = vmatpush.msra.mxu0 0.0
    %5029 = vmatpush.msra.mxu0 %v4752
    %5030 = vmatpush.msra.mxu0 %v4746
    %5031 = vmatpush.msra.mxu0 %v4740
    %5032 = vmatpush.msra.mxu0 %v4734
    %5033 = vmatmul.f32.gmra.mxu0 %v4975
    %v5034 = vpop.f32.mrf.mxu0
    %v5035 = vadd.f32 %v5015, %v5034
    %5036 = vdwg.mxu0
    %5037 = vmatpush.msra.mxu0 %v4633
    %5038 = vmatpush.msra.mxu0 %v4627
    %5039 = vmatpush.msra.mxu0 %v4621
    %5040 = vmatpush.msra.mxu0 %v4615
    %5041 = vmatpush.msra.mxu0 %v4609
    %5042 = vmatpush.msra.mxu0 %v4603
    %5043 = vmatpush.msra.mxu0 %v4597
    %5044 = vmatpush.msra.mxu0 %v4591
    %5045 = vmatpush.msra.mxu0 %v4585
    %5046 = vmatpush.msra.mxu0 %v4579
    %5047 = vmatpush.msra.mxu0 %v4573
    %5048 = vmatpush.msra.mxu0 %v4567
    %5049 = vmatpush.msra.mxu0 %v4561
    %5050 = vmatpush.msra.mxu0 %v4555
    %5051 = vmatpush.msra.mxu0 %v4549
    %5052 = vmatpush.msra.mxu0 %v4543
    %5053 = vmatmul.f32.gmra.mxu0 %v4033
    %v5054 = vpop.f32.mrf.mxu0
    %v5055 = vadd.f32 0.0, %v5054
    %5056 = vdwg.mxu0
    %5057 = vmatpush.msra.mxu0 %v4729
    %5058 = vmatpush.msra.mxu0 %v4723
    %5059 = vmatpush.msra.mxu0 %v4717
    %5060 = vmatpush.msra.mxu0 %v4711
    %5061 = vmatpush.msra.mxu0 %v4705
    %5062 = vmatpush.msra.mxu0 %v4699
    %5063 = vmatpush.msra.mxu0 %v4693
    %5064 = vmatpush.msra.mxu0 %v4687
    %5065 = vmatpush.msra.mxu0 %v4681
    %5066 = vmatpush.msra.mxu0 %v4675
    %5067 = vmatpush.msra.mxu0 %v4669
    %5068 = vmatpush.msra.mxu0 %v4663
    %5069 = vmatpush.msra.mxu0 %v4657
    %5070 = vmatpush.msra.mxu0 %v4651
    %5071 = vmatpush.msra.mxu0 %v4645
    %5072 = vmatpush.msra.mxu0 %v4639
    %5073 = vmatmul.f32.gmra.mxu0 %v4034
    %v5074 = vpop.f32.mrf.mxu0
    %v5075 = vadd.f32 %v5055, %v5074
    %5076 = vdwg.mxu0
    %5077 = vmatpush.msra.mxu0 0.0
    %5078 = vmatpush.msra.mxu0 0.0
    %5079 = vmatpush.msra.mxu0 0.0
    %5080 = vmatpush.msra.mxu0 0.0
    %5081 = vmatpush.msra.mxu0 0.0
    %5082 = vmatpush.msra.mxu0 0.0
    %5083 = vmatpush.msra.mxu0 0.0
    %5084 = vmatpush.msra.mxu0 0.0
    %5085 = vmatpush.msra.mxu0 0.0
    %5086 = vmatpush.msra.mxu0 0.0
    %5087 = vmatpush.msra.mxu0 0.0
    %5088 = vmatpush.msra.mxu0 0.0
    %5089 = vmatpush.msra.mxu0 %v4753
    %5090 = vmatpush.msra.mxu0 %v4747
    %5091 = vmatpush.msra.mxu0 %v4741
    %5092 = vmatpush.msra.mxu0 %v4735
    %5093 = vmatmul.f32.gmra.mxu0 %v4975
    %v5094 = vpop.f32.mrf.mxu0
    %v5095 = vadd.f32 %v5075, %v5094
    %5096 = vdwg.mxu0
    %5097 = vmatpush.msra.mxu0 %v4634
    %5098 = vmatpush.msra.mxu0 %v4628
    %5099 = vmatpush.msra.mxu0 %v4622
    %5100 = vmatpush.msra.mxu0 %v4616
    %5101 = vmatpush.msra.mxu0 %v4610
    %5102 = vmatpush.msra.mxu0 %v4604
    %5103 = vmatpush.msra.mxu0 %v4598
    %5104 = vmatpush.msra.mxu0 %v4592
    %5105 = vmatpush.msra.mxu0 %v4586
    %5106 = vmatpush.msra.mxu0 %v4580
    %5107 = vmatpush.msra.mxu0 %v4574
    %5108 = vmatpush.msra.mxu0 %v4568
    %5109 = vmatpush.msra.mxu0 %v4562
    %5110 = vmatpush.msra.mxu0 %v4556
    %5111 = vmatpush.msra.mxu0 %v4550
    %5112 = vmatpush.msra.mxu0 %v4544
    %5113 = vmatmul.f32.gmra.mxu0 %v4033
    %v5114 = vpop.f32.mrf.mxu0
    %v5115 = vadd.f32 0.0, %v5114
    %5116 = vdwg.mxu0
    %5117 = vmatpush.msra.mxu0 %v4730
    %5118 = vmatpush.msra.mxu0 %v4724
    %5119 = vmatpush.msra.mxu0 %v4718
    %5120 = vmatpush.msra.mxu0 %v4712
    %5121 = vmatpush.msra.mxu0 %v4706
    %5122 = vmatpush.msra.mxu0 %v4700
    %5123 = vmatpush.msra.mxu0 %v4694
    %5124 = vmatpush.msra.mxu0 %v4688
    %5125 = vmatpush.msra.mxu0 %v4682
    %5126 = vmatpush.msra.mxu0 %v4676
    %5127 = vmatpush.msra.mxu0 %v4670
    %5128 = vmatpush.msra.mxu0 %v4664
    %5129 = vmatpush.msra.mxu0 %v4658
    %5130 = vmatpush.msra.mxu0 %v4652
    %5131 = vmatpush.msra.mxu0 %v4646
    %5132 = vmatpush.msra.mxu0 %v4640
    %5133 = vmatmul.f32.gmra.mxu0 %v4034
    %v5134 = vpop.f32.mrf.mxu0
    %v5135 = vadd.f32 %v5115, %v5134
    %5136 = vdwg.mxu0
    %5137 = vmatpush.msra.mxu0 0.0
    %5138 = vmatpush.msra.mxu0 0.0
    %5139 = vmatpush.msra.mxu0 0.0
    %5140 = vmatpush.msra.mxu0 0.0
    %5141 = vmatpush.msra.mxu0 0.0
    %5142 = vmatpush.msra.mxu0 0.0
    %5143 = vmatpush.msra.mxu0 0.0
    %5144 = vmatpush.msra.mxu0 0.0
    %5145 = vmatpush.msra.mxu0 0.0
    %5146 = vmatpush.msra.mxu0 0.0
    %5147 = vmatpush.msra.mxu0 0.0
    %5148 = vmatpush.msra.mxu0 0.0
    %5149 = vmatpush.msra.mxu0 %v4754
    %5150 = vmatpush.msra.mxu0 %v4748
    %5151 = vmatpush.msra.mxu0 %v4742
    %5152 = vmatpush.msra.mxu0 %v4736
    %5153 = vmatmul.f32.gmra.mxu0 %v4975
    %v5154 = vpop.f32.mrf.mxu0
    %v5155 = vadd.f32 %v5135, %v5154
    %5156 = vdwg.mxu0
    %5157 = vmatpush.msra.mxu0 %v4635
    %5158 = vmatpush.msra.mxu0 %v4629
    %5159 = vmatpush.msra.mxu0 %v4623
    %5160 = vmatpush.msra.mxu0 %v4617
    %5161 = vmatpush.msra.mxu0 %v4611
    %5162 = vmatpush.msra.mxu0 %v4605
    %5163 = vmatpush.msra.mxu0 %v4599
    %5164 = vmatpush.msra.mxu0 %v4593
    %5165 = vmatpush.msra.mxu0 %v4587
    %5166 = vmatpush.msra.mxu0 %v4581
    %5167 = vmatpush.msra.mxu0 %v4575
    %5168 = vmatpush.msra.mxu0 %v4569
    %5169 = vmatpush.msra.mxu0 %v4563
    %5170 = vmatpush.msra.mxu0 %v4557
    %5171 = vmatpush.msra.mxu0 %v4551
    %5172 = vmatpush.msra.mxu0 %v4545
    %5173 = vmatmul.f32.gmra.mxu0 %v4033
    %v5174 = vpop.f32.mrf.mxu0
    %v5175 = vadd.f32 0.0, %v5174
    %5176 = vdwg.mxu0
    %5177 = vmatpush.msra.mxu0 %v4731
    %5178 = vmatpush.msra.mxu0 %v4725
    %5179 = vmatpush.msra.mxu0 %v4719
    %5180 = vmatpush.msra.mxu0 %v4713
    %5181 = vmatpush.msra.mxu0 %v4707
    %5182 = vmatpush.msra.mxu0 %v4701
    %5183 = vmatpush.msra.mxu0 %v4695
    %5184 = vmatpush.msra.mxu0 %v4689
    %5185 = vmatpush.msra.mxu0 %v4683
    %5186 = vmatpush.msra.mxu0 %v4677
    %5187 = vmatpush.msra.mxu0 %v4671
    %5188 = vmatpush.msra.mxu0 %v4665
    %5189 = vmatpush.msra.mxu0 %v4659
    %5190 = vmatpush.msra.mxu0 %v4653
    %5191 = vmatpush.msra.mxu0 %v4647
    %5192 = vmatpush.msra.mxu0 %v4641
    %5193 = vmatmul.f32.gmra.mxu0 %v4034
    %v5194 = vpop.f32.mrf.mxu0
    %v5195 = vadd.f32 %v5175, %v5194
    %5196 = vdwg.mxu0
    %5197 = vmatpush.msra.mxu0 0.0
    %5198 = vmatpush.msra.mxu0 0.0
    %5199 = vmatpush.msra.mxu0 0.0
    %5200 = vmatpush.msra.mxu0 0.0
    %5201 = vmatpush.msra.mxu0 0.0
    %5202 = vmatpush.msra.mxu0 0.0
    %5203 = vmatpush.msra.mxu0 0.0
    %5204 = vmatpush.msra.mxu0 0.0
    %5205 = vmatpush.msra.mxu0 0.0
    %5206 = vmatpush.msra.mxu0 0.0
    %5207 = vmatpush.msra.mxu0 0.0
    %5208 = vmatpush.msra.mxu0 0.0
    %5209 = vmatpush.msra.mxu0 %v4755
    %5210 = vmatpush.msra.mxu0 %v4749
    %5211 = vmatpush.msra.mxu0 %v4743
    %5212 = vmatpush.msra.mxu0 %v4737
    %5213 = vmatmul.f32.gmra.mxu0 %v4975
    %v5214 = vpop.f32.mrf.mxu0
    %v5215 = vadd.f32 %v5195, %v5214
    %5216 = vdwg.mxu0
    %5217 = vmatpush.msra.mxu0 %v4636
    %5218 = vmatpush.msra.mxu0 %v4630
    %5219 = vmatpush.msra.mxu0 %v4624
    %5220 = vmatpush.msra.mxu0 %v4618
    %5221 = vmatpush.msra.mxu0 %v4612
    %5222 = vmatpush.msra.mxu0 %v4606
    %5223 = vmatpush.msra.mxu0 %v4600
    %5224 = vmatpush.msra.mxu0 %v4594
    %5225 = vmatpush.msra.mxu0 %v4588
    %5226 = vmatpush.msra.mxu0 %v4582
    %5227 = vmatpush.msra.mxu0 %v4576
    %5228 = vmatpush.msra.mxu0 %v4570
    %5229 = vmatpush.msra.mxu0 %v4564
    %5230 = vmatpush.msra.mxu0 %v4558
    %5231 = vmatpush.msra.mxu0 %v4552
    %5232 = vmatpush.msra.mxu0 %v4546
    %5233 = vmatmul.f32.gmra.mxu0 %v4033
    %v5234 = vpop.f32.mrf.mxu0
    %v5235 = vadd.f32 0.0, %v5234
    %5236 = vdwg.mxu0
    %5237 = vmatpush.msra.mxu0 %v4732
    %5238 = vmatpush.msra.mxu0 %v4726
    %5239 = vmatpush.msra.mxu0 %v4720
    %5240 = vmatpush.msra.mxu0 %v4714
    %5241 = vmatpush.msra.mxu0 %v4708
    %5242 = vmatpush.msra.mxu0 %v4702
    %5243 = vmatpush.msra.mxu0 %v4696
    %5244 = vmatpush.msra.mxu0 %v4690
    %5245 = vmatpush.msra.mxu0 %v4684
    %5246 = vmatpush.msra.mxu0 %v4678
    %5247 = vmatpush.msra.mxu0 %v4672
    %5248 = vmatpush.msra.mxu0 %v4666
    %5249 = vmatpush.msra.mxu0 %v4660
    %5250 = vmatpush.msra.mxu0 %v4654
    %5251 = vmatpush.msra.mxu0 %v4648
    %5252 = vmatpush.msra.mxu0 %v4642
    %5253 = vmatmul.f32.gmra.mxu0 %v4034
    %v5254 = vpop.f32.mrf.mxu0
    %v5255 = vadd.f32 %v5235, %v5254
    %5256 = vdwg.mxu0
    %5257 = vmatpush.msra.mxu0 0.0
    %5258 = vmatpush.msra.mxu0 0.0
    %5259 = vmatpush.msra.mxu0 0.0
    %5260 = vmatpush.msra.mxu0 0.0
    %5261 = vmatpush.msra.mxu0 0.0
    %5262 = vmatpush.msra.mxu0 0.0
    %5263 = vmatpush.msra.mxu0 0.0
    %5264 = vmatpush.msra.mxu0 0.0
    %5265 = vmatpush.msra.mxu0 0.0
    %5266 = vmatpush.msra.mxu0 0.0
    %5267 = vmatpush.msra.mxu0 0.0
    %5268 = vmatpush.msra.mxu0 0.0
    %5269 = vmatpush.msra.mxu0 %v4756
    %5270 = vmatpush.msra.mxu0 %v4750
    %5271 = vmatpush.msra.mxu0 %v4744
    %5272 = vmatpush.msra.mxu0 %v4738
    %5273 = vmatmul.f32.gmra.mxu0 %v4975
    %v5274 = vpop.f32.mrf.mxu0
    %v5275 = vadd.f32 %v5255, %v5274
    %5276 = vdwg.mxu0
    %5277 = vmatpush.msra.mxu0 %v4637
    %5278 = vmatpush.msra.mxu0 %v4631
    %5279 = vmatpush.msra.mxu0 %v4625
    %5280 = vmatpush.msra.mxu0 %v4619
    %5281 = vmatpush.msra.mxu0 %v4613
    %5282 = vmatpush.msra.mxu0 %v4607
    %5283 = vmatpush.msra.mxu0 %v4601
    %5284 = vmatpush.msra.mxu0 %v4595
    %5285 = vmatpush.msra.mxu0 %v4589
    %5286 = vmatpush.msra.mxu0 %v4583
    %5287 = vmatpush.msra.mxu0 %v4577
    %5288 = vmatpush.msra.mxu0 %v4571
    %5289 = vmatpush.msra.mxu0 %v4565
    %5290 = vmatpush.msra.mxu0 %v4559
    %5291 = vmatpush.msra.mxu0 %v4553
    %5292 = vmatpush.msra.mxu0 %v4547
    %5293 = vmatmul.f32.gmra.mxu0 %v4033
    %v5294 = vpop.f32.mrf.mxu0
    %v5295 = vadd.f32 0.0, %v5294
    %5296 = vdwg.mxu0
    %5297 = vmatpush.msra.mxu0 %v4733
    %5298 = vmatpush.msra.mxu0 %v4727
    %5299 = vmatpush.msra.mxu0 %v4721
    %5300 = vmatpush.msra.mxu0 %v4715
    %5301 = vmatpush.msra.mxu0 %v4709
    %5302 = vmatpush.msra.mxu0 %v4703
    %5303 = vmatpush.msra.mxu0 %v4697
    %5304 = vmatpush.msra.mxu0 %v4691
    %5305 = vmatpush.msra.mxu0 %v4685
    %5306 = vmatpush.msra.mxu0 %v4679
    %5307 = vmatpush.msra.mxu0 %v4673
    %5308 = vmatpush.msra.mxu0 %v4667
    %5309 = vmatpush.msra.mxu0 %v4661
    %5310 = vmatpush.msra.mxu0 %v4655
    %5311 = vmatpush.msra.mxu0 %v4649
    %5312 = vmatpush.msra.mxu0 %v4643
    %5313 = vmatmul.f32.gmra.mxu0 %v4034
    %v5314 = vpop.f32.mrf.mxu0
    %v5315 = vadd.f32 %v5295, %v5314
    %5316 = vdwg.mxu0
    %5317 = vmatpush.msra.mxu0 0.0
    %5318 = vmatpush.msra.mxu0 0.0
    %5319 = vmatpush.msra.mxu0 0.0
    %5320 = vmatpush.msra.mxu0 0.0
    %5321 = vmatpush.msra.mxu0 0.0
    %5322 = vmatpush.msra.mxu0 0.0
    %5323 = vmatpush.msra.mxu0 0.0
    %5324 = vmatpush.msra.mxu0 0.0
    %5325 = vmatpush.msra.mxu0 0.0
    %5326 = vmatpush.msra.mxu0 0.0
    %5327 = vmatpush.msra.mxu0 0.0
    %5328 = vmatpush.msra.mxu0 0.0
    %5329 = vmatpush.msra.mxu0 %v4757
    %5330 = vmatpush.msra.mxu0 %v4751
    %5331 = vmatpush.msra.mxu0 %v4745
    %5332 = vmatpush.msra.mxu0 %v4739
    %5333 = vmatmul.f32.gmra.mxu0 %v4975
    %v5334 = vpop.f32.mrf.mxu0
    %v5335 = vadd.f32 %v5315, %v5334
    %5336 = vdwg.mxu0
    %s5337 = scalar_lea.vmem %s1, 8
    %v5338 = vld [vmem:[%s5337] ss:$8 sm:$0xf]
    %v5339 = vld [vmem:[%s5337] ss:$8 sm:$0x30]
    %v5340 = vor.u32 %v5338, %v5339
    %v5347 = vrot.slane %v5095, 7
    %v5348 = vrot.slane %v5155, 6
    %v5349 = vrot.slane %v5215, 5
    %v5350 = vrot.slane %v5275, 4
    %v5351 = vrot.slane %v5335, 3
    %vm5352 = vcmask 1040384
    %v5353 = vsel %vm5352, %v5035, %v5347
    %vm5354 = vcmask 1041408
    %v5355 = vsel %vm5354, %v5353, %v5348
    %vm5356 = vcmask 1043459
    %v5357 = vsel %vm5356, %v5349, %v5350
    %vm5358 = vcmask 1044483
    %v5359 = vsel %vm5358, %v5357, %v5351
    %vm5360 = vcmask 1042432
    %v5361 = vsel %vm5360, %v5355, %v5359
    %v5363 = vsub.f32 %v5340, %v5361
    %v5364 = vmul.f32 %v5363, %v54
    %v5365 = vlaneseq
    %vm5366 = vcmp.ge.s32.totalorder %v5365, 0
    %vm5367 = vcmp.lt.s32.totalorder %v5365, 768
    %vm5368 = vmand %vm5366, %vm5367
    %5369 = vst.msk [vmem:[#allocation8] sm:$0x3f] %vm5368, %v5364
    // Predicated region
    $region41: #{tpu_custom_call.1} parent=1 // pred_check
      _
    $region42: #{tpu_custom_call.1} parent=1 // pred_check_branch
      %5371 = sbr.rel (0) target = $region44
    $region43: #{tpu_custom_call.1} parent=1 // pred_region
      %5373 = vsyncadd [#allocation5], 0
      %s5375 = sshll.u32 [#allocation8], 4
      %s5376 = int_to_ptr.vmem [resolvable:$true] %s5375
      %s5377 = sshll.u32 %s6, 4
      %s5378 = int_to_ptr.hbm [resolvable:$true] %s5377
      %5380 = dma.vmem_to_hbm [thread:$0]  %s5376, 96, %s5378, [#allocation5]
    $region44: #{tpu_custom_call.1} parent=1 // pred_fallthru
      _
    // Predicated region
    $region45: #{tpu_custom_call.1} parent=1 // pred_check
      _
    $region46: #{tpu_custom_call.1} parent=1 // pred_check_branch
      %5382 = sbr.rel (0) target = $region48
    $region47: #{tpu_custom_call.1} parent=1 // pred_region
      %5384 = dma.done [#allocation5], 96
    $region48: #{tpu_custom_call.1} parent=1 // pred_fallthru
      _
    %5385 = vsyncpa [#allocation4], 1
    %5386 = vsyncpa [#allocation7], 1
    %5387 = vsyncpa [#allocation5], 1

</llo_original>
